<compile_context>
chip_gen: v7x
topology: tpu7x:2x2x1
jax: 0.10.0
libtpu: 0.0.40
codegen_flags: <defaults>
</compile_context>

<pallas_src>
import functools

import jax
import jax.numpy as jnp
from jax.experimental import pallas as pl
from jax.experimental.pallas import tpu as pltpu


_BN_EPS = 1e-5
_SLOPE = 0.2
_LANES = 128


def _round_up(x, m):
    return -(-x // m) * m


def _choose_tm(mp, *, cap=1024):
    """M-block size: >=2 blocks once M is large enough to amortize the extra
    ~0.35us grid step (lets v7x shard the 'parallel' M axis across both TCs),
    otherwise one full-extent block.  `cap` keeps tiles VMEM-bounded."""
    if mp >= 256:
        for tm in (1024, 512, 256, 128, 64, 32, 16):
            if tm <= cap and tm < mp and mp % tm == 0:
                return tm
    return mp


def _pad_a(a, mp, kp):
    """bf16-ify + pad the im2col matrix; both are statically skipped no-ops
    for every layer of the default config."""
    m, k = a.shape
    if a.dtype != jnp.bfloat16:
        a = a.astype(jnp.bfloat16)
    if (mp, kp) != (m, k):
        a = jnp.pad(a, ((0, mp - m), (0, kp - k)))
    return a


# ----------------------------------------------------------------------------
# Kernel 1: single-K-block GEMM with fused LeakyReLU epilogue (layer 1).
# ----------------------------------------------------------------------------
def _gemm_act_kernel(a_ref, b_ref, o_ref, *, act):
    y = jnp.dot(a_ref[...], b_ref[...], preferred_element_type=jnp.float32)
    if act == "leaky":
        y = jnp.maximum(y, _SLOPE * y)
    o_ref[...] = y.astype(o_ref.dtype)


def gemm_act(a, b_packed, *, act, out_dtype):
    """act(A @ B). A: (M, K) bf16; B: pre-packed bf16 (Kp, Np)."""
    m, k = a.shape
    kp, np_ = b_packed.shape
    mp = _round_up(m, 16)
    tm = _choose_tm(mp, cap=1024)
    tn = _LANES
    a = _pad_a(a, mp, kp)
    return pl.pallas_call(
        functools.partial(_gemm_act_kernel, act=act),
        out_shape=jax.ShapeDtypeStruct((mp, np_), out_dtype),
        grid_spec=pltpu.PrefetchScalarGridSpec(
            num_scalar_prefetch=0,
            grid=(mp // tm, np_ // tn),
            in_specs=[
                pl.BlockSpec((tm, kp), lambda i, j: (i, 0)),
                pl.BlockSpec((kp, tn), lambda i, j: (0, j)),
            ],
            out_specs=pl.BlockSpec((tm, tn), lambda i, j: (i, j)),
        ),
        compiler_params=pltpu.CompilerParams(
            dimension_semantics=("parallel", "parallel")
        ),
    )(a, b_packed)


# ----------------------------------------------------------------------------
# Kernel 2: GEMM with fused per-(M-block, channel) partial sum / sum-of-squares
# (BN layers).  Fully parallel grid (no cross-iteration accumulator): each M
# block writes its own stats row; the tiny combine happens on the host graph.
# Conv output is stored bf16; stats stay f32.
# ----------------------------------------------------------------------------
def _gemm_stats_kernel(a_ref, b_ref, o_ref, sum_ref, sq_ref):
    y = jnp.dot(a_ref[...], b_ref[...], preferred_element_type=jnp.float32)
    o_ref[...] = y.astype(o_ref.dtype)
    sum_ref[...] = jnp.sum(y, axis=0, keepdims=True)
    sq_ref[...] = jnp.sum(y * y, axis=0, keepdims=True)


def gemm_stats(a, b_packed):
    """Returns (conv bf16 (Mp, Np), partial sums f32 (Gm, 1, Np), sumsq)."""
    m, k = a.shape
    kp, np_ = b_packed.shape
    mp = _round_up(m, 16)
    tm = _choose_tm(mp, cap=1024)
    tn = _LANES
    gm = mp // tm
    a = _pad_a(a, mp, kp)
    return pl.pallas_call(
        _gemm_stats_kernel,
        out_shape=(
            jax.ShapeDtypeStruct((mp, np_), jnp.bfloat16),
            jax.ShapeDtypeStruct((gm, 1, np_), jnp.float32),
            jax.ShapeDtypeStruct((gm, 1, np_), jnp.float32),
        ),
        grid_spec=pltpu.PrefetchScalarGridSpec(
            num_scalar_prefetch=0,
            grid=(gm, np_ // tn),
            in_specs=[
                pl.BlockSpec((tm, kp), lambda i, j: (i, 0)),
                pl.BlockSpec((kp, tn), lambda i, j: (0, j)),
            ],
            out_specs=(
                pl.BlockSpec((tm, tn), lambda i, j: (i, j)),
                pl.BlockSpec((None, 1, tn), lambda i, j: (i, 0, j)),
                pl.BlockSpec((None, 1, tn), lambda i, j: (i, 0, j)),
            ),
        ),
        compiler_params=pltpu.CompilerParams(
            dimension_semantics=("parallel", "parallel")
        ),
    )(a, b_packed)


# ----------------------------------------------------------------------------
# Kernel 3: fused BN-affine + LeakyReLU (second pass of BN layers 2-3).
# ----------------------------------------------------------------------------
def _affine_lrelu_kernel(x_ref, s_ref, t_ref, o_ref):
    y = x_ref[...].astype(jnp.float32) * s_ref[...] + t_ref[...]
    o_ref[...] = jnp.maximum(y, _SLOPE * y).astype(o_ref.dtype)


def affine_lrelu(x_padded, scale, shift, *, out_dtype):
    """x_padded: (Mp, Np) bf16; scale/shift: (C,). Returns padded (Mp, Np)."""
    mp, np_ = x_padded.shape
    c = scale.shape[0]
    tm = _choose_tm(mp, cap=512)  # explicit cap: VMEM-safe on v7x at scale
    tn = _LANES
    s = jnp.pad(scale.astype(jnp.float32), (0, np_ - c)).reshape(1, np_)
    t = jnp.pad(shift.astype(jnp.float32), (0, np_ - c)).reshape(1, np_)
    return pl.pallas_call(
        _affine_lrelu_kernel,
        out_shape=jax.ShapeDtypeStruct((mp, np_), out_dtype),
        grid_spec=pltpu.PrefetchScalarGridSpec(
            num_scalar_prefetch=0,
            grid=(mp // tm, np_ // tn),
            in_specs=[
                pl.BlockSpec((tm, tn), lambda i, j: (i, j)),
                pl.BlockSpec((1, tn), lambda i, j: (0, j)),
                pl.BlockSpec((1, tn), lambda i, j: (0, j)),
            ],
            out_specs=pl.BlockSpec((tm, tn), lambda i, j: (i, j)),
        ),
        compiler_params=pltpu.CompilerParams(
            dimension_semantics=("parallel", "parallel")
        ),
    )(x_padded, s, t)


# ----------------------------------------------------------------------------
# Kernel 4: layer-4 BN-affine + LeakyReLU fused with the 4x4xC -> 1 head conv
# and Sigmoid.  Rows of x are (n, ho, wo) over the final 4x4 map; w carries the
# matching per-row head weights; sel sums each image's 16 rows.
# ----------------------------------------------------------------------------
def _bn_lrelu_head_kernel(x_ref, s_ref, t_ref, w_ref, sel_ref, o_ref):
    y = x_ref[...].astype(jnp.float32) * s_ref[...] + t_ref[...]
    y = jnp.maximum(y, _SLOPE * y)                         # BN affine + LeakyReLU
    p = y * w_ref[...]                                     # per-tap head weights
    g = jnp.dot(sel_ref[...], p, preferred_element_type=jnp.float32)  # (Nb, Np)
    z = jnp.sum(g, axis=1, keepdims=True)                  # per-image logit
    o_ref[...] = pl.reciprocal(1.0 + jnp.exp(-z), approx=True)  # sigmoid (EUP)


def bn_lrelu_head(conv, scale, shift, w_head_single, *, batch, m):
    """conv: (Mp, Np) bf16, rows ordered (n, ho, wo) over a 4x4 map.
    Returns (Nb, 1) f32 sigmoid outputs (first `batch` rows valid)."""
    mp, np_ = conv.shape
    c = scale.shape[0]
    nb = max(8, _round_up(batch, 8))
    s = jnp.pad(scale.astype(jnp.float32), (0, np_ - c)).reshape(1, np_)
    t = jnp.pad(shift.astype(jnp.float32), (0, np_ - c)).reshape(1, np_)
    # Per-row head weights: row r uses tap (r % 16) of w5; zero for padded rows.
    w = jnp.tile(w_head_single, (batch, 1))
    w = jnp.pad(w, ((0, mp - batch * 16), (0, 0))).astype(jnp.float32)
    # Selector summing each image's 16 rows.
    row_img = jnp.arange(mp) // 16
    sel = (jnp.arange(nb)[:, None] == row_img[None, :]).astype(jnp.float32)
    sel = jnp.where(jnp.arange(mp)[None, :] < m, sel, 0.0)
    return pl.pallas_call(
        _bn_lrelu_head_kernel,
        out_shape=jax.ShapeDtypeStruct((nb, 1), jnp.float32),
        grid_spec=pltpu.PrefetchScalarGridSpec(
            num_scalar_prefetch=0,
            grid=(1,),
            in_specs=[
                pl.BlockSpec((mp, np_), lambda i: (0, 0)),
                pl.BlockSpec((1, np_), lambda i: (0, 0)),
                pl.BlockSpec((1, np_), lambda i: (0, 0)),
                pl.BlockSpec((mp, np_), lambda i: (0, 0)),
                pl.BlockSpec((nb, mp), lambda i: (0, 0)),
            ],
            out_specs=pl.BlockSpec((nb, 1), lambda i: (0, 0)),
        ),
    )(conv, s, t, w, sel)


# ----------------------------------------------------------------------------
# NHWC im2col (XLA glue): channel-minor (kh, kw, c) column order.  Each slice
# is cast to bf16 so the cast fuses into the concat copy (one A materialization).
# ----------------------------------------------------------------------------
def _im2col_nhwc(x_nhwc, *, stride, pad):
    n, h, w, c = x_nhwc.shape
    ho = (h + 2 * pad - 4) // stride + 1
    wo = (w + 2 * pad - 4) // stride + 1
    xp = jnp.pad(x_nhwc, ((0, 0), (pad, pad), (pad, pad), (0, 0))) if pad else x_nhwc
    cols = []
    for kh in range(4):
        for kw in range(4):
            sl = xp[:, kh:kh + stride * ho:stride, kw:kw + stride * wo:stride, :]
            cols.append(sl.astype(jnp.bfloat16))
    a = jnp.concatenate(cols, axis=-1)  # (N, Ho, Wo, 16*C), (kh, kw, c) minor
    return a.reshape(n * ho * wo, 16 * c), (n, ho, wo)


# ----------------------------------------------------------------------------
# Parameters
# ----------------------------------------------------------------------------
def init_params(key, feature_map_dim, n_channels):
    """Raw PyTorch-layout parameters: w (C_out, C_in, KH, KW), BN gamma/beta."""
    fmd = feature_map_dim
    ks = jax.random.split(key, 5)
    std = 0.02
    params = {
        "w1": std * jax.random.normal(ks[0], (fmd, n_channels, 4, 4), jnp.float32),
        "w2": std * jax.random.normal(ks[1], (fmd * 2, fmd, 4, 4), jnp.float32),
        "w3": std * jax.random.normal(ks[2], (fmd * 4, fmd * 2, 4, 4), jnp.float32),
        "w4": std * jax.random.normal(ks[3], (fmd * 8, fmd * 4, 4, 4), jnp.float32),
        "w5": std * jax.random.normal(ks[4], (1, fmd * 8, 4, 4), jnp.float32),
    }
    for li, c in zip((2, 3, 4), (fmd * 2, fmd * 4, fmd * 8)):
        params[f"g{li}"] = jnp.ones((c,), jnp.float32)   # BN gamma
        params[f"b{li}"] = jnp.zeros((c,), jnp.float32)  # BN beta
    return params


def _pack_weight(w):
    """(C_out, C_in, KH, KW) -> bf16 (Kp, Np) with K ordered (kh, kw, c_in)."""
    c_out, c_in, kh, kw = w.shape
    k = kh * kw * c_in
    kp = _round_up(k, 16)         # bf16 sublane packing only; no 128-K waste
    np_ = _round_up(c_out, _LANES)  # lane-dense output columns
    b = w.transpose(2, 3, 1, 0).reshape(k, c_out)
    return jnp.pad(b, ((0, kp - k), (0, np_ - c_out))).astype(jnp.bfloat16)


def _pack_head_weight(w5, np_):
    """(1, C, 4, 4) -> (16, Np) f32; rows ordered (kh, kw) to match the
    (n, ho, wo) row order of the layer-4 conv output."""
    c = w5.shape[1]
    wh = w5[0].transpose(1, 2, 0).reshape(16, c)
    return jnp.pad(wh, ((0, 0), (0, np_ - c))).astype(jnp.float32)


def pack_params(params):
    """One-time pre-pack: transposed/padded bf16 GEMM weights, BN affines and
    the per-tap head weights for the fused layer-4+5 kernel."""
    packed = {f"b{li}": _pack_weight(params[f"w{li}"]) for li in (1, 2, 3, 4)}
    for li in (2, 3, 4):
        packed[f"gamma{li}"] = params[f"g{li}"]
        packed[f"beta{li}"] = params[f"b{li}"]
    c4 = params["w4"].shape[0]
    packed["w_head"] = _pack_head_weight(params["w5"], _round_up(c4, _LANES))
    return packed


def _bn_affine(ssum, ssq, m, gamma, beta):
    """Combine per-block partial stats into train-mode BN scale/shift.
    Note: E[x^2]-E[x]^2 in f32 (cancellation-prone only for extreme means)."""
    c = gamma.shape[0]
    s = jnp.sum(ssum, axis=0)[0, :c]
    q = jnp.sum(ssq, axis=0)[0, :c]
    mean = s / m
    var = jnp.maximum(q / m - mean * mean, 0.0)  # biased var (PyTorch norm)
    scale = gamma * jax.lax.rsqrt(var + _BN_EPS)
    shift = beta - mean * scale
    return scale, shift


# ----------------------------------------------------------------------------
# Discriminator forward (NCHW in, (N,1,1,1) out; NHWC-flat internally)
# ----------------------------------------------------------------------------
def discriminator_forward(x_nchw, packed, *, feature_map_dim):
    fmd = feature_map_dim
    # NCHW -> NHWC and bf16 at the boundary (single fused copy).
    x = jnp.transpose(x_nchw, (0, 2, 3, 1)).astype(jnp.bfloat16)

    # Layer 1: Conv(nc -> fmd, 4, 2, 1) + LeakyReLU(0.2), fused epilogue.
    a, (n, ho, wo) = _im2col_nhwc(x, stride=2, pad=1)
    y = gemm_act(a, packed["b1"], act="leaky", out_dtype=jnp.bfloat16)
    x = y[: n * ho * wo, :fmd].reshape(n, ho, wo, fmd)

    # Layers 2-3: Conv + BatchNorm2d (training-mode batch stats) + LeakyReLU.
    for li, c in ((2, 2 * fmd), (3, 4 * fmd)):
        a, (n, ho, wo) = _im2col_nhwc(x, stride=2, pad=1)
        m = n * ho * wo
        conv, ssum, ssq = gemm_stats(a, packed[f"b{li}"])
        scale, shift = _bn_affine(ssum, ssq, m,
                                  packed[f"gamma{li}"], packed[f"beta{li}"])
        y = affine_lrelu(conv, scale, shift, out_dtype=jnp.bfloat16)
        x = y[:m, :c].reshape(n, ho, wo, c)

    # Layer 4 + head: Conv + BN + LeakyReLU fused with Conv(8*fmd->1, 4, 1, 0)
    # + Sigmoid.  No standalone layer-5 call, no layer-4 activation writeback.
    a, (n, ho, wo) = _im2col_nhwc(x, stride=2, pad=1)
    assert ho == 4 and wo == 4, "DCGAN discriminator expects a 64x64 input"
    m = n * ho * wo
    conv, ssum, ssq = gemm_stats(a, packed["b4"])
    scale, shift = _bn_affine(ssum, ssq, m, packed["gamma4"], packed["beta4"])
    out = bn_lrelu_head(conv, scale, shift, packed["w_head"], batch=n, m=m)
    return out[:n].reshape(n, 1, 1, 1)  # NCHW (N, 1, 1, 1)


if __name__ == "__main__":
    feature_map_dim = 8
    n_channels = 3
    batch = 2
    # DCGAN discriminator requires 64x64 spatial input to end at a 1x1 map.
    key = jax.random.PRNGKey(0)
    k_x, k_p = jax.random.split(key)
    x = jax.random.normal(k_x, (batch, n_channels, 64, 64), jnp.float32)
    params = init_params(k_p, feature_map_dim, n_channels)
    packed = pack_params(params)

    fwd = jax.jit(
        functools.partial(discriminator_forward, feature_map_dim=feature_map_dim)
    )
    out = jax.block_until_ready(fwd(x, packed))

    assert out.shape == (batch, 1, 1, 1), out.shape
    assert bool(jnp.all(jnp.isfinite(out)))
    assert bool(jnp.all((out > 0.0) & (out < 1.0)))
    print("KERNEL_OK")
</pallas_src>

<mosaic_0001>
module attributes {stable_mosaic.version = 11 : i64} {
  func.func @_gemm_act_kernel(%arg0: i32, %arg1: i32, %arg2: memref<1024x48xbf16, #tpu.memory_space<vmem>>, %arg3: memref<48x128xbf16, #tpu.memory_space<vmem>>, %arg4: memref<1024x128xbf16, #tpu.memory_space<vmem>>) attributes {dimension_semantics = [#tpu.dimension_semantics<parallel>, #tpu.dimension_semantics<parallel>], iteration_bounds = array<i64: 2, 1>, scalar_prefetch = 0 : i64, scratch_operands = 0 : i64, tpu.core_type = #tpu.core_type<tc>, window_params = [{transform_indices = @transform_0, window_bounds = array<i64: 1024, 48>}, {transform_indices = @transform_1, window_bounds = array<i64: 48, 128>}, {transform_indices = @transform_2, window_bounds = array<i64: 1024, 128>}]} {
    %c0 = arith.constant 0 : index
    %c0_0 = arith.constant 0 : index
    %0 = vector.load %arg2[%c0, %c0_0] : memref<1024x48xbf16, #tpu.memory_space<vmem>>, vector<1024x48xbf16>
    %c0_1 = arith.constant 0 : index
    %c0_2 = arith.constant 0 : index
    %1 = vector.load %arg3[%c0_1, %c0_2] : memref<48x128xbf16, #tpu.memory_space<vmem>>, vector<48x128xbf16>
    %cst = arith.constant dense<0.000000e+00> : vector<1024x128xf32>
    %2 = tpu.matmul %0, %1, %cst {dimension_numbers = #tpu.dot_dimension_numbers<[1], [0], [0], [1], [0, 0, 1, 1], [], []>} : vector<1024x48xbf16>, vector<48x128xbf16>, vector<1024x128xf32> -> vector<1024x128xf32>
    %cst_3 = arith.constant 2.000000e-01 : f32
    %3 = vector.broadcast %cst_3 : f32 to vector<1024x128xf32>
    %4 = arith.mulf %3, %2 : vector<1024x128xf32>
    %5 = arith.maximumf %2, %4 : vector<1024x128xf32>
    %6 = arith.truncf %5 : vector<1024x128xf32> to vector<1024x128xbf16>
    %c0_4 = arith.constant 0 : index
    %c0_5 = arith.constant 0 : index
    %7 = vector.load %arg4[%c0_4, %c0_5] : memref<1024x128xbf16, #tpu.memory_space<vmem>>, vector<1024x128xbf16>
    tpu.vector_store %arg4[%c0_4, %c0_5], %6 {strides = array<i32>} : memref<1024x128xbf16, #tpu.memory_space<vmem>>, vector<1024x128xbf16>,
    return
  }
  func.func @transform_0(%arg0: i32, %arg1: i32) -> (i32, i32) {
    %c0_i32 = arith.constant 0 : i32
    %c0_i32_0 = arith.constant 0 : i32
    return %arg0, %c0_i32 : i32, i32
  }
  func.func @transform_1(%arg0: i32, %arg1: i32) -> (i32, i32) {
    %c0_i32 = arith.constant 0 : i32
    %c0_i32_0 = arith.constant 0 : i32
    return %c0_i32, %arg1 : i32, i32
  }
  func.func @transform_2(%arg0: i32, %arg1: i32) -> (i32, i32) {
    %c0_i32 = arith.constant 0 : i32
    return %arg0, %arg1 : i32, i32
  }
}

module attributes {stable_mosaic.version = 11 : i64} {
  func.func @_gemm_stats_kernel(%arg0: i32, %arg1: i32, %arg2: memref<256x128xbf16, #tpu.memory_space<vmem>>, %arg3: memref<128x128xbf16, #tpu.memory_space<vmem>>, %arg4: memref<256x128xbf16, #tpu.memory_space<vmem>>, %arg5: memref<1x1x128xf32, #tpu.memory_space<vmem>>, %arg6: memref<1x1x128xf32, #tpu.memory_space<vmem>>) attributes {dimension_semantics = [#tpu.dimension_semantics<parallel>, #tpu.dimension_semantics<parallel>], iteration_bounds = array<i64: 2, 1>, scalar_prefetch = 0 : i64, scratch_operands = 0 : i64, tpu.core_type = #tpu.core_type<tc>, window_params = [{transform_indices = @transform_0, window_bounds = array<i64: 256, 128>}, {transform_indices = @transform_1, window_bounds = array<i64: 128, 128>}, {transform_indices = @transform_2, window_bounds = array<i64: 256, 128>}, {transform_indices = @transform_3, window_bounds = array<i64: 1, 1, 128>}, {transform_indices = @transform_4, window_bounds = array<i64: 1, 1, 128>}]} {
    %c0 = arith.constant 0 : index
    %c0_0 = arith.constant 0 : index
    %0 = vector.load %arg2[%c0, %c0_0] : memref<256x128xbf16, #tpu.memory_space<vmem>>, vector<256x128xbf16>
    %c0_1 = arith.constant 0 : index
    %c0_2 = arith.constant 0 : index
    %1 = vector.load %arg3[%c0_1, %c0_2] : memref<128x128xbf16, #tpu.memory_space<vmem>>, vector<128x128xbf16>
    %cst = arith.constant dense<0.000000e+00> : vector<256x128xf32>
    %2 = tpu.matmul %0, %1, %cst {dimension_numbers = #tpu.dot_dimension_numbers<[1], [0], [0], [1], [0, 0, 1, 1], [], []>} : vector<256x128xbf16>, vector<128x128xbf16>, vector<256x128xf32> -> vector<256x128xf32>
    %3 = arith.truncf %2 : vector<256x128xf32> to vector<256x128xbf16>
    %c0_3 = arith.constant 0 : index
    %c0_4 = arith.constant 0 : index
    %4 = vector.load %arg4[%c0_3, %c0_4] : memref<256x128xbf16, #tpu.memory_space<vmem>>, vector<256x128xbf16>
    tpu.vector_store %arg4[%c0_3, %c0_4], %3 {strides = array<i32>} : memref<256x128xbf16, #tpu.memory_space<vmem>>, vector<256x128xbf16>,
    %cst_5 = arith.constant dense<0.000000e+00> : vector<128xf32>
    %5 = vector.multi_reduction <add>, %2, %cst_5 [0] : vector<256x128xf32> to vector<128xf32>
    %6 = vector.shape_cast %5 : vector<128xf32> to vector<1x128xf32>
    %c0_6 = arith.constant 0 : index
    %c0_7 = arith.constant 0 : index
    %c0_8 = arith.constant 0 : index
    %7 = vector.load %arg5[%c0_6, %c0_7, %c0_8] : memref<1x1x128xf32, #tpu.memory_space<vmem>>, vector<1x1x128xf32>
    %8 = vector.shape_cast %7 : vector<1x1x128xf32> to vector<1x128xf32>
    %9 = vector.shape_cast %6 : vector<1x128xf32> to vector<1x1x128xf32>
    tpu.vector_store %arg5[%c0_6, %c0_7, %c0_8], %9 {strides = array<i32>} : memref<1x1x128xf32, #tpu.memory_space<vmem>>, vector<1x1x128xf32>,
    %10 = arith.mulf %2, %2 : vector<256x128xf32>
    %cst_9 = arith.constant dense<0.000000e+00> : vector<128xf32>
    %11 = vector.multi_reduction <add>, %10, %cst_9 [0] : vector<256x128xf32> to vector<128xf32>
    %12 = vector.shape_cast %11 : vector<128xf32> to vector<1x128xf32>
    %c0_10 = arith.constant 0 : index
    %c0_11 = arith.constant 0 : index
    %c0_12 = arith.constant 0 : index
    %13 = vector.load %arg6[%c0_10, %c0_11, %c0_12] : memref<1x1x128xf32, #tpu.memory_space<vmem>>, vector<1x1x128xf32>
    %14 = vector.shape_cast %13 : vector<1x1x128xf32> to vector<1x128xf32>
    %15 = vector.shape_cast %12 : vector<1x128xf32> to vector<1x1x128xf32>
    tpu.vector_store %arg6[%c0_10, %c0_11, %c0_12], %15 {strides = array<i32>} : memref<1x1x128xf32, #tpu.memory_space<vmem>>, vector<1x1x128xf32>,
    return
  }
  func.func @transform_0(%arg0: i32, %arg1: i32) -> (i32, i32) {
    %c0_i32 = arith.constant 0 : i32
    %c0_i32_0 = arith.constant 0 : i32
    return %arg0, %c0_i32 : i32, i32
  }
  func.func @transform_1(%arg0: i32, %arg1: i32) -> (i32, i32) {
    %c0_i32 = arith.constant 0 : i32
    %c0_i32_0 = arith.constant 0 : i32
    return %c0_i32, %arg1 : i32, i32
  }
  func.func @transform_2(%arg0: i32, %arg1: i32) -> (i32, i32) {
    %c0_i32 = arith.constant 0 : i32
    return %arg0, %arg1 : i32, i32
  }
  func.func @transform_3(%arg0: i32, %arg1: i32) -> (i32, i32, i32) {
    %c0_i32 = arith.constant 0 : i32
    %c0_i32_0 = arith.constant 0 : i32
    return %arg0, %c0_i32, %arg1 : i32, i32, i32
  }
  func.func @transform_4(%arg0: i32, %arg1: i32) -> (i32, i32, i32) {
    %c0_i32 = arith.constant 0 : i32
    %c0_i32_0 = arith.constant 0 : i32
    return %arg0, %c0_i32, %arg1 : i32, i32, i32
  }
}

module attributes {stable_mosaic.version = 11 : i64} {
  func.func @_affine_lrelu_kernel(%arg0: i32, %arg1: i32, %arg2: memref<256x128xbf16, #tpu.memory_space<vmem>>, %arg3: memref<1x128xf32, #tpu.memory_space<vmem>>, %arg4: memref<1x128xf32, #tpu.memory_space<vmem>>, %arg5: memref<256x128xbf16, #tpu.memory_space<vmem>>) attributes {dimension_semantics = [#tpu.dimension_semantics<parallel>, #tpu.dimension_semantics<parallel>], iteration_bounds = array<i64: 2, 1>, scalar_prefetch = 0 : i64, scratch_operands = 0 : i64, tpu.core_type = #tpu.core_type<tc>, window_params = [{transform_indices = @transform_0, window_bounds = array<i64: 256, 128>}, {transform_indices = @transform_1, window_bounds = array<i64: 1, 128>}, {transform_indices = @transform_2, window_bounds = array<i64: 1, 128>}, {transform_indices = @transform_3, window_bounds = array<i64: 256, 128>}]} {
    %c0 = arith.constant 0 : index
    %c0_0 = arith.constant 0 : index
    %0 = vector.load %arg2[%c0, %c0_0] : memref<256x128xbf16, #tpu.memory_space<vmem>>, vector<256x128xbf16>
    %1 = arith.extf %0 : vector<256x128xbf16> to vector<256x128xf32>
    %c0_1 = arith.constant 0 : index
    %c0_2 = arith.constant 0 : index
    %2 = vector.load %arg3[%c0_1, %c0_2] : memref<1x128xf32, #tpu.memory_space<vmem>>, vector<1x128xf32>
    %3 = vector.broadcast %2 : vector<1x128xf32> to vector<256x128xf32>
    %4 = arith.mulf %1, %3 : vector<256x128xf32>
    %c0_3 = arith.constant 0 : index
    %c0_4 = arith.constant 0 : index
    %5 = vector.load %arg4[%c0_3, %c0_4] : memref<1x128xf32, #tpu.memory_space<vmem>>, vector<1x128xf32>
    %6 = vector.broadcast %5 : vector<1x128xf32> to vector<256x128xf32>
    %7 = arith.addf %4, %6 : vector<256x128xf32>
    %cst = arith.constant 2.000000e-01 : f32
    %8 = vector.broadcast %cst : f32 to vector<256x128xf32>
    %9 = arith.mulf %8, %7 : vector<256x128xf32>
    %10 = arith.maximumf %7, %9 : vector<256x128xf32>
    %11 = arith.truncf %10 : vector<256x128xf32> to vector<256x128xbf16>
    %c0_5 = arith.constant 0 : index
    %c0_6 = arith.constant 0 : index
    %12 = vector.load %arg5[%c0_5, %c0_6] : memref<256x128xbf16, #tpu.memory_space<vmem>>, vector<256x128xbf16>
    tpu.vector_store %arg5[%c0_5, %c0_6], %11 {strides = array<i32>} : memref<256x128xbf16, #tpu.memory_space<vmem>>, vector<256x128xbf16>,
    return
  }
  func.func @transform_0(%arg0: i32, %arg1: i32) -> (i32, i32) {
    %c0_i32 = arith.constant 0 : i32
    return %arg0, %arg1 : i32, i32
  }
  func.func @transform_1(%arg0: i32, %arg1: i32) -> (i32, i32) {
    %c0_i32 = arith.constant 0 : i32
    %c0_i32_0 = arith.constant 0 : i32
    return %c0_i32, %arg1 : i32, i32
  }
  func.func @transform_2(%arg0: i32, %arg1: i32) -> (i32, i32) {
    %c0_i32 = arith.constant 0 : i32
    %c0_i32_0 = arith.constant 0 : i32
    return %c0_i32, %arg1 : i32, i32
  }
  func.func @transform_3(%arg0: i32, %arg1: i32) -> (i32, i32) {
    %c0_i32 = arith.constant 0 : i32
    return %arg0, %arg1 : i32, i32
  }
}

module attributes {stable_mosaic.version = 11 : i64} {
  func.func @_gemm_stats_kernel(%arg0: i32, %arg1: i32, %arg2: memref<128x256xbf16, #tpu.memory_space<vmem>>, %arg3: memref<256x128xbf16, #tpu.memory_space<vmem>>, %arg4: memref<128x128xbf16, #tpu.memory_space<vmem>>, %arg5: memref<1x1x128xf32, #tpu.memory_space<vmem>>, %arg6: memref<1x1x128xf32, #tpu.memory_space<vmem>>) attributes {dimension_semantics = [#tpu.dimension_semantics<parallel>, #tpu.dimension_semantics<parallel>], iteration_bounds = array<i64: 1, 1>, scalar_prefetch = 0 : i64, scratch_operands = 0 : i64, tpu.core_type = #tpu.core_type<tc>, window_params = [{transform_indices = @transform_0, window_bounds = array<i64: 128, 256>}, {transform_indices = @transform_1, window_bounds = array<i64: 256, 128>}, {transform_indices = @transform_2, window_bounds = array<i64: 128, 128>}, {transform_indices = @transform_3, window_bounds = array<i64: 1, 1, 128>}, {transform_indices = @transform_4, window_bounds = array<i64: 1, 1, 128>}]} {
    %c0 = arith.constant 0 : index
    %c0_0 = arith.constant 0 : index
    %0 = vector.load %arg2[%c0, %c0_0] : memref<128x256xbf16, #tpu.memory_space<vmem>>, vector<128x256xbf16>
    %c0_1 = arith.constant 0 : index
    %c0_2 = arith.constant 0 : index
    %1 = vector.load %arg3[%c0_1, %c0_2] : memref<256x128xbf16, #tpu.memory_space<vmem>>, vector<256x128xbf16>
    %cst = arith.constant dense<0.000000e+00> : vector<128x128xf32>
    %2 = tpu.matmul %0, %1, %cst {dimension_numbers = #tpu.dot_dimension_numbers<[1], [0], [0], [1], [0, 0, 1, 1], [], []>} : vector<128x256xbf16>, vector<256x128xbf16>, vector<128x128xf32> -> vector<128x128xf32>
    %3 = arith.truncf %2 : vector<128x128xf32> to vector<128x128xbf16>
    %c0_3 = arith.constant 0 : index
    %c0_4 = arith.constant 0 : index
    %4 = vector.load %arg4[%c0_3, %c0_4] : memref<128x128xbf16, #tpu.memory_space<vmem>>, vector<128x128xbf16>
    tpu.vector_store %arg4[%c0_3, %c0_4], %3 {strides = array<i32>} : memref<128x128xbf16, #tpu.memory_space<vmem>>, vector<128x128xbf16>,
    %cst_5 = arith.constant dense<0.000000e+00> : vector<128xf32>
    %5 = vector.multi_reduction <add>, %2, %cst_5 [0] : vector<128x128xf32> to vector<128xf32>
    %6 = vector.shape_cast %5 : vector<128xf32> to vector<1x128xf32>
    %c0_6 = arith.constant 0 : index
    %c0_7 = arith.constant 0 : index
    %c0_8 = arith.constant 0 : index
    %7 = vector.load %arg5[%c0_6, %c0_7, %c0_8] : memref<1x1x128xf32, #tpu.memory_space<vmem>>, vector<1x1x128xf32>
    %8 = vector.shape_cast %7 : vector<1x1x128xf32> to vector<1x128xf32>
    %9 = vector.shape_cast %6 : vector<1x128xf32> to vector<1x1x128xf32>
    tpu.vector_store %arg5[%c0_6, %c0_7, %c0_8], %9 {strides = array<i32>} : memref<1x1x128xf32, #tpu.memory_space<vmem>>, vector<1x1x128xf32>,
    %10 = arith.mulf %2, %2 : vector<128x128xf32>
    %cst_9 = arith.constant dense<0.000000e+00> : vector<128xf32>
    %11 = vector.multi_reduction <add>, %10, %cst_9 [0] : vector<128x128xf32> to vector<128xf32>
    %12 = vector.shape_cast %11 : vector<128xf32> to vector<1x128xf32>
    %c0_10 = arith.constant 0 : index
    %c0_11 = arith.constant 0 : index
    %c0_12 = arith.constant 0 : index
    %13 = vector.load %arg6[%c0_10, %c0_11, %c0_12] : memref<1x1x128xf32, #tpu.memory_space<vmem>>, vector<1x1x128xf32>
    %14 = vector.shape_cast %13 : vector<1x1x128xf32> to vector<1x128xf32>
    %15 = vector.shape_cast %12 : vector<1x128xf32> to vector<1x1x128xf32>
    tpu.vector_store %arg6[%c0_10, %c0_11, %c0_12], %15 {strides = array<i32>} : memref<1x1x128xf32, #tpu.memory_space<vmem>>, vector<1x1x128xf32>,
    return
  }
  func.func @transform_0(%arg0: i32, %arg1: i32) -> (i32, i32) {
    %c0_i32 = arith.constant 0 : i32
    %c0_i32_0 = arith.constant 0 : i32
    return %arg0, %c0_i32 : i32, i32
  }
  func.func @transform_1(%arg0: i32, %arg1: i32) -> (i32, i32) {
    %c0_i32 = arith.constant 0 : i32
    %c0_i32_0 = arith.constant 0 : i32
    return %c0_i32, %arg1 : i32, i32
  }
  func.func @transform_2(%arg0: i32, %arg1: i32) -> (i32, i32) {
    %c0_i32 = arith.constant 0 : i32
    return %arg0, %arg1 : i32, i32
  }
  func.func @transform_3(%arg0: i32, %arg1: i32) -> (i32, i32, i32) {
    %c0_i32 = arith.constant 0 : i32
    %c0_i32_0 = arith.constant 0 : i32
    return %arg0, %c0_i32, %arg1 : i32, i32, i32
  }
  func.func @transform_4(%arg0: i32, %arg1: i32) -> (i32, i32, i32) {
    %c0_i32 = arith.constant 0 : i32
    %c0_i32_0 = arith.constant 0 : i32
    return %arg0, %c0_i32, %arg1 : i32, i32, i32
  }
}

module attributes {stable_mosaic.version = 11 : i64} {
  func.func @_affine_lrelu_kernel(%arg0: i32, %arg1: i32, %arg2: memref<128x128xbf16, #tpu.memory_space<vmem>>, %arg3: memref<1x128xf32, #tpu.memory_space<vmem>>, %arg4: memref<1x128xf32, #tpu.memory_space<vmem>>, %arg5: memref<128x128xbf16, #tpu.memory_space<vmem>>) attributes {dimension_semantics = [#tpu.dimension_semantics<parallel>, #tpu.dimension_semantics<parallel>], iteration_bounds = array<i64: 1, 1>, scalar_prefetch = 0 : i64, scratch_operands = 0 : i64, tpu.core_type = #tpu.core_type<tc>, window_params = [{transform_indices = @transform_0, window_bounds = array<i64: 128, 128>}, {transform_indices = @transform_1, window_bounds = array<i64: 1, 128>}, {transform_indices = @transform_2, window_bounds = array<i64: 1, 128>}, {transform_indices = @transform_3, window_bounds = array<i64: 128, 128>}]} {
    %c0 = arith.constant 0 : index
    %c0_0 = arith.constant 0 : index
    %0 = vector.load %arg2[%c0, %c0_0] : memref<128x128xbf16, #tpu.memory_space<vmem>>, vector<128x128xbf16>
    %1 = arith.extf %0 : vector<128x128xbf16> to vector<128x128xf32>
    %c0_1 = arith.constant 0 : index
    %c0_2 = arith.constant 0 : index
    %2 = vector.load %arg3[%c0_1, %c0_2] : memref<1x128xf32, #tpu.memory_space<vmem>>, vector<1x128xf32>
    %3 = vector.broadcast %2 : vector<1x128xf32> to vector<128x128xf32>
    %4 = arith.mulf %1, %3 : vector<128x128xf32>
    %c0_3 = arith.constant 0 : index
    %c0_4 = arith.constant 0 : index
    %5 = vector.load %arg4[%c0_3, %c0_4] : memref<1x128xf32, #tpu.memory_space<vmem>>, vector<1x128xf32>
    %6 = vector.broadcast %5 : vector<1x128xf32> to vector<128x128xf32>
    %7 = arith.addf %4, %6 : vector<128x128xf32>
    %cst = arith.constant 2.000000e-01 : f32
    %8 = vector.broadcast %cst : f32 to vector<128x128xf32>
    %9 = arith.mulf %8, %7 : vector<128x128xf32>
    %10 = arith.maximumf %7, %9 : vector<128x128xf32>
    %11 = arith.truncf %10 : vector<128x128xf32> to vector<128x128xbf16>
    %c0_5 = arith.constant 0 : index
    %c0_6 = arith.constant 0 : index
    %12 = vector.load %arg5[%c0_5, %c0_6] : memref<128x128xbf16, #tpu.memory_space<vmem>>, vector<128x128xbf16>
    tpu.vector_store %arg5[%c0_5, %c0_6], %11 {strides = array<i32>} : memref<128x128xbf16, #tpu.memory_space<vmem>>, vector<128x128xbf16>,
    return
  }
  func.func @transform_0(%arg0: i32, %arg1: i32) -> (i32, i32) {
    %c0_i32 = arith.constant 0 : i32
    return %arg0, %arg1 : i32, i32
  }
  func.func @transform_1(%arg0: i32, %arg1: i32) -> (i32, i32) {
    %c0_i32 = arith.constant 0 : i32
    %c0_i32_0 = arith.constant 0 : i32
    return %c0_i32, %arg1 : i32, i32
  }
  func.func @transform_2(%arg0: i32, %arg1: i32) -> (i32, i32) {
    %c0_i32 = arith.constant 0 : i32
    %c0_i32_0 = arith.constant 0 : i32
    return %c0_i32, %arg1 : i32, i32
  }
  func.func @transform_3(%arg0: i32, %arg1: i32) -> (i32, i32) {
    %c0_i32 = arith.constant 0 : i32
    return %arg0, %arg1 : i32, i32
  }
}

module attributes {stable_mosaic.version = 11 : i64} {
  func.func @_gemm_stats_kernel(%arg0: i32, %arg1: i32, %arg2: memref<32x512xbf16, #tpu.memory_space<vmem>>, %arg3: memref<512x128xbf16, #tpu.memory_space<vmem>>, %arg4: memref<32x128xbf16, #tpu.memory_space<vmem>>, %arg5: memref<1x1x128xf32, #tpu.memory_space<vmem>>, %arg6: memref<1x1x128xf32, #tpu.memory_space<vmem>>) attributes {dimension_semantics = [#tpu.dimension_semantics<parallel>, #tpu.dimension_semantics<parallel>], iteration_bounds = array<i64: 1, 1>, scalar_prefetch = 0 : i64, scratch_operands = 0 : i64, tpu.core_type = #tpu.core_type<tc>, window_params = [{transform_indices = @transform_0, window_bounds = array<i64: 32, 512>}, {transform_indices = @transform_1, window_bounds = array<i64: 512, 128>}, {transform_indices = @transform_2, window_bounds = array<i64: 32, 128>}, {transform_indices = @transform_3, window_bounds = array<i64: 1, 1, 128>}, {transform_indices = @transform_4, window_bounds = array<i64: 1, 1, 128>}]} {
    %c0 = arith.constant 0 : index
    %c0_0 = arith.constant 0 : index
    %0 = vector.load %arg2[%c0, %c0_0] : memref<32x512xbf16, #tpu.memory_space<vmem>>, vector<32x512xbf16>
    %c0_1 = arith.constant 0 : index
    %c0_2 = arith.constant 0 : index
    %1 = vector.load %arg3[%c0_1, %c0_2] : memref<512x128xbf16, #tpu.memory_space<vmem>>, vector<512x128xbf16>
    %cst = arith.constant dense<0.000000e+00> : vector<32x128xf32>
    %2 = tpu.matmul %0, %1, %cst {dimension_numbers = #tpu.dot_dimension_numbers<[1], [0], [0], [1], [0, 0, 1, 1], [], []>} : vector<32x512xbf16>, vector<512x128xbf16>, vector<32x128xf32> -> vector<32x128xf32>
    %3 = arith.truncf %2 : vector<32x128xf32> to vector<32x128xbf16>
    %c0_3 = arith.constant 0 : index
    %c0_4 = arith.constant 0 : index
    %4 = vector.load %arg4[%c0_3, %c0_4] : memref<32x128xbf16, #tpu.memory_space<vmem>>, vector<32x128xbf16>
    tpu.vector_store %arg4[%c0_3, %c0_4], %3 {strides = array<i32>} : memref<32x128xbf16, #tpu.memory_space<vmem>>, vector<32x128xbf16>,
    %cst_5 = arith.constant dense<0.000000e+00> : vector<128xf32>
    %5 = vector.multi_reduction <add>, %2, %cst_5 [0] : vector<32x128xf32> to vector<128xf32>
    %6 = vector.shape_cast %5 : vector<128xf32> to vector<1x128xf32>
    %c0_6 = arith.constant 0 : index
    %c0_7 = arith.constant 0 : index
    %c0_8 = arith.constant 0 : index
    %7 = vector.load %arg5[%c0_6, %c0_7, %c0_8] : memref<1x1x128xf32, #tpu.memory_space<vmem>>, vector<1x1x128xf32>
    %8 = vector.shape_cast %7 : vector<1x1x128xf32> to vector<1x128xf32>
    %9 = vector.shape_cast %6 : vector<1x128xf32> to vector<1x1x128xf32>
    tpu.vector_store %arg5[%c0_6, %c0_7, %c0_8], %9 {strides = array<i32>} : memref<1x1x128xf32, #tpu.memory_space<vmem>>, vector<1x1x128xf32>,
    %10 = arith.mulf %2, %2 : vector<32x128xf32>
    %cst_9 = arith.constant dense<0.000000e+00> : vector<128xf32>
    %11 = vector.multi_reduction <add>, %10, %cst_9 [0] : vector<32x128xf32> to vector<128xf32>
    %12 = vector.shape_cast %11 : vector<128xf32> to vector<1x128xf32>
    %c0_10 = arith.constant 0 : index
    %c0_11 = arith.constant 0 : index
    %c0_12 = arith.constant 0 : index
    %13 = vector.load %arg6[%c0_10, %c0_11, %c0_12] : memref<1x1x128xf32, #tpu.memory_space<vmem>>, vector<1x1x128xf32>
    %14 = vector.shape_cast %13 : vector<1x1x128xf32> to vector<1x128xf32>
    %15 = vector.shape_cast %12 : vector<1x128xf32> to vector<1x1x128xf32>
    tpu.vector_store %arg6[%c0_10, %c0_11, %c0_12], %15 {strides = array<i32>} : memref<1x1x128xf32, #tpu.memory_space<vmem>>, vector<1x1x128xf32>,
    return
  }
  func.func @transform_0(%arg0: i32, %arg1: i32) -> (i32, i32) {
    %c0_i32 = arith.constant 0 : i32
    %c0_i32_0 = arith.constant 0 : i32
    return %arg0, %c0_i32 : i32, i32
  }
  func.func @transform_1(%arg0: i32, %arg1: i32) -> (i32, i32) {
    %c0_i32 = arith.constant 0 : i32
    %c0_i32_0 = arith.constant 0 : i32
    return %c0_i32, %arg1 : i32, i32
  }
  func.func @transform_2(%arg0: i32, %arg1: i32) -> (i32, i32) {
    %c0_i32 = arith.constant 0 : i32
    return %arg0, %arg1 : i32, i32
  }
  func.func @transform_3(%arg0: i32, %arg1: i32) -> (i32, i32, i32) {
    %c0_i32 = arith.constant 0 : i32
    %c0_i32_0 = arith.constant 0 : i32
    return %arg0, %c0_i32, %arg1 : i32, i32, i32
  }
  func.func @transform_4(%arg0: i32, %arg1: i32) -> (i32, i32, i32) {
    %c0_i32 = arith.constant 0 : i32
    %c0_i32_0 = arith.constant 0 : i32
    return %arg0, %c0_i32, %arg1 : i32, i32, i32
  }
}

module attributes {stable_mosaic.version = 11 : i64} {
  func.func @_bn_lrelu_head_kernel(%arg0: i32, %arg1: memref<32x128xbf16, #tpu.memory_space<vmem>>, %arg2: memref<1x128xf32, #tpu.memory_space<vmem>>, %arg3: memref<1x128xf32, #tpu.memory_space<vmem>>, %arg4: memref<32x128xf32, #tpu.memory_space<vmem>>, %arg5: memref<8x32xf32, #tpu.memory_space<vmem>>, %arg6: memref<8x1xf32, #tpu.memory_space<vmem>>) attributes {dimension_semantics = [#tpu.dimension_semantics<arbitrary>], iteration_bounds = array<i64: 1>, scalar_prefetch = 0 : i64, scratch_operands = 0 : i64, tpu.core_type = #tpu.core_type<tc>, window_params = [{pipeline_mode = #tpu.pipeline_mode<synchronous>, transform_indices = @transform_0, window_bounds = array<i64: 32, 128>}, {pipeline_mode = #tpu.pipeline_mode<synchronous>, transform_indices = @transform_1, window_bounds = array<i64: 1, 128>}, {pipeline_mode = #tpu.pipeline_mode<synchronous>, transform_indices = @transform_2, window_bounds = array<i64: 1, 128>}, {pipeline_mode = #tpu.pipeline_mode<synchronous>, transform_indices = @transform_3, window_bounds = array<i64: 32, 128>}, {pipeline_mode = #tpu.pipeline_mode<synchronous>, transform_indices = @transform_4, window_bounds = array<i64: 8, 32>}, {pipeline_mode = #tpu.pipeline_mode<synchronous>, transform_indices = @transform_5, window_bounds = array<i64: 8, 1>}]} {
    %c0 = arith.constant 0 : index
    %c0_0 = arith.constant 0 : index
    %0 = vector.load %arg1[%c0, %c0_0] : memref<32x128xbf16, #tpu.memory_space<vmem>>, vector<32x128xbf16>
    %1 = arith.extf %0 : vector<32x128xbf16> to vector<32x128xf32>
    %c0_1 = arith.constant 0 : index
    %c0_2 = arith.constant 0 : index
    %2 = vector.load %arg2[%c0_1, %c0_2] : memref<1x128xf32, #tpu.memory_space<vmem>>, vector<1x128xf32>
    %3 = vector.broadcast %2 : vector<1x128xf32> to vector<32x128xf32>
    %4 = arith.mulf %1, %3 : vector<32x128xf32>
    %c0_3 = arith.constant 0 : index
    %c0_4 = arith.constant 0 : index
    %5 = vector.load %arg3[%c0_3, %c0_4] : memref<1x128xf32, #tpu.memory_space<vmem>>, vector<1x128xf32>
    %6 = vector.broadcast %5 : vector<1x128xf32> to vector<32x128xf32>
    %7 = arith.addf %4, %6 : vector<32x128xf32>
    %cst = arith.constant 2.000000e-01 : f32
    %8 = vector.broadcast %cst : f32 to vector<32x128xf32>
    %9 = arith.mulf %8, %7 : vector<32x128xf32>
    %10 = arith.maximumf %7, %9 : vector<32x128xf32>
    %c0_5 = arith.constant 0 : index
    %c0_6 = arith.constant 0 : index
    %11 = vector.load %arg4[%c0_5, %c0_6] : memref<32x128xf32, #tpu.memory_space<vmem>>, vector<32x128xf32>
    %12 = arith.mulf %10, %11 : vector<32x128xf32>
    %c0_7 = arith.constant 0 : index
    %c0_8 = arith.constant 0 : index
    %13 = vector.load %arg5[%c0_7, %c0_8] : memref<8x32xf32, #tpu.memory_space<vmem>>, vector<8x32xf32>
    %cst_9 = arith.constant dense<0.000000e+00> : vector<8x128xf32>
    %14 = tpu.matmul %13, %12, %cst_9 {dimension_numbers = #tpu.dot_dimension_numbers<[1], [0], [0], [1], [0, 0, 1, 1], [], []>} : vector<8x32xf32>, vector<32x128xf32>, vector<8x128xf32> -> vector<8x128xf32>
    %cst_10 = arith.constant dense<0.000000e+00> : vector<8xf32>
    %15 = vector.multi_reduction <add>, %14, %cst_10 [1] : vector<8x128xf32> to vector<8xf32>
    %16 = vector.shape_cast %15 : vector<8xf32> to vector<8x1xf32>
    %cst_11 = arith.constant 0.000000e+00 : f32
    %17 = vector.broadcast %cst_11 : f32 to vector<8x1xf32>
    %18 = arith.subf %17, %16 : vector<8x1xf32>
    %19 = math.exp %18 : vector<8x1xf32>
    %cst_12 = arith.constant 1.000000e+00 : f32
    %20 = vector.broadcast %cst_12 : f32 to vector<8x1xf32>
    %21 = arith.addf %20, %19 : vector<8x1xf32>
    %22 = tpu.reciprocal %21 {approx = true} : vector<8x1xf32> -> vector<8x1xf32>
    %c0_13 = arith.constant 0 : index
    %c0_14 = arith.constant 0 : index
    %23 = vector.load %arg6[%c0_13, %c0_14] : memref<8x1xf32, #tpu.memory_space<vmem>>, vector<8x1xf32>
    tpu.vector_store %arg6[%c0_13, %c0_14], %22 {strides = array<i32>} : memref<8x1xf32, #tpu.memory_space<vmem>>, vector<8x1xf32>,
    return
  }
  func.func @transform_0(%arg0: i32) -> (i32, i32) {
    %c0_i32 = arith.constant 0 : i32
    %c0_i32_0 = arith.constant 0 : i32
    %c0_i32_1 = arith.constant 0 : i32
    return %c0_i32, %c0_i32_0 : i32, i32
  }
  func.func @transform_1(%arg0: i32) -> (i32, i32) {
    %c0_i32 = arith.constant 0 : i32
    %c0_i32_0 = arith.constant 0 : i32
    %c0_i32_1 = arith.constant 0 : i32
    return %c0_i32, %c0_i32_0 : i32, i32
  }
  func.func @transform_2(%arg0: i32) -> (i32, i32) {
    %c0_i32 = arith.constant 0 : i32
    %c0_i32_0 = arith.constant 0 : i32
    %c0_i32_1 = arith.constant 0 : i32
    return %c0_i32, %c0_i32_0 : i32, i32
  }
  func.func @transform_3(%arg0: i32) -> (i32, i32) {
    %c0_i32 = arith.constant 0 : i32
    %c0_i32_0 = arith.constant 0 : i32
    %c0_i32_1 = arith.constant 0 : i32
    return %c0_i32, %c0_i32_0 : i32, i32
  }
  func.func @transform_4(%arg0: i32) -> (i32, i32) {
    %c0_i32 = arith.constant 0 : i32
    %c0_i32_0 = arith.constant 0 : i32
    %c0_i32_1 = arith.constant 0 : i32
    return %c0_i32, %c0_i32_0 : i32, i32
  }
  func.func @transform_5(%arg0: i32) -> (i32, i32) {
    %c0_i32 = arith.constant 0 : i32
    %c0_i32_0 = arith.constant 0 : i32
    %c0_i32_1 = arith.constant 0 : i32
    return %c0_i32, %c0_i32_0 : i32, i32
  }
}

</mosaic_0001>

<llo_original>
// kernel: discriminator_forward.7
$region0: #{discriminator_forward.7}
  #allocation0 [shape = 'u32[]', space=smem, size = 0x4, offset = 0x4, fixed_abs, tag = 'smem constant byte address 0x4 - core index']
  #allocation1 [shape = 'u32[144,128]{1,0:T(1,128)}', space=vmem, size = 0x12000, scoped, tag = 'internal scratch']
  %s0 = inlined_call_operand.vmem [shape: bf16[2048,48], index: 0, kind: input, shape index: {}]
  %s1 = inlined_call_operand.vmem [shape: bf16[48,128], index: 1, kind: input, shape index: {}]
  %s2 = inlined_call_operand.vmem [shape: bf16[2048,128], index: 2, kind: output, shape index: {}]
  %s3 = sld [smem:[#allocation0]]
  $region41: #{discriminator_forward.7} parent=0
    _
  %s5 = ssub.s32 1, %s3
  %s6 = scalar_select 0, %s5, %s3
  loop: start=0, step=1, limit=4
  $region2: #{discriminator_forward.7} parent=0 // loop_pre_header
    _
  $region3: #{discriminator_forward.7} parent=0 // loop_header
    %s8 = sphi 0, %s12
    %p9 = scmp.ge.s32.totalorder %s8, 4
    %s15 = sphi 0, %s27
    %s16 = sphi 0, %s23
    %s17 = sphi 0, %s15
    %s18 = sphi 0, %s16
    %s19 = sphi 0, %s17
    %s20 = sphi 0, %s18
    %s30 = sphi 0, %s32
    %s33 = sphi 0, %s30
    %s34 = sphi 0, %s33
    %s50 = sphi 0, %s34
    %s56 = sphi 0, %s58
    %s59 = sphi 0, %s56
    %s60 = sphi 0, %s59
    %s76 = sphi 0, %s60
    %s84 = sphi 0, %s86
    %s87 = sphi 0, %s84
    %s88 = sphi 0, %s87
    %s104 = sphi 0, %s88
  $region4: #{discriminator_forward.7} parent=0 // loop_header_branch
    %11 = sbr.rel (%p9) target = $region8
  $region5: #{discriminator_forward.7} parent=0 // loop_body
    %s13 = ssub.s32 %s8, 1
    %s14 = ssub.s32 %s8, 2
    %s21 = sadd.s32 1, %s16
    %p22 = scmp.ge.s32.totalorder %s21, 1
    %s23 = scalar_select %p22, 0, %s21
    %s24 = sadd.s32 1, %s15
    %s25 = scalar_select %p22, %s24, %s15
    %p26 = scmp.ge.s32.totalorder %s25, 2
    %s27 = scalar_select %p26, 0, %s25
    %s28 = ssub.s32 %s15, %s27
    %p29 = scmp.eq.s32.totalorder %s28, 0
    %s31 = sadd.s32 %s30, 1
    %s32 = scalar_select %p29, %s30, %s31
    %p35 = pneg %p29
    %p36 = scmp.eq.s32.totalorder %s8, 1
    %p37 = por %p35, %p36
    %p38 = scmp.ne.s32.totalorder %s30, %s33
    %p39 = scmp.eq.s32.totalorder %s8, 0
    %p40 = por %p38, %p39
    %p41 = scmp.ne.s32.totalorder %s30, %s33
    %p42 = scmp.eq.s32.totalorder %s13, 1
    %p43 = por %p41, %p42
    %p44 = scmp.ne.s32.totalorder %s33, %s34
    %p45 = scmp.eq.s32.totalorder %s13, 0
    %p46 = por %p44, %p45
    %p47 = scmp.ne.s32.totalorder %s33, %s34
    %p48 = scmp.eq.s32.totalorder %s14, 1
    %p49 = por %p47, %p48
    %p51 = scmp.ne.s32.totalorder %s34, %s50
    %p52 = scmp.eq.s32.totalorder %s14, 0
    %p53 = por %p51, %p52
    %s54 = ssub.s32 %s16, %s23
    %p55 = scmp.eq.s32.totalorder %s54, 0
    %s57 = sadd.s32 %s56, 1
    %s58 = scalar_select %p55, %s56, %s57
    %p61 = pneg %p55
    %p62 = scmp.eq.s32.totalorder %s8, 1
    %p63 = por %p61, %p62
    %p64 = scmp.ne.s32.totalorder %s56, %s59
    %p65 = scmp.eq.s32.totalorder %s8, 0
    %p66 = por %p64, %p65
    %p67 = scmp.ne.s32.totalorder %s56, %s59
    %p68 = scmp.eq.s32.totalorder %s13, 1
    %p69 = por %p67, %p68
    %p70 = scmp.ne.s32.totalorder %s59, %s60
    %p71 = scmp.eq.s32.totalorder %s13, 0
    %p72 = por %p70, %p71
    %p73 = scmp.ne.s32.totalorder %s59, %s60
    %p74 = scmp.eq.s32.totalorder %s14, 1
    %p75 = por %p73, %p74
    %p77 = scmp.ne.s32.totalorder %s60, %s76
    %p78 = scmp.eq.s32.totalorder %s14, 0
    %p79 = por %p77, %p78
    %s80 = ssub.s32 %s15, %s27
    %s81 = ssub.s32 %s16, %s23
    %s82 = sor.u32 %s80, %s81
    %p83 = scmp.eq.s32.totalorder %s82, 0
    %s85 = sadd.s32 %s84, 1
    %s86 = scalar_select %p83, %s84, %s85
    %p89 = pneg %p83
    %p90 = scmp.eq.s32.totalorder %s8, 1
    %p91 = por %p89, %p90
    %p92 = scmp.ne.s32.totalorder %s84, %s87
    %p93 = scmp.eq.s32.totalorder %s8, 0
    %p94 = por %p92, %p93
    %p95 = scmp.ne.s32.totalorder %s84, %s87
    %p96 = scmp.eq.s32.totalorder %s13, 1
    %p97 = por %p95, %p96
    %p98 = scmp.ne.s32.totalorder %s87, %s88
    %p99 = scmp.eq.s32.totalorder %s13, 0
    %p100 = por %p98, %p99
    %p101 = scmp.ne.s32.totalorder %s87, %s88
    %p102 = scmp.eq.s32.totalorder %s14, 1
    %p103 = por %p101, %p102
    %p105 = scmp.ne.s32.totalorder %s88, %s104
    %p106 = scmp.eq.s32.totalorder %s14, 0
    %p107 = por %p105, %p106
    %p108 = scmp.le.s32.totalorder 1, %s8
    %p109 = scmp.lt.s32.totalorder %s8, 3
    %p110 = pnand %p108, %p109
    %p111 = pneg %p110
    // Predicated region
    $region9: #{discriminator_forward.7} parent=5 // pred_check
      _
    $region10: #{discriminator_forward.7} parent=5 // pred_check_branch
      %113 = sbr.rel (%p110) target = $region12
    $region11: #{discriminator_forward.7} parent=5 // pred_region
      %s114 = ssub.s32 %s8, 1
      // Predicated region
      $region13: #{discriminator_forward.7} parent=11 // pred_check
        %p115 = pneg %p72
      $region14: #{discriminator_forward.7} parent=11 // pred_check_branch
        %117 = sbr.rel (%p115) target = $region16
      $region15: #{discriminator_forward.7} parent=11 // pred_region
        %p118 = scmp.lt.s32.totalorder %s18, 0
        %s119 = scalar_select %p118, %s18, 0
        %s120 = smul.addr %s119, 4
        %s121 = scalar_lea.vmem %s1, %s120
      $region16: #{discriminator_forward.7} parent=11 // pred_fallthru
        _
    $region12: #{discriminator_forward.7} parent=5 // pred_fallthru
      _
    %p122 = scmp.lt.s32.totalorder %s8, 2
    // Predicated region
    $region17: #{discriminator_forward.7} parent=5 // pred_check
      %p123 = pneg %p122
    $region18: #{discriminator_forward.7} parent=5 // pred_check_branch
      %125 = sbr.rel (%p123) target = $region20
    $region19: #{discriminator_forward.7} parent=5 // pred_region
      // Predicated region
      $region21: #{discriminator_forward.7} parent=19 // pred_check
        %p126 = pneg %p40
      $region22: #{discriminator_forward.7} parent=19 // pred_check_branch
        %128 = sbr.rel (%p126) target = $region24
      $region23: #{discriminator_forward.7} parent=19 // pred_region
        %s129 = smul.u32 128, %s15
        %p130 = scmp.lt.s32.totalorder %s129, 255
        %s131 = scalar_select %p130, %s129, 255
        %s132 = smul.addr %s131, 4
        %s133 = scalar_lea.vmem %s0, %s132
        %s134 = smul.u32 128, %s15
      $region24: #{discriminator_forward.7} parent=19 // pred_fallthru
        _
    $region20: #{discriminator_forward.7} parent=5 // pred_fallthru
      _
    %p135 = scmp.le.s32.totalorder 1, %s8
    %p136 = scmp.lt.s32.totalorder %s8, 3
    %p137 = pnand %p135, %p136
    %p138 = pneg %p137
    // Predicated region
    $region25: #{discriminator_forward.7} parent=5 // pred_check
      _
    $region26: #{discriminator_forward.7} parent=5 // pred_check_branch
      %140 = sbr.rel (%p137) target = $region28
    $region27: #{discriminator_forward.7} parent=5 // pred_region
      %s141 = ssub.s32 %s8, 1
      %s142 = smul.u32 128, %s17
      %p143 = scmp.lt.s32.totalorder %s142, 255
      %s144 = scalar_select %p143, %s142, 255
      %s145 = smul.addr %s144, 4
      %s146 = scalar_lea.vmem %s0, %s145
      %p147 = pneg %p46
      %p148 = pneg %p43
      %p149 = scmp.lt.s32.totalorder %s18, 0
      %s150 = scalar_select %p149, %s18, 0
      %s151 = smul.addr %s150, 4
      %s152 = scalar_lea.vmem %s1, %s151
      %p153 = pneg %p72
      %p154 = pneg %p69
      %p155 = pneg %p100
      %p156 = pneg %p97
      %s157 = smul.u32 128, %s17
      %p158 = scmp.lt.s32.totalorder %s157, 255
      %s159 = scalar_select %p158, %s157, 255
      %p160 = scmp.lt.s32.totalorder %s18, 0
      %s161 = scalar_select %p160, %s18, 0
      %s162 = sadd.s32 %s161, %s159
      %s163 = smul.addr %s162, 4
      %s164 = scalar_lea.vmem %s2, %s163
      %s165 = smul.u32 128, %s17
      %p166 = scmp.lt.s32.totalorder %s165, 255
      %s167 = scalar_select %p166, %s165, 255
      %s168 = smul.addr %s167, 4
      %s169 = scalar_lea.vmem %s0, %s168
      %s170 = smul.u32 128, %s17
      %p171 = scmp.lt.s32.totalorder %s18, 0
      %s172 = scalar_select %p171, %s18, 0
      %s173 = smul.addr %s172, 4
      %s174 = scalar_lea.vmem %s1, %s173
      %s175 = smul.u32 128, %s17
      %p176 = scmp.lt.s32.totalorder %s175, 255
      %s177 = scalar_select %p176, %s175, 255
      %p178 = scmp.lt.s32.totalorder %s18, 0
      %s179 = scalar_select %p178, %s18, 0
      %s180 = sadd.s32 %s179, %s177
      %s181 = smul.addr %s180, 4
      %s182 = scalar_lea.vmem %s2, %s181
      %s183 = smul.u32 128, %s17
      %v185 = vld [vmem:[%s169] sm:$0xf]
      %v186 = vld [vmem:[%s169 + $0x4] sm:$0xf]
      %v187 = vld [vmem:[%s169 + $0x8] sm:$0xf]
      %v188 = vld [vmem:[%s169 + $0xc] sm:$0xf]
      %v189 = vld [vmem:[%s169 + $0x10] sm:$0xf]
      %v190 = vld [vmem:[%s169 + $0x14] sm:$0xf]
      %v191 = vld [vmem:[%s169 + $0x18] sm:$0xf]
      %v192 = vld [vmem:[%s169 + $0x1c] sm:$0xf]
      %v193 = vld [vmem:[%s169 + $0x20] sm:$0xf]
      %v194 = vld [vmem:[%s169 + $0x24] sm:$0xf]
      %v195 = vld [vmem:[%s169 + $0x28] sm:$0xf]
      %v196 = vld [vmem:[%s169 + $0x2c] sm:$0xf]
      %v197 = vld [vmem:[%s169 + $0x30] sm:$0xf]
      %v198 = vld [vmem:[%s169 + $0x34] sm:$0xf]
      %v199 = vld [vmem:[%s169 + $0x38] sm:$0xf]
      %v200 = vld [vmem:[%s169 + $0x3c] sm:$0xf]
      %v201 = vld [vmem:[%s169 + $0x40] sm:$0xf]
      %v202 = vld [vmem:[%s169 + $0x44] sm:$0xf]
      %v203 = vld [vmem:[%s169 + $0x48] sm:$0xf]
      %v204 = vld [vmem:[%s169 + $0x4c] sm:$0xf]
      %v205 = vld [vmem:[%s169 + $0x50] sm:$0xf]
      %v206 = vld [vmem:[%s169 + $0x54] sm:$0xf]
      %v207 = vld [vmem:[%s169 + $0x58] sm:$0xf]
      %v208 = vld [vmem:[%s169 + $0x5c] sm:$0xf]
      %v209 = vld [vmem:[%s169 + $0x60] sm:$0xf]
      %v210 = vld [vmem:[%s169 + $0x64] sm:$0xf]
      %v211 = vld [vmem:[%s169 + $0x68] sm:$0xf]
      %v212 = vld [vmem:[%s169 + $0x6c] sm:$0xf]
      %v213 = vld [vmem:[%s169 + $0x70] sm:$0xf]
      %v214 = vld [vmem:[%s169 + $0x74] sm:$0xf]
      %v215 = vld [vmem:[%s169 + $0x78] sm:$0xf]
      %v216 = vld [vmem:[%s169 + $0x7c] sm:$0xf]
      %v217 = vld [vmem:[%s169 + $0x80] sm:$0xf]
      %v218 = vld [vmem:[%s169 + $0x84] sm:$0xf]
      %v219 = vld [vmem:[%s169 + $0x88] sm:$0xf]
      %v220 = vld [vmem:[%s169 + $0x8c] sm:$0xf]
      %v221 = vld [vmem:[%s169 + $0x90] sm:$0xf]
      %v222 = vld [vmem:[%s169 + $0x94] sm:$0xf]
      %v223 = vld [vmem:[%s169 + $0x98] sm:$0xf]
      %v224 = vld [vmem:[%s169 + $0x9c] sm:$0xf]
      %v225 = vld [vmem:[%s169 + $0xa0] sm:$0xf]
      %v226 = vld [vmem:[%s169 + $0xa4] sm:$0xf]
      %v227 = vld [vmem:[%s169 + $0xa8] sm:$0xf]
      %v228 = vld [vmem:[%s169 + $0xac] sm:$0xf]
      %v229 = vld [vmem:[%s169 + $0xb0] sm:$0xf]
      %v230 = vld [vmem:[%s169 + $0xb4] sm:$0xf]
      %v231 = vld [vmem:[%s169 + $0xb8] sm:$0xf]
      %v232 = vld [vmem:[%s169 + $0xbc] sm:$0xf]
      %v233 = vld [vmem:[%s169 + $0xc0] sm:$0xf]
      %v234 = vld [vmem:[%s169 + $0xc4] sm:$0xf]
      %v235 = vld [vmem:[%s169 + $0xc8] sm:$0xf]
      %v236 = vld [vmem:[%s169 + $0xcc] sm:$0xf]
      %v237 = vld [vmem:[%s169 + $0xd0] sm:$0xf]
      %v238 = vld [vmem:[%s169 + $0xd4] sm:$0xf]
      %v239 = vld [vmem:[%s169 + $0xd8] sm:$0xf]
      %v240 = vld [vmem:[%s169 + $0xdc] sm:$0xf]
      %v241 = vld [vmem:[%s169 + $0xe0] sm:$0xf]
      %v242 = vld [vmem:[%s169 + $0xe4] sm:$0xf]
      %v243 = vld [vmem:[%s169 + $0xe8] sm:$0xf]
      %v244 = vld [vmem:[%s169 + $0xec] sm:$0xf]
      %v245 = vld [vmem:[%s169 + $0xf0] sm:$0xf]
      %v246 = vld [vmem:[%s169 + $0xf4] sm:$0xf]
      %v247 = vld [vmem:[%s169 + $0xf8] sm:$0xf]
      %v248 = vld [vmem:[%s169 + $0xfc] sm:$0xf]
      %v249 = vld [vmem:[%s169 + $0x100] sm:$0xf]
      %v250 = vld [vmem:[%s169 + $0x104] sm:$0xf]
      %v251 = vld [vmem:[%s169 + $0x108] sm:$0xf]
      %v252 = vld [vmem:[%s169 + $0x10c] sm:$0xf]
      %v253 = vld [vmem:[%s169 + $0x110] sm:$0xf]
      %v254 = vld [vmem:[%s169 + $0x114] sm:$0xf]
      %v255 = vld [vmem:[%s169 + $0x118] sm:$0xf]
      %v256 = vld [vmem:[%s169 + $0x11c] sm:$0xf]
      %v257 = vld [vmem:[%s169 + $0x120] sm:$0xf]
      %v258 = vld [vmem:[%s169 + $0x124] sm:$0xf]
      %v259 = vld [vmem:[%s169 + $0x128] sm:$0xf]
      %v260 = vld [vmem:[%s169 + $0x12c] sm:$0xf]
      %v261 = vld [vmem:[%s169 + $0x130] sm:$0xf]
      %v262 = vld [vmem:[%s169 + $0x134] sm:$0xf]
      %v263 = vld [vmem:[%s169 + $0x138] sm:$0xf]
      %v264 = vld [vmem:[%s169 + $0x13c] sm:$0xf]
      %v265 = vld [vmem:[%s169 + $0x140] sm:$0xf]
      %v266 = vld [vmem:[%s169 + $0x144] sm:$0xf]
      %v267 = vld [vmem:[%s169 + $0x148] sm:$0xf]
      %v268 = vld [vmem:[%s169 + $0x14c] sm:$0xf]
      %v269 = vld [vmem:[%s169 + $0x150] sm:$0xf]
      %v270 = vld [vmem:[%s169 + $0x154] sm:$0xf]
      %v271 = vld [vmem:[%s169 + $0x158] sm:$0xf]
      %v272 = vld [vmem:[%s169 + $0x15c] sm:$0xf]
      %v273 = vld [vmem:[%s169 + $0x160] sm:$0xf]
      %v274 = vld [vmem:[%s169 + $0x164] sm:$0xf]
      %v275 = vld [vmem:[%s169 + $0x168] sm:$0xf]
      %v276 = vld [vmem:[%s169 + $0x16c] sm:$0xf]
      %v277 = vld [vmem:[%s169 + $0x170] sm:$0xf]
      %v278 = vld [vmem:[%s169 + $0x174] sm:$0xf]
      %v279 = vld [vmem:[%s169 + $0x178] sm:$0xf]
      %v280 = vld [vmem:[%s169 + $0x17c] sm:$0xf]
      %v281 = vld [vmem:[%s169 + $0x180] sm:$0xf]
      %v282 = vld [vmem:[%s169 + $0x184] sm:$0xf]
      %v283 = vld [vmem:[%s169 + $0x188] sm:$0xf]
      %v284 = vld [vmem:[%s169 + $0x18c] sm:$0xf]
      %v285 = vld [vmem:[%s169 + $0x190] sm:$0xf]
      %v286 = vld [vmem:[%s169 + $0x194] sm:$0xf]
      %v287 = vld [vmem:[%s169 + $0x198] sm:$0xf]
      %v288 = vld [vmem:[%s169 + $0x19c] sm:$0xf]
      %v289 = vld [vmem:[%s169 + $0x1a0] sm:$0xf]
      %v290 = vld [vmem:[%s169 + $0x1a4] sm:$0xf]
      %v291 = vld [vmem:[%s169 + $0x1a8] sm:$0xf]
      %v292 = vld [vmem:[%s169 + $0x1ac] sm:$0xf]
      %v293 = vld [vmem:[%s169 + $0x1b0] sm:$0xf]
      %v294 = vld [vmem:[%s169 + $0x1b4] sm:$0xf]
      %v295 = vld [vmem:[%s169 + $0x1b8] sm:$0xf]
      %v296 = vld [vmem:[%s169 + $0x1bc] sm:$0xf]
      %v297 = vld [vmem:[%s169 + $0x1c0] sm:$0xf]
      %v298 = vld [vmem:[%s169 + $0x1c4] sm:$0xf]
      %v299 = vld [vmem:[%s169 + $0x1c8] sm:$0xf]
      %v300 = vld [vmem:[%s169 + $0x1cc] sm:$0xf]
      %v301 = vld [vmem:[%s169 + $0x1d0] sm:$0xf]
      %v302 = vld [vmem:[%s169 + $0x1d4] sm:$0xf]
      %v303 = vld [vmem:[%s169 + $0x1d8] sm:$0xf]
      %v304 = vld [vmem:[%s169 + $0x1dc] sm:$0xf]
      %v305 = vld [vmem:[%s169 + $0x1e0] sm:$0xf]
      %v306 = vld [vmem:[%s169 + $0x1e4] sm:$0xf]
      %v307 = vld [vmem:[%s169 + $0x1e8] sm:$0xf]
      %v308 = vld [vmem:[%s169 + $0x1ec] sm:$0xf]
      %v309 = vld [vmem:[%s169 + $0x1f0] sm:$0xf]
      %v310 = vld [vmem:[%s169 + $0x1f4] sm:$0xf]
      %v311 = vld [vmem:[%s169 + $0x1f8] sm:$0xf]
      %v312 = vld [vmem:[%s169 + $0x1fc] sm:$0xf]
      %v313 = vld [vmem:[%s174] sm:$0xf]
      %v314 = vld [vmem:[%s174 + $0x4] sm:$0xf]
      %v315 = vld [vmem:[%s174 + $0x8] sm:$0xf]
      %v316 = vld [vmem:[%s174 + $0xc] sm:$0xf]
      %v317 = vld [vmem:[%s174 + $0x10] sm:$0xf]
      %v318 = vld [vmem:[%s174 + $0x14] sm:$0xf]
      %v447 = vunpack.c.l.b16 %v185
      %v448 = vunpack.c.l.b16 %v186
      %v449 = vunpack.c.l.b16 %v187
      %v450 = vunpack.c.l.b16 %v188
      %v451 = vunpack.c.l.b16 %v189
      %v452 = vunpack.c.l.b16 %v190
      %v453 = vunpack.c.l.b16 %v191
      %v454 = vunpack.c.l.b16 %v192
      %v455 = vunpack.c.l.b16 %v193
      %v456 = vunpack.c.l.b16 %v194
      %v457 = vunpack.c.l.b16 %v195
      %v458 = vunpack.c.l.b16 %v196
      %v459 = vunpack.c.l.b16 %v197
      %v460 = vunpack.c.l.b16 %v198
      %v461 = vunpack.c.l.b16 %v199
      %v462 = vunpack.c.l.b16 %v200
      %v463 = vunpack.c.l.b16 %v201
      %v464 = vunpack.c.l.b16 %v202
      %v465 = vunpack.c.l.b16 %v203
      %v466 = vunpack.c.l.b16 %v204
      %v467 = vunpack.c.l.b16 %v205
      %v468 = vunpack.c.l.b16 %v206
      %v469 = vunpack.c.l.b16 %v207
      %v470 = vunpack.c.l.b16 %v208
      %v471 = vunpack.c.l.b16 %v209
      %v472 = vunpack.c.l.b16 %v210
      %v473 = vunpack.c.l.b16 %v211
      %v474 = vunpack.c.l.b16 %v212
      %v475 = vunpack.c.l.b16 %v213
      %v476 = vunpack.c.l.b16 %v214
      %v477 = vunpack.c.l.b16 %v215
      %v478 = vunpack.c.l.b16 %v216
      %v479 = vunpack.c.l.b16 %v217
      %v480 = vunpack.c.l.b16 %v218
      %v481 = vunpack.c.l.b16 %v219
      %v482 = vunpack.c.l.b16 %v220
      %v483 = vunpack.c.l.b16 %v221
      %v484 = vunpack.c.l.b16 %v222
      %v485 = vunpack.c.l.b16 %v223
      %v486 = vunpack.c.l.b16 %v224
      %v487 = vunpack.c.l.b16 %v225
      %v488 = vunpack.c.l.b16 %v226
      %v489 = vunpack.c.l.b16 %v227
      %v490 = vunpack.c.l.b16 %v228
      %v491 = vunpack.c.l.b16 %v229
      %v492 = vunpack.c.l.b16 %v230
      %v493 = vunpack.c.l.b16 %v231
      %v494 = vunpack.c.l.b16 %v232
      %v495 = vunpack.c.l.b16 %v233
      %v496 = vunpack.c.l.b16 %v234
      %v497 = vunpack.c.l.b16 %v235
      %v498 = vunpack.c.l.b16 %v236
      %v499 = vunpack.c.l.b16 %v237
      %v500 = vunpack.c.l.b16 %v238
      %v501 = vunpack.c.l.b16 %v239
      %v502 = vunpack.c.l.b16 %v240
      %v503 = vunpack.c.l.b16 %v241
      %v504 = vunpack.c.l.b16 %v242
      %v505 = vunpack.c.l.b16 %v243
      %v506 = vunpack.c.l.b16 %v244
      %v507 = vunpack.c.l.b16 %v245
      %v508 = vunpack.c.l.b16 %v246
      %v509 = vunpack.c.l.b16 %v247
      %v510 = vunpack.c.l.b16 %v248
      %v511 = vunpack.c.l.b16 %v249
      %v512 = vunpack.c.l.b16 %v250
      %v513 = vunpack.c.l.b16 %v251
      %v514 = vunpack.c.l.b16 %v252
      %v515 = vunpack.c.l.b16 %v253
      %v516 = vunpack.c.l.b16 %v254
      %v517 = vunpack.c.l.b16 %v255
      %v518 = vunpack.c.l.b16 %v256
      %v519 = vunpack.c.l.b16 %v257
      %v520 = vunpack.c.l.b16 %v258
      %v521 = vunpack.c.l.b16 %v259
      %v522 = vunpack.c.l.b16 %v260
      %v523 = vunpack.c.l.b16 %v261
      %v524 = vunpack.c.l.b16 %v262
      %v525 = vunpack.c.l.b16 %v263
      %v526 = vunpack.c.l.b16 %v264
      %v527 = vunpack.c.l.b16 %v265
      %v528 = vunpack.c.l.b16 %v266
      %v529 = vunpack.c.l.b16 %v267
      %v530 = vunpack.c.l.b16 %v268
      %v531 = vunpack.c.l.b16 %v269
      %v532 = vunpack.c.l.b16 %v270
      %v533 = vunpack.c.l.b16 %v271
      %v534 = vunpack.c.l.b16 %v272
      %v535 = vunpack.c.l.b16 %v273
      %v536 = vunpack.c.l.b16 %v274
      %v537 = vunpack.c.l.b16 %v275
      %v538 = vunpack.c.l.b16 %v276
      %v539 = vunpack.c.l.b16 %v277
      %v540 = vunpack.c.l.b16 %v278
      %v541 = vunpack.c.l.b16 %v279
      %v542 = vunpack.c.l.b16 %v280
      %v543 = vunpack.c.l.b16 %v281
      %v544 = vunpack.c.l.b16 %v282
      %v545 = vunpack.c.l.b16 %v283
      %v546 = vunpack.c.l.b16 %v284
      %v547 = vunpack.c.l.b16 %v285
      %v548 = vunpack.c.l.b16 %v286
      %v549 = vunpack.c.l.b16 %v287
      %v550 = vunpack.c.l.b16 %v288
      %v551 = vunpack.c.l.b16 %v289
      %v552 = vunpack.c.l.b16 %v290
      %v553 = vunpack.c.l.b16 %v291
      %v554 = vunpack.c.l.b16 %v292
      %v555 = vunpack.c.l.b16 %v293
      %v556 = vunpack.c.l.b16 %v294
      %v557 = vunpack.c.l.b16 %v295
      %v558 = vunpack.c.l.b16 %v296
      %v559 = vunpack.c.l.b16 %v297
      %v560 = vunpack.c.l.b16 %v298
      %v561 = vunpack.c.l.b16 %v299
      %v562 = vunpack.c.l.b16 %v300
      %v563 = vunpack.c.l.b16 %v301
      %v564 = vunpack.c.l.b16 %v302
      %v565 = vunpack.c.l.b16 %v303
      %v566 = vunpack.c.l.b16 %v304
      %v567 = vunpack.c.l.b16 %v305
      %v568 = vunpack.c.l.b16 %v306
      %v569 = vunpack.c.l.b16 %v307
      %v570 = vunpack.c.l.b16 %v308
      %v571 = vunpack.c.l.b16 %v309
      %v572 = vunpack.c.l.b16 %v310
      %v573 = vunpack.c.l.b16 %v311
      %v574 = vunpack.c.l.b16 %v312
      %v575 = vpack.c.b16 %v448, %v447
      %v576 = vpack.c.b16 %v450, %v449
      %v577 = vpack.c.b16 %v452, %v451
      %v578 = vpack.c.b16 %v454, %v453
      %v579 = vpack.c.b16 %v456, %v455
      %v580 = vpack.c.b16 %v458, %v457
      %v581 = vpack.c.b16 %v460, %v459
      %v582 = vpack.c.b16 %v462, %v461
      %v583 = vpack.c.b16 %v464, %v463
      %v584 = vpack.c.b16 %v466, %v465
      %v585 = vpack.c.b16 %v468, %v467
      %v586 = vpack.c.b16 %v470, %v469
      %v587 = vpack.c.b16 %v472, %v471
      %v588 = vpack.c.b16 %v474, %v473
      %v589 = vpack.c.b16 %v476, %v475
      %v590 = vpack.c.b16 %v478, %v477
      %v591 = vpack.c.b16 %v480, %v479
      %v592 = vpack.c.b16 %v482, %v481
      %v593 = vpack.c.b16 %v484, %v483
      %v594 = vpack.c.b16 %v486, %v485
      %v595 = vpack.c.b16 %v488, %v487
      %v596 = vpack.c.b16 %v490, %v489
      %v597 = vpack.c.b16 %v492, %v491
      %v598 = vpack.c.b16 %v494, %v493
      %v599 = vpack.c.b16 %v496, %v495
      %v600 = vpack.c.b16 %v498, %v497
      %v601 = vpack.c.b16 %v500, %v499
      %v602 = vpack.c.b16 %v502, %v501
      %v603 = vpack.c.b16 %v504, %v503
      %v604 = vpack.c.b16 %v506, %v505
      %v605 = vpack.c.b16 %v508, %v507
      %v606 = vpack.c.b16 %v510, %v509
      %v607 = vpack.c.b16 %v512, %v511
      %v608 = vpack.c.b16 %v514, %v513
      %v609 = vpack.c.b16 %v516, %v515
      %v610 = vpack.c.b16 %v518, %v517
      %v611 = vpack.c.b16 %v520, %v519
      %v612 = vpack.c.b16 %v522, %v521
      %v613 = vpack.c.b16 %v524, %v523
      %v614 = vpack.c.b16 %v526, %v525
      %v615 = vpack.c.b16 %v528, %v527
      %v616 = vpack.c.b16 %v530, %v529
      %v617 = vpack.c.b16 %v532, %v531
      %v618 = vpack.c.b16 %v534, %v533
      %v619 = vpack.c.b16 %v536, %v535
      %v620 = vpack.c.b16 %v538, %v537
      %v621 = vpack.c.b16 %v540, %v539
      %v622 = vpack.c.b16 %v542, %v541
      %v623 = vpack.c.b16 %v544, %v543
      %v624 = vpack.c.b16 %v546, %v545
      %v625 = vpack.c.b16 %v548, %v547
      %v626 = vpack.c.b16 %v550, %v549
      %v627 = vpack.c.b16 %v552, %v551
      %v628 = vpack.c.b16 %v554, %v553
      %v629 = vpack.c.b16 %v556, %v555
      %v630 = vpack.c.b16 %v558, %v557
      %v631 = vpack.c.b16 %v560, %v559
      %v632 = vpack.c.b16 %v562, %v561
      %v633 = vpack.c.b16 %v564, %v563
      %v634 = vpack.c.b16 %v566, %v565
      %v635 = vpack.c.b16 %v568, %v567
      %v636 = vpack.c.b16 %v570, %v569
      %v637 = vpack.c.b16 %v572, %v571
      %v638 = vpack.c.b16 %v574, %v573
      %v645 = vunpack.c.l.b16 %v313
      %v646 = vunpack.c.l.b16 %v314
      %v647 = vunpack.c.l.b16 %v315
      %v648 = vunpack.c.l.b16 %v316
      %v649 = vunpack.c.l.b16 %v317
      %v650 = vunpack.c.l.b16 %v318
      %v651 = vpack.c.b16 %v646, %v645
      %v652 = vpack.c.b16 %v648, %v647
      %v653 = vpack.c.b16 %v650, %v649
      %vm657 = vcmask 392192
      %v659 = vsel %vm657, %v575, 0
      %v662 = vsel %vm657, %v576, 0
      %v665 = vsel %vm657, %v577, 0
      %v668 = vsel %vm657, %v578, 0
      %v671 = vsel %vm657, %v579, 0
      %v674 = vsel %vm657, %v580, 0
      %v677 = vsel %vm657, %v581, 0
      %v680 = vsel %vm657, %v582, 0
      %v683 = vsel %vm657, %v583, 0
      %v686 = vsel %vm657, %v584, 0
      %v689 = vsel %vm657, %v585, 0
      %v692 = vsel %vm657, %v586, 0
      %v695 = vsel %vm657, %v587, 0
      %v698 = vsel %vm657, %v588, 0
      %v701 = vsel %vm657, %v589, 0
      %v704 = vsel %vm657, %v590, 0
      %v707 = vsel %vm657, %v591, 0
      %v710 = vsel %vm657, %v592, 0
      %v713 = vsel %vm657, %v593, 0
      %v716 = vsel %vm657, %v594, 0
      %v719 = vsel %vm657, %v595, 0
      %v722 = vsel %vm657, %v596, 0
      %v725 = vsel %vm657, %v597, 0
      %v728 = vsel %vm657, %v598, 0
      %v731 = vsel %vm657, %v599, 0
      %v734 = vsel %vm657, %v600, 0
      %v737 = vsel %vm657, %v601, 0
      %v740 = vsel %vm657, %v602, 0
      %v743 = vsel %vm657, %v603, 0
      %v746 = vsel %vm657, %v604, 0
      %v749 = vsel %vm657, %v605, 0
      %v752 = vsel %vm657, %v606, 0
      %v755 = vsel %vm657, %v607, 0
      %v758 = vsel %vm657, %v608, 0
      %v761 = vsel %vm657, %v609, 0
      %v764 = vsel %vm657, %v610, 0
      %v767 = vsel %vm657, %v611, 0
      %v770 = vsel %vm657, %v612, 0
      %v773 = vsel %vm657, %v613, 0
      %v776 = vsel %vm657, %v614, 0
      %v779 = vsel %vm657, %v615, 0
      %v782 = vsel %vm657, %v616, 0
      %v785 = vsel %vm657, %v617, 0
      %v788 = vsel %vm657, %v618, 0
      %v791 = vsel %vm657, %v619, 0
      %v794 = vsel %vm657, %v620, 0
      %v797 = vsel %vm657, %v621, 0
      %v800 = vsel %vm657, %v622, 0
      %v803 = vsel %vm657, %v623, 0
      %v806 = vsel %vm657, %v624, 0
      %v809 = vsel %vm657, %v625, 0
      %v812 = vsel %vm657, %v626, 0
      %v815 = vsel %vm657, %v627, 0
      %v818 = vsel %vm657, %v628, 0
      %v821 = vsel %vm657, %v629, 0
      %v824 = vsel %vm657, %v630, 0
      %v827 = vsel %vm657, %v631, 0
      %v830 = vsel %vm657, %v632, 0
      %v833 = vsel %vm657, %v633, 0
      %v836 = vsel %vm657, %v634, 0
      %v839 = vsel %vm657, %v635, 0
      %v842 = vsel %vm657, %v636, 0
      %v845 = vsel %vm657, %v637, 0
      %v848 = vsel %vm657, %v638, 0
      %850 = vmatprep.subr.bf16.mxu0 0
      %851 = vmatpush1.bf16.msra.mxu0 %v651
      %852 = vmatprep.subr.bf16.mxu0 0
      %853 = vmatpush1.bf16.msra.mxu0 %v652
      %854 = vmatprep.subr.bf16.mxu0 0
      %855 = vmatpush1.bf16.msra.mxu0 %v653
      %856 = vmatprep.subr.bf16.mxu0 0
      %857 = vmatpush1.bf16.msra.mxu0 0
      %858 = vmatprep.subr.bf16.mxu0 0
      %859 = vmatpush1.bf16.msra.mxu0 0
      %860 = vmatprep.subr.bf16.mxu0 0
      %861 = vmatpush1.bf16.msra.mxu0 0
      %862 = vmatprep.subr.bf16.mxu0 0
      %863 = vmatpush1.bf16.msra.mxu0 0
      %864 = vmatprep.subr.bf16.mxu0 0
      %865 = vmatpush1.bf16.msra.mxu0 0
      %866 = vmatprep.subr.bf16.mxu0 0
      %867 = vmatpush1.bf16.msra.mxu0 0
      %868 = vmatprep.subr.bf16.mxu0 0
      %869 = vmatpush1.bf16.msra.mxu0 0
      %870 = vmatprep.subr.bf16.mxu0 0
      %871 = vmatpush1.bf16.msra.mxu0 0
      %872 = vmatprep.subr.bf16.mxu0 0
      %873 = vmatpush1.bf16.msra.mxu0 0
      %874 = vmatprep.subr.bf16.mxu0 0
      %875 = vmatpush1.bf16.msra.mxu0 0
      %876 = vmatprep.subr.bf16.mxu0 0
      %877 = vmatpush1.bf16.msra.mxu0 0
      %878 = vmatprep.subr.bf16.mxu0 0
      %879 = vmatpush1.bf16.msra.mxu0 0
      %880 = vmatprep.subr.bf16.mxu0 0
      %881 = vmatpush1.bf16.msra.mxu0 0
      %882 = vmatprep.mubr.bf16.mxu0 0
      %883 = vmatmul.mubr.bf16.gmra.mrb[0].mxu0 %v659
      %v884 = vpop.f32.mrb[0].mxu0
      %v885 = vadd.f32 0.0, %v884
      %v886 = vpop.f32.mrb[0].mxu0
      %v887 = vpop.f32.mrb[0].mxu0
      %v888 = vadd.f32 0.0, %v887
      %v889 = vpop.f32.mrb[0].mxu0
      %890 = vmatprep.mubr.bf16.mxu0 0
      %891 = vmatmul.mubr.bf16.gmra.mrb[0].mxu0 %v662
      %v892 = vpop.f32.mrb[0].mxu0
      %v893 = vadd.f32 0.0, %v892
      %v894 = vpop.f32.mrb[0].mxu0
      %v895 = vpop.f32.mrb[0].mxu0
      %v896 = vadd.f32 0.0, %v895
      %v897 = vpop.f32.mrb[0].mxu0
      %898 = vmatprep.mubr.bf16.mxu0 0
      %899 = vmatmul.mubr.bf16.gmra.mrb[0].mxu0 %v665
      %v900 = vpop.f32.mrb[0].mxu0
      %v901 = vadd.f32 0.0, %v900
      %v902 = vpop.f32.mrb[0].mxu0
      %v903 = vpop.f32.mrb[0].mxu0
      %v904 = vadd.f32 0.0, %v903
      %v905 = vpop.f32.mrb[0].mxu0
      %906 = vmatprep.mubr.bf16.mxu0 0
      %907 = vmatmul.mubr.bf16.gmra.mrb[0].mxu0 %v668
      %v908 = vpop.f32.mrb[0].mxu0
      %v909 = vadd.f32 0.0, %v908
      %v910 = vpop.f32.mrb[0].mxu0
      %v911 = vpop.f32.mrb[0].mxu0
      %v912 = vadd.f32 0.0, %v911
      %v913 = vpop.f32.mrb[0].mxu0
      %914 = vmatprep.mubr.bf16.mxu0 0
      %915 = vmatmul.mubr.bf16.gmra.mrb[0].mxu0 %v671
      %v916 = vpop.f32.mrb[0].mxu0
      %v917 = vadd.f32 0.0, %v916
      %v918 = vpop.f32.mrb[0].mxu0
      %v919 = vpop.f32.mrb[0].mxu0
      %v920 = vadd.f32 0.0, %v919
      %v921 = vpop.f32.mrb[0].mxu0
      %922 = vmatprep.mubr.bf16.mxu0 0
      %923 = vmatmul.mubr.bf16.gmra.mrb[0].mxu0 %v674
      %v924 = vpop.f32.mrb[0].mxu0
      %v925 = vadd.f32 0.0, %v924
      %v926 = vpop.f32.mrb[0].mxu0
      %v927 = vpop.f32.mrb[0].mxu0
      %v928 = vadd.f32 0.0, %v927
      %v929 = vpop.f32.mrb[0].mxu0
      %930 = vmatprep.mubr.bf16.mxu0 0
      %931 = vmatmul.mubr.bf16.gmra.mrb[0].mxu0 %v677
      %v932 = vpop.f32.mrb[0].mxu0
      %v933 = vadd.f32 0.0, %v932
      %v934 = vpop.f32.mrb[0].mxu0
      %v935 = vpop.f32.mrb[0].mxu0
      %v936 = vadd.f32 0.0, %v935
      %v937 = vpop.f32.mrb[0].mxu0
      %938 = vmatprep.mubr.bf16.mxu0 0
      %939 = vmatmul.mubr.bf16.gmra.mrb[0].mxu0 %v680
      %v940 = vpop.f32.mrb[0].mxu0
      %v941 = vadd.f32 0.0, %v940
      %v942 = vpop.f32.mrb[0].mxu0
      %v943 = vpop.f32.mrb[0].mxu0
      %v944 = vadd.f32 0.0, %v943
      %v945 = vpop.f32.mrb[0].mxu0
      %946 = vmatprep.mubr.bf16.mxu0 0
      %947 = vmatmul.mubr.bf16.gmra.mrb[0].mxu0 %v683
      %v948 = vpop.f32.mrb[0].mxu0
      %v949 = vadd.f32 0.0, %v948
      %v950 = vpop.f32.mrb[0].mxu0
      %v951 = vpop.f32.mrb[0].mxu0
      %v952 = vadd.f32 0.0, %v951
      %v953 = vpop.f32.mrb[0].mxu0
      %954 = vmatprep.mubr.bf16.mxu0 0
      %955 = vmatmul.mubr.bf16.gmra.mrb[0].mxu0 %v686
      %v956 = vpop.f32.mrb[0].mxu0
      %v957 = vadd.f32 0.0, %v956
      %v958 = vpop.f32.mrb[0].mxu0
      %v959 = vpop.f32.mrb[0].mxu0
      %v960 = vadd.f32 0.0, %v959
      %v961 = vpop.f32.mrb[0].mxu0
      %962 = vmatprep.mubr.bf16.mxu0 0
      %963 = vmatmul.mubr.bf16.gmra.mrb[0].mxu0 %v689
      %v964 = vpop.f32.mrb[0].mxu0
      %v965 = vadd.f32 0.0, %v964
      %v966 = vpop.f32.mrb[0].mxu0
      %v967 = vpop.f32.mrb[0].mxu0
      %v968 = vadd.f32 0.0, %v967
      %v969 = vpop.f32.mrb[0].mxu0
      %970 = vmatprep.mubr.bf16.mxu0 0
      %971 = vmatmul.mubr.bf16.gmra.mrb[0].mxu0 %v692
      %v972 = vpop.f32.mrb[0].mxu0
      %v973 = vadd.f32 0.0, %v972
      %v974 = vpop.f32.mrb[0].mxu0
      %v975 = vpop.f32.mrb[0].mxu0
      %v976 = vadd.f32 0.0, %v975
      %v977 = vpop.f32.mrb[0].mxu0
      %978 = vmatprep.mubr.bf16.mxu0 0
      %979 = vmatmul.mubr.bf16.gmra.mrb[0].mxu0 %v695
      %v980 = vpop.f32.mrb[0].mxu0
      %v981 = vadd.f32 0.0, %v980
      %v982 = vpop.f32.mrb[0].mxu0
      %v983 = vpop.f32.mrb[0].mxu0
      %v984 = vadd.f32 0.0, %v983
      %v985 = vpop.f32.mrb[0].mxu0
      %986 = vmatprep.mubr.bf16.mxu0 0
      %987 = vmatmul.mubr.bf16.gmra.mrb[0].mxu0 %v698
      %v988 = vpop.f32.mrb[0].mxu0
      %v989 = vadd.f32 0.0, %v988
      %v990 = vpop.f32.mrb[0].mxu0
      %v991 = vpop.f32.mrb[0].mxu0
      %v992 = vadd.f32 0.0, %v991
      %v993 = vpop.f32.mrb[0].mxu0
      %994 = vmatprep.mubr.bf16.mxu0 0
      %995 = vmatmul.mubr.bf16.gmra.mrb[0].mxu0 %v701
      %v996 = vpop.f32.mrb[0].mxu0
      %v997 = vadd.f32 0.0, %v996
      %v998 = vpop.f32.mrb[0].mxu0
      %v999 = vpop.f32.mrb[0].mxu0
      %v1000 = vadd.f32 0.0, %v999
      %v1001 = vpop.f32.mrb[0].mxu0
      %1002 = vmatprep.mubr.bf16.mxu0 0
      %1003 = vmatmul.mubr.bf16.gmra.mrb[0].mxu0 %v704
      %v1004 = vpop.f32.mrb[0].mxu0
      %v1005 = vadd.f32 0.0, %v1004
      %v1006 = vpop.f32.mrb[0].mxu0
      %v1007 = vpop.f32.mrb[0].mxu0
      %v1008 = vadd.f32 0.0, %v1007
      %v1009 = vpop.f32.mrb[0].mxu0
      %1010 = vmatprep.mubr.bf16.mxu0 0
      %1011 = vmatmul.mubr.bf16.gmra.mrb[0].mxu0 %v707
      %v1012 = vpop.f32.mrb[0].mxu0
      %v1013 = vadd.f32 0.0, %v1012
      %v1014 = vpop.f32.mrb[0].mxu0
      %v1015 = vpop.f32.mrb[0].mxu0
      %v1016 = vadd.f32 0.0, %v1015
      %v1017 = vpop.f32.mrb[0].mxu0
      %1018 = vmatprep.mubr.bf16.mxu0 0
      %1019 = vmatmul.mubr.bf16.gmra.mrb[0].mxu0 %v710
      %v1020 = vpop.f32.mrb[0].mxu0
      %v1021 = vadd.f32 0.0, %v1020
      %v1022 = vpop.f32.mrb[0].mxu0
      %v1023 = vpop.f32.mrb[0].mxu0
      %v1024 = vadd.f32 0.0, %v1023
      %v1025 = vpop.f32.mrb[0].mxu0
      %1026 = vmatprep.mubr.bf16.mxu0 0
      %1027 = vmatmul.mubr.bf16.gmra.mrb[0].mxu0 %v713
      %v1028 = vpop.f32.mrb[0].mxu0
      %v1029 = vadd.f32 0.0, %v1028
      %v1030 = vpop.f32.mrb[0].mxu0
      %v1031 = vpop.f32.mrb[0].mxu0
      %v1032 = vadd.f32 0.0, %v1031
      %v1033 = vpop.f32.mrb[0].mxu0
      %1034 = vmatprep.mubr.bf16.mxu0 0
      %1035 = vmatmul.mubr.bf16.gmra.mrb[0].mxu0 %v716
      %v1036 = vpop.f32.mrb[0].mxu0
      %v1037 = vadd.f32 0.0, %v1036
      %v1038 = vpop.f32.mrb[0].mxu0
      %v1039 = vpop.f32.mrb[0].mxu0
      %v1040 = vadd.f32 0.0, %v1039
      %v1041 = vpop.f32.mrb[0].mxu0
      %1042 = vmatprep.mubr.bf16.mxu0 0
      %1043 = vmatmul.mubr.bf16.gmra.mrb[0].mxu0 %v719
      %v1044 = vpop.f32.mrb[0].mxu0
      %v1045 = vadd.f32 0.0, %v1044
      %v1046 = vpop.f32.mrb[0].mxu0
      %v1047 = vpop.f32.mrb[0].mxu0
      %v1048 = vadd.f32 0.0, %v1047
      %v1049 = vpop.f32.mrb[0].mxu0
      %1050 = vmatprep.mubr.bf16.mxu0 0
      %1051 = vmatmul.mubr.bf16.gmra.mrb[0].mxu0 %v722
      %v1052 = vpop.f32.mrb[0].mxu0
      %v1053 = vadd.f32 0.0, %v1052
      %v1054 = vpop.f32.mrb[0].mxu0
      %v1055 = vpop.f32.mrb[0].mxu0
      %v1056 = vadd.f32 0.0, %v1055
      %v1057 = vpop.f32.mrb[0].mxu0
      %1058 = vmatprep.mubr.bf16.mxu0 0
      %1059 = vmatmul.mubr.bf16.gmra.mrb[0].mxu0 %v725
      %v1060 = vpop.f32.mrb[0].mxu0
      %v1061 = vadd.f32 0.0, %v1060
      %v1062 = vpop.f32.mrb[0].mxu0
      %v1063 = vpop.f32.mrb[0].mxu0
      %v1064 = vadd.f32 0.0, %v1063
      %v1065 = vpop.f32.mrb[0].mxu0
      %1066 = vmatprep.mubr.bf16.mxu0 0
      %1067 = vmatmul.mubr.bf16.gmra.mrb[0].mxu0 %v728
      %v1068 = vpop.f32.mrb[0].mxu0
      %v1069 = vadd.f32 0.0, %v1068
      %v1070 = vpop.f32.mrb[0].mxu0
      %v1071 = vpop.f32.mrb[0].mxu0
      %v1072 = vadd.f32 0.0, %v1071
      %v1073 = vpop.f32.mrb[0].mxu0
      %1074 = vmatprep.mubr.bf16.mxu0 0
      %1075 = vmatmul.mubr.bf16.gmra.mrb[0].mxu0 %v731
      %v1076 = vpop.f32.mrb[0].mxu0
      %v1077 = vadd.f32 0.0, %v1076
      %v1078 = vpop.f32.mrb[0].mxu0
      %v1079 = vpop.f32.mrb[0].mxu0
      %v1080 = vadd.f32 0.0, %v1079
      %v1081 = vpop.f32.mrb[0].mxu0
      %1082 = vmatprep.mubr.bf16.mxu0 0
      %1083 = vmatmul.mubr.bf16.gmra.mrb[0].mxu0 %v734
      %v1084 = vpop.f32.mrb[0].mxu0
      %v1085 = vadd.f32 0.0, %v1084
      %v1086 = vpop.f32.mrb[0].mxu0
      %v1087 = vpop.f32.mrb[0].mxu0
      %v1088 = vadd.f32 0.0, %v1087
      %v1089 = vpop.f32.mrb[0].mxu0
      %1090 = vmatprep.mubr.bf16.mxu0 0
      %1091 = vmatmul.mubr.bf16.gmra.mrb[0].mxu0 %v737
      %v1092 = vpop.f32.mrb[0].mxu0
      %v1093 = vadd.f32 0.0, %v1092
      %v1094 = vpop.f32.mrb[0].mxu0
      %v1095 = vpop.f32.mrb[0].mxu0
      %v1096 = vadd.f32 0.0, %v1095
      %v1097 = vpop.f32.mrb[0].mxu0
      %1098 = vmatprep.mubr.bf16.mxu0 0
      %1099 = vmatmul.mubr.bf16.gmra.mrb[0].mxu0 %v740
      %v1100 = vpop.f32.mrb[0].mxu0
      %v1101 = vadd.f32 0.0, %v1100
      %v1102 = vpop.f32.mrb[0].mxu0
      %v1103 = vpop.f32.mrb[0].mxu0
      %v1104 = vadd.f32 0.0, %v1103
      %v1105 = vpop.f32.mrb[0].mxu0
      %1106 = vmatprep.mubr.bf16.mxu0 0
      %1107 = vmatmul.mubr.bf16.gmra.mrb[0].mxu0 %v743
      %v1108 = vpop.f32.mrb[0].mxu0
      %v1109 = vadd.f32 0.0, %v1108
      %v1110 = vpop.f32.mrb[0].mxu0
      %v1111 = vpop.f32.mrb[0].mxu0
      %v1112 = vadd.f32 0.0, %v1111
      %v1113 = vpop.f32.mrb[0].mxu0
      %1114 = vmatprep.mubr.bf16.mxu0 0
      %1115 = vmatmul.mubr.bf16.gmra.mrb[0].mxu0 %v746
      %v1116 = vpop.f32.mrb[0].mxu0
      %v1117 = vadd.f32 0.0, %v1116
      %v1118 = vpop.f32.mrb[0].mxu0
      %v1119 = vpop.f32.mrb[0].mxu0
      %v1120 = vadd.f32 0.0, %v1119
      %v1121 = vpop.f32.mrb[0].mxu0
      %1122 = vmatprep.mubr.bf16.mxu0 0
      %1123 = vmatmul.mubr.bf16.gmra.mrb[0].mxu0 %v749
      %v1124 = vpop.f32.mrb[0].mxu0
      %v1125 = vadd.f32 0.0, %v1124
      %v1126 = vpop.f32.mrb[0].mxu0
      %v1127 = vpop.f32.mrb[0].mxu0
      %v1128 = vadd.f32 0.0, %v1127
      %v1129 = vpop.f32.mrb[0].mxu0
      %1130 = vmatprep.mubr.bf16.mxu0 0
      %1131 = vmatmul.mubr.bf16.gmra.mrb[0].mxu0 %v752
      %v1132 = vpop.f32.mrb[0].mxu0
      %v1133 = vadd.f32 0.0, %v1132
      %v1134 = vpop.f32.mrb[0].mxu0
      %v1135 = vpop.f32.mrb[0].mxu0
      %v1136 = vadd.f32 0.0, %v1135
      %v1137 = vpop.f32.mrb[0].mxu0
      %1138 = vmatprep.mubr.bf16.mxu0 0
      %1139 = vmatmul.mubr.bf16.gmra.mrb[0].mxu0 %v755
      %v1140 = vpop.f32.mrb[0].mxu0
      %v1141 = vadd.f32 0.0, %v1140
      %v1142 = vpop.f32.mrb[0].mxu0
      %v1143 = vpop.f32.mrb[0].mxu0
      %v1144 = vadd.f32 0.0, %v1143
      %v1145 = vpop.f32.mrb[0].mxu0
      %1146 = vmatprep.mubr.bf16.mxu0 0
      %1147 = vmatmul.mubr.bf16.gmra.mrb[0].mxu0 %v758
      %v1148 = vpop.f32.mrb[0].mxu0
      %v1149 = vadd.f32 0.0, %v1148
      %v1150 = vpop.f32.mrb[0].mxu0
      %v1151 = vpop.f32.mrb[0].mxu0
      %v1152 = vadd.f32 0.0, %v1151
      %v1153 = vpop.f32.mrb[0].mxu0
      %1154 = vmatprep.mubr.bf16.mxu0 0
      %1155 = vmatmul.mubr.bf16.gmra.mrb[0].mxu0 %v761
      %v1156 = vpop.f32.mrb[0].mxu0
      %v1157 = vadd.f32 0.0, %v1156
      %v1158 = vpop.f32.mrb[0].mxu0
      %v1159 = vpop.f32.mrb[0].mxu0
      %v1160 = vadd.f32 0.0, %v1159
      %v1161 = vpop.f32.mrb[0].mxu0
      %1162 = vmatprep.mubr.bf16.mxu0 0
      %1163 = vmatmul.mubr.bf16.gmra.mrb[0].mxu0 %v764
      %v1164 = vpop.f32.mrb[0].mxu0
      %v1165 = vadd.f32 0.0, %v1164
      %v1166 = vpop.f32.mrb[0].mxu0
      %v1167 = vpop.f32.mrb[0].mxu0
      %v1168 = vadd.f32 0.0, %v1167
      %v1169 = vpop.f32.mrb[0].mxu0
      %1170 = vmatprep.mubr.bf16.mxu0 0
      %1171 = vmatmul.mubr.bf16.gmra.mrb[0].mxu0 %v767
      %v1172 = vpop.f32.mrb[0].mxu0
      %v1173 = vadd.f32 0.0, %v1172
      %v1174 = vpop.f32.mrb[0].mxu0
      %v1175 = vpop.f32.mrb[0].mxu0
      %v1176 = vadd.f32 0.0, %v1175
      %v1177 = vpop.f32.mrb[0].mxu0
      %1178 = vmatprep.mubr.bf16.mxu0 0
      %1179 = vmatmul.mubr.bf16.gmra.mrb[0].mxu0 %v770
      %v1180 = vpop.f32.mrb[0].mxu0
      %v1181 = vadd.f32 0.0, %v1180
      %v1182 = vpop.f32.mrb[0].mxu0
      %v1183 = vpop.f32.mrb[0].mxu0
      %v1184 = vadd.f32 0.0, %v1183
      %v1185 = vpop.f32.mrb[0].mxu0
      %1186 = vmatprep.mubr.bf16.mxu0 0
      %1187 = vmatmul.mubr.bf16.gmra.mrb[0].mxu0 %v773
      %v1188 = vpop.f32.mrb[0].mxu0
      %v1189 = vadd.f32 0.0, %v1188
      %v1190 = vpop.f32.mrb[0].mxu0
      %v1191 = vpop.f32.mrb[0].mxu0
      %v1192 = vadd.f32 0.0, %v1191
      %v1193 = vpop.f32.mrb[0].mxu0
      %1194 = vmatprep.mubr.bf16.mxu0 0
      %1195 = vmatmul.mubr.bf16.gmra.mrb[0].mxu0 %v776
      %v1196 = vpop.f32.mrb[0].mxu0
      %v1197 = vadd.f32 0.0, %v1196
      %v1198 = vpop.f32.mrb[0].mxu0
      %v1199 = vpop.f32.mrb[0].mxu0
      %v1200 = vadd.f32 0.0, %v1199
      %v1201 = vpop.f32.mrb[0].mxu0
      %1202 = vmatprep.mubr.bf16.mxu0 0
      %1203 = vmatmul.mubr.bf16.gmra.mrb[0].mxu0 %v779
      %v1204 = vpop.f32.mrb[0].mxu0
      %v1205 = vadd.f32 0.0, %v1204
      %v1206 = vpop.f32.mrb[0].mxu0
      %v1207 = vpop.f32.mrb[0].mxu0
      %v1208 = vadd.f32 0.0, %v1207
      %v1209 = vpop.f32.mrb[0].mxu0
      %1210 = vmatprep.mubr.bf16.mxu0 0
      %1211 = vmatmul.mubr.bf16.gmra.mrb[0].mxu0 %v782
      %v1212 = vpop.f32.mrb[0].mxu0
      %v1213 = vadd.f32 0.0, %v1212
      %v1214 = vpop.f32.mrb[0].mxu0
      %v1215 = vpop.f32.mrb[0].mxu0
      %v1216 = vadd.f32 0.0, %v1215
      %v1217 = vpop.f32.mrb[0].mxu0
      %1218 = vmatprep.mubr.bf16.mxu0 0
      %1219 = vmatmul.mubr.bf16.gmra.mrb[0].mxu0 %v785
      %v1220 = vpop.f32.mrb[0].mxu0
      %v1221 = vadd.f32 0.0, %v1220
      %v1222 = vpop.f32.mrb[0].mxu0
      %v1223 = vpop.f32.mrb[0].mxu0
      %v1224 = vadd.f32 0.0, %v1223
      %v1225 = vpop.f32.mrb[0].mxu0
      %1226 = vmatprep.mubr.bf16.mxu0 0
      %1227 = vmatmul.mubr.bf16.gmra.mrb[0].mxu0 %v788
      %v1228 = vpop.f32.mrb[0].mxu0
      %v1229 = vadd.f32 0.0, %v1228
      %v1230 = vpop.f32.mrb[0].mxu0
      %v1231 = vpop.f32.mrb[0].mxu0
      %v1232 = vadd.f32 0.0, %v1231
      %v1233 = vpop.f32.mrb[0].mxu0
      %1234 = vmatprep.mubr.bf16.mxu0 0
      %1235 = vmatmul.mubr.bf16.gmra.mrb[0].mxu0 %v791
      %v1236 = vpop.f32.mrb[0].mxu0
      %v1237 = vadd.f32 0.0, %v1236
      %v1238 = vpop.f32.mrb[0].mxu0
      %v1239 = vpop.f32.mrb[0].mxu0
      %v1240 = vadd.f32 0.0, %v1239
      %v1241 = vpop.f32.mrb[0].mxu0
      %1242 = vmatprep.mubr.bf16.mxu0 0
      %1243 = vmatmul.mubr.bf16.gmra.mrb[0].mxu0 %v794
      %v1244 = vpop.f32.mrb[0].mxu0
      %v1245 = vadd.f32 0.0, %v1244
      %v1246 = vpop.f32.mrb[0].mxu0
      %v1247 = vpop.f32.mrb[0].mxu0
      %v1248 = vadd.f32 0.0, %v1247
      %v1249 = vpop.f32.mrb[0].mxu0
      %1250 = vmatprep.mubr.bf16.mxu0 0
      %1251 = vmatmul.mubr.bf16.gmra.mrb[0].mxu0 %v797
      %v1252 = vpop.f32.mrb[0].mxu0
      %v1253 = vadd.f32 0.0, %v1252
      %v1254 = vpop.f32.mrb[0].mxu0
      %v1255 = vpop.f32.mrb[0].mxu0
      %v1256 = vadd.f32 0.0, %v1255
      %v1257 = vpop.f32.mrb[0].mxu0
      %1258 = vmatprep.mubr.bf16.mxu0 0
      %1259 = vmatmul.mubr.bf16.gmra.mrb[0].mxu0 %v800
      %v1260 = vpop.f32.mrb[0].mxu0
      %v1261 = vadd.f32 0.0, %v1260
      %v1262 = vpop.f32.mrb[0].mxu0
      %v1263 = vpop.f32.mrb[0].mxu0
      %v1264 = vadd.f32 0.0, %v1263
      %v1265 = vpop.f32.mrb[0].mxu0
      %1266 = vmatprep.mubr.bf16.mxu0 0
      %1267 = vmatmul.mubr.bf16.gmra.mrb[0].mxu0 %v803
      %v1268 = vpop.f32.mrb[0].mxu0
      %v1269 = vadd.f32 0.0, %v1268
      %v1270 = vpop.f32.mrb[0].mxu0
      %v1271 = vpop.f32.mrb[0].mxu0
      %v1272 = vadd.f32 0.0, %v1271
      %v1273 = vpop.f32.mrb[0].mxu0
      %1274 = vmatprep.mubr.bf16.mxu0 0
      %1275 = vmatmul.mubr.bf16.gmra.mrb[0].mxu0 %v806
      %v1276 = vpop.f32.mrb[0].mxu0
      %v1277 = vadd.f32 0.0, %v1276
      %v1278 = vpop.f32.mrb[0].mxu0
      %v1279 = vpop.f32.mrb[0].mxu0
      %v1280 = vadd.f32 0.0, %v1279
      %v1281 = vpop.f32.mrb[0].mxu0
      %1282 = vmatprep.mubr.bf16.mxu0 0
      %1283 = vmatmul.mubr.bf16.gmra.mrb[0].mxu0 %v809
      %v1284 = vpop.f32.mrb[0].mxu0
      %v1285 = vadd.f32 0.0, %v1284
      %v1286 = vpop.f32.mrb[0].mxu0
      %v1287 = vpop.f32.mrb[0].mxu0
      %v1288 = vadd.f32 0.0, %v1287
      %v1289 = vpop.f32.mrb[0].mxu0
      %1290 = vmatprep.mubr.bf16.mxu0 0
      %1291 = vmatmul.mubr.bf16.gmra.mrb[0].mxu0 %v812
      %v1292 = vpop.f32.mrb[0].mxu0
      %v1293 = vadd.f32 0.0, %v1292
      %v1294 = vpop.f32.mrb[0].mxu0
      %v1295 = vpop.f32.mrb[0].mxu0
      %v1296 = vadd.f32 0.0, %v1295
      %v1297 = vpop.f32.mrb[0].mxu0
      %1298 = vmatprep.mubr.bf16.mxu0 0
      %1299 = vmatmul.mubr.bf16.gmra.mrb[0].mxu0 %v815
      %v1300 = vpop.f32.mrb[0].mxu0
      %v1301 = vadd.f32 0.0, %v1300
      %v1302 = vpop.f32.mrb[0].mxu0
      %v1303 = vpop.f32.mrb[0].mxu0
      %v1304 = vadd.f32 0.0, %v1303
      %v1305 = vpop.f32.mrb[0].mxu0
      %1306 = vmatprep.mubr.bf16.mxu0 0
      %1307 = vmatmul.mubr.bf16.gmra.mrb[0].mxu0 %v818
      %v1308 = vpop.f32.mrb[0].mxu0
      %v1309 = vadd.f32 0.0, %v1308
      %v1310 = vpop.f32.mrb[0].mxu0
      %v1311 = vpop.f32.mrb[0].mxu0
      %v1312 = vadd.f32 0.0, %v1311
      %v1313 = vpop.f32.mrb[0].mxu0
      %1314 = vmatprep.mubr.bf16.mxu0 0
      %1315 = vmatmul.mubr.bf16.gmra.mrb[0].mxu0 %v821
      %v1316 = vpop.f32.mrb[0].mxu0
      %v1317 = vadd.f32 0.0, %v1316
      %v1318 = vpop.f32.mrb[0].mxu0
      %v1319 = vpop.f32.mrb[0].mxu0
      %v1320 = vadd.f32 0.0, %v1319
      %v1321 = vpop.f32.mrb[0].mxu0
      %1322 = vmatprep.mubr.bf16.mxu0 0
      %1323 = vmatmul.mubr.bf16.gmra.mrb[0].mxu0 %v824
      %v1324 = vpop.f32.mrb[0].mxu0
      %v1325 = vadd.f32 0.0, %v1324
      %v1326 = vpop.f32.mrb[0].mxu0
      %v1327 = vpop.f32.mrb[0].mxu0
      %v1328 = vadd.f32 0.0, %v1327
      %v1329 = vpop.f32.mrb[0].mxu0
      %1330 = vmatprep.mubr.bf16.mxu0 0
      %1331 = vmatmul.mubr.bf16.gmra.mrb[0].mxu0 %v827
      %v1332 = vpop.f32.mrb[0].mxu0
      %v1333 = vadd.f32 0.0, %v1332
      %v1334 = vpop.f32.mrb[0].mxu0
      %v1335 = vpop.f32.mrb[0].mxu0
      %v1336 = vadd.f32 0.0, %v1335
      %v1337 = vpop.f32.mrb[0].mxu0
      %1338 = vmatprep.mubr.bf16.mxu0 0
      %1339 = vmatmul.mubr.bf16.gmra.mrb[0].mxu0 %v830
      %v1340 = vpop.f32.mrb[0].mxu0
      %v1341 = vadd.f32 0.0, %v1340
      %v1342 = vpop.f32.mrb[0].mxu0
      %v1343 = vpop.f32.mrb[0].mxu0
      %v1344 = vadd.f32 0.0, %v1343
      %v1345 = vpop.f32.mrb[0].mxu0
      %1346 = vmatprep.mubr.bf16.mxu0 0
      %1347 = vmatmul.mubr.bf16.gmra.mrb[0].mxu0 %v833
      %v1348 = vpop.f32.mrb[0].mxu0
      %v1349 = vadd.f32 0.0, %v1348
      %v1350 = vpop.f32.mrb[0].mxu0
      %v1351 = vpop.f32.mrb[0].mxu0
      %v1352 = vadd.f32 0.0, %v1351
      %v1353 = vpop.f32.mrb[0].mxu0
      %1354 = vmatprep.mubr.bf16.mxu0 0
      %1355 = vmatmul.mubr.bf16.gmra.mrb[0].mxu0 %v836
      %v1356 = vpop.f32.mrb[0].mxu0
      %v1357 = vadd.f32 0.0, %v1356
      %v1358 = vpop.f32.mrb[0].mxu0
      %v1359 = vpop.f32.mrb[0].mxu0
      %v1360 = vadd.f32 0.0, %v1359
      %v1361 = vpop.f32.mrb[0].mxu0
      %1362 = vmatprep.mubr.bf16.mxu0 0
      %1363 = vmatmul.mubr.bf16.gmra.mrb[0].mxu0 %v839
      %v1364 = vpop.f32.mrb[0].mxu0
      %v1365 = vadd.f32 0.0, %v1364
      %v1366 = vpop.f32.mrb[0].mxu0
      %v1367 = vpop.f32.mrb[0].mxu0
      %v1368 = vadd.f32 0.0, %v1367
      %v1369 = vpop.f32.mrb[0].mxu0
      %1370 = vmatprep.mubr.bf16.mxu0 0
      %1371 = vmatmul.mubr.bf16.gmra.mrb[0].mxu0 %v842
      %v1372 = vpop.f32.mrb[0].mxu0
      %v1373 = vadd.f32 0.0, %v1372
      %v1374 = vpop.f32.mrb[0].mxu0
      %v1375 = vpop.f32.mrb[0].mxu0
      %v1376 = vadd.f32 0.0, %v1375
      %v1377 = vpop.f32.mrb[0].mxu0
      %1378 = vmatprep.mubr.bf16.mxu0 0
      %1379 = vmatmul.mubr.bf16.gmra.mrb[0].mxu0 %v845
      %v1380 = vpop.f32.mrb[0].mxu0
      %v1381 = vadd.f32 0.0, %v1380
      %v1382 = vpop.f32.mrb[0].mxu0
      %v1383 = vpop.f32.mrb[0].mxu0
      %v1384 = vadd.f32 0.0, %v1383
      %v1385 = vpop.f32.mrb[0].mxu0
      %1386 = vmatprep.mubr.bf16.mxu0 0
      %1387 = vmatmul.mubr.bf16.gmra.mrb[0].mxu0 %v848
      %v1388 = vpop.f32.mrb[0].mxu0
      %v1389 = vadd.f32 0.0, %v1388
      %v1390 = vpop.f32.mrb[0].mxu0
      %v1391 = vpop.f32.mrb[0].mxu0
      %v1392 = vadd.f32 0.0, %v1391
      %v1393 = vpop.f32.mrb[0].mxu0
      %1394 = vdwg.mxu0
      %v1395 = vmul.f32 %v885, 0.2
      %v1396 = vmul.f32 %v888, 0.2
      %v1397 = vmul.f32 %v893, 0.2
      %v1398 = vmul.f32 %v896, 0.2
      %v1399 = vmul.f32 %v901, 0.2
      %v1400 = vmul.f32 %v904, 0.2
      %v1401 = vmul.f32 %v909, 0.2
      %v1402 = vmul.f32 %v912, 0.2
      %v1403 = vmul.f32 %v917, 0.2
      %v1404 = vmul.f32 %v920, 0.2
      %v1405 = vmul.f32 %v925, 0.2
      %v1406 = vmul.f32 %v928, 0.2
      %v1407 = vmul.f32 %v933, 0.2
      %v1408 = vmul.f32 %v936, 0.2
      %v1409 = vmul.f32 %v941, 0.2
      %v1410 = vmul.f32 %v944, 0.2
      %v1411 = vmul.f32 %v949, 0.2
      %v1412 = vmul.f32 %v952, 0.2
      %v1413 = vmul.f32 %v957, 0.2
      %v1414 = vmul.f32 %v960, 0.2
      %v1415 = vmul.f32 %v965, 0.2
      %v1416 = vmul.f32 %v968, 0.2
      %v1417 = vmul.f32 %v973, 0.2
      %v1418 = vmul.f32 %v976, 0.2
      %v1419 = vmul.f32 %v981, 0.2
      %v1420 = vmul.f32 %v984, 0.2
      %v1421 = vmul.f32 %v989, 0.2
      %v1422 = vmul.f32 %v992, 0.2
      %v1423 = vmul.f32 %v997, 0.2
      %v1424 = vmul.f32 %v1000, 0.2
      %v1425 = vmul.f32 %v1005, 0.2
      %v1426 = vmul.f32 %v1008, 0.2
      %v1427 = vmul.f32 %v1013, 0.2
      %v1428 = vmul.f32 %v1016, 0.2
      %v1429 = vmul.f32 %v1021, 0.2
      %v1430 = vmul.f32 %v1024, 0.2
      %v1431 = vmul.f32 %v1029, 0.2
      %v1432 = vmul.f32 %v1032, 0.2
      %v1433 = vmul.f32 %v1037, 0.2
      %v1434 = vmul.f32 %v1040, 0.2
      %v1435 = vmul.f32 %v1045, 0.2
      %v1436 = vmul.f32 %v1048, 0.2
      %v1437 = vmul.f32 %v1053, 0.2
      %v1438 = vmul.f32 %v1056, 0.2
      %v1439 = vmul.f32 %v1061, 0.2
      %v1440 = vmul.f32 %v1064, 0.2
      %v1441 = vmul.f32 %v1069, 0.2
      %v1442 = vmul.f32 %v1072, 0.2
      %v1443 = vmul.f32 %v1077, 0.2
      %v1444 = vmul.f32 %v1080, 0.2
      %v1445 = vmul.f32 %v1085, 0.2
      %v1446 = vmul.f32 %v1088, 0.2
      %v1447 = vmul.f32 %v1093, 0.2
      %v1448 = vmul.f32 %v1096, 0.2
      %v1449 = vmul.f32 %v1101, 0.2
      %v1450 = vmul.f32 %v1104, 0.2
      %v1451 = vmul.f32 %v1109, 0.2
      %v1452 = vmul.f32 %v1112, 0.2
      %v1453 = vmul.f32 %v1117, 0.2
      %v1454 = vmul.f32 %v1120, 0.2
      %v1455 = vmul.f32 %v1125, 0.2
      %v1456 = vmul.f32 %v1128, 0.2
      %v1457 = vmul.f32 %v1133, 0.2
      %v1458 = vmul.f32 %v1136, 0.2
      %v1459 = vmul.f32 %v1141, 0.2
      %v1460 = vmul.f32 %v1144, 0.2
      %v1461 = vmul.f32 %v1149, 0.2
      %v1462 = vmul.f32 %v1152, 0.2
      %v1463 = vmul.f32 %v1157, 0.2
      %v1464 = vmul.f32 %v1160, 0.2
      %v1465 = vmul.f32 %v1165, 0.2
      %v1466 = vmul.f32 %v1168, 0.2
      %v1467 = vmul.f32 %v1173, 0.2
      %v1468 = vmul.f32 %v1176, 0.2
      %v1469 = vmul.f32 %v1181, 0.2
      %v1470 = vmul.f32 %v1184, 0.2
      %v1471 = vmul.f32 %v1189, 0.2
      %v1472 = vmul.f32 %v1192, 0.2
      %v1473 = vmul.f32 %v1197, 0.2
      %v1474 = vmul.f32 %v1200, 0.2
      %v1475 = vmul.f32 %v1205, 0.2
      %v1476 = vmul.f32 %v1208, 0.2
      %v1477 = vmul.f32 %v1213, 0.2
      %v1478 = vmul.f32 %v1216, 0.2
      %v1479 = vmul.f32 %v1221, 0.2
      %v1480 = vmul.f32 %v1224, 0.2
      %v1481 = vmul.f32 %v1229, 0.2
      %v1482 = vmul.f32 %v1232, 0.2
      %v1483 = vmul.f32 %v1237, 0.2
      %v1484 = vmul.f32 %v1240, 0.2
      %v1485 = vmul.f32 %v1245, 0.2
      %v1486 = vmul.f32 %v1248, 0.2
      %v1487 = vmul.f32 %v1253, 0.2
      %v1488 = vmul.f32 %v1256, 0.2
      %v1489 = vmul.f32 %v1261, 0.2
      %v1490 = vmul.f32 %v1264, 0.2
      %v1491 = vmul.f32 %v1269, 0.2
      %v1492 = vmul.f32 %v1272, 0.2
      %v1493 = vmul.f32 %v1277, 0.2
      %v1494 = vmul.f32 %v1280, 0.2
      %v1495 = vmul.f32 %v1285, 0.2
      %v1496 = vmul.f32 %v1288, 0.2
      %v1497 = vmul.f32 %v1293, 0.2
      %v1498 = vmul.f32 %v1296, 0.2
      %v1499 = vmul.f32 %v1301, 0.2
      %v1500 = vmul.f32 %v1304, 0.2
      %v1501 = vmul.f32 %v1309, 0.2
      %v1502 = vmul.f32 %v1312, 0.2
      %v1503 = vmul.f32 %v1317, 0.2
      %v1504 = vmul.f32 %v1320, 0.2
      %v1505 = vmul.f32 %v1325, 0.2
      %v1506 = vmul.f32 %v1328, 0.2
      %v1507 = vmul.f32 %v1333, 0.2
      %v1508 = vmul.f32 %v1336, 0.2
      %v1509 = vmul.f32 %v1341, 0.2
      %v1510 = vmul.f32 %v1344, 0.2
      %v1511 = vmul.f32 %v1349, 0.2
      %v1512 = vmul.f32 %v1352, 0.2
      %v1513 = vmul.f32 %v1357, 0.2
      %v1514 = vmul.f32 %v1360, 0.2
      %v1515 = vmul.f32 %v1365, 0.2
      %v1516 = vmul.f32 %v1368, 0.2
      %v1517 = vmul.f32 %v1373, 0.2
      %v1518 = vmul.f32 %v1376, 0.2
      %v1519 = vmul.f32 %v1381, 0.2
      %v1520 = vmul.f32 %v1384, 0.2
      %v1521 = vmul.f32 %v1389, 0.2
      %v1522 = vmul.f32 %v1392, 0.2
      %v1523 = vmax.f32 %v885, %v1395
      %v1524 = vmax.f32 %v888, %v1396
      %v1525 = vmax.f32 %v893, %v1397
      %v1526 = vmax.f32 %v896, %v1398
      %v1527 = vmax.f32 %v901, %v1399
      %v1528 = vmax.f32 %v904, %v1400
      %v1529 = vmax.f32 %v909, %v1401
      %v1530 = vmax.f32 %v912, %v1402
      %v1531 = vmax.f32 %v917, %v1403
      %v1532 = vmax.f32 %v920, %v1404
      %v1533 = vmax.f32 %v925, %v1405
      %v1534 = vmax.f32 %v928, %v1406
      %v1535 = vmax.f32 %v933, %v1407
      %v1536 = vmax.f32 %v936, %v1408
      %v1537 = vmax.f32 %v941, %v1409
      %v1538 = vmax.f32 %v944, %v1410
      %v1539 = vmax.f32 %v949, %v1411
      %v1540 = vmax.f32 %v952, %v1412
      %v1541 = vmax.f32 %v957, %v1413
      %v1542 = vmax.f32 %v960, %v1414
      %v1543 = vmax.f32 %v965, %v1415
      %v1544 = vmax.f32 %v968, %v1416
      %v1545 = vmax.f32 %v973, %v1417
      %v1546 = vmax.f32 %v976, %v1418
      %v1547 = vmax.f32 %v981, %v1419
      %v1548 = vmax.f32 %v984, %v1420
      %v1549 = vmax.f32 %v989, %v1421
      %v1550 = vmax.f32 %v992, %v1422
      %v1551 = vmax.f32 %v997, %v1423
      %v1552 = vmax.f32 %v1000, %v1424
      %v1553 = vmax.f32 %v1005, %v1425
      %v1554 = vmax.f32 %v1008, %v1426
      %v1555 = vmax.f32 %v1013, %v1427
      %v1556 = vmax.f32 %v1016, %v1428
      %v1557 = vmax.f32 %v1021, %v1429
      %v1558 = vmax.f32 %v1024, %v1430
      %v1559 = vmax.f32 %v1029, %v1431
      %v1560 = vmax.f32 %v1032, %v1432
      %v1561 = vmax.f32 %v1037, %v1433
      %v1562 = vmax.f32 %v1040, %v1434
      %v1563 = vmax.f32 %v1045, %v1435
      %v1564 = vmax.f32 %v1048, %v1436
      %v1565 = vmax.f32 %v1053, %v1437
      %v1566 = vmax.f32 %v1056, %v1438
      %v1567 = vmax.f32 %v1061, %v1439
      %v1568 = vmax.f32 %v1064, %v1440
      %v1569 = vmax.f32 %v1069, %v1441
      %v1570 = vmax.f32 %v1072, %v1442
      %v1571 = vmax.f32 %v1077, %v1443
      %v1572 = vmax.f32 %v1080, %v1444
      %v1573 = vmax.f32 %v1085, %v1445
      %v1574 = vmax.f32 %v1088, %v1446
      %v1575 = vmax.f32 %v1093, %v1447
      %v1576 = vmax.f32 %v1096, %v1448
      %v1577 = vmax.f32 %v1101, %v1449
      %v1578 = vmax.f32 %v1104, %v1450
      %v1579 = vmax.f32 %v1109, %v1451
      %v1580 = vmax.f32 %v1112, %v1452
      %v1581 = vmax.f32 %v1117, %v1453
      %v1582 = vmax.f32 %v1120, %v1454
      %v1583 = vmax.f32 %v1125, %v1455
      %v1584 = vmax.f32 %v1128, %v1456
      %v1585 = vmax.f32 %v1133, %v1457
      %v1586 = vmax.f32 %v1136, %v1458
      %v1587 = vmax.f32 %v1141, %v1459
      %v1588 = vmax.f32 %v1144, %v1460
      %v1589 = vmax.f32 %v1149, %v1461
      %v1590 = vmax.f32 %v1152, %v1462
      %v1591 = vmax.f32 %v1157, %v1463
      %v1592 = vmax.f32 %v1160, %v1464
      %v1593 = vmax.f32 %v1165, %v1465
      %v1594 = vmax.f32 %v1168, %v1466
      %v1595 = vmax.f32 %v1173, %v1467
      %v1596 = vmax.f32 %v1176, %v1468
      %v1597 = vmax.f32 %v1181, %v1469
      %v1598 = vmax.f32 %v1184, %v1470
      %v1599 = vmax.f32 %v1189, %v1471
      %v1600 = vmax.f32 %v1192, %v1472
      %v1601 = vmax.f32 %v1197, %v1473
      %v1602 = vmax.f32 %v1200, %v1474
      %v1603 = vmax.f32 %v1205, %v1475
      %v1604 = vmax.f32 %v1208, %v1476
      %v1605 = vmax.f32 %v1213, %v1477
      %v1606 = vmax.f32 %v1216, %v1478
      %v1607 = vmax.f32 %v1221, %v1479
      %v1608 = vmax.f32 %v1224, %v1480
      %v1609 = vmax.f32 %v1229, %v1481
      %v1610 = vmax.f32 %v1232, %v1482
      %v1611 = vmax.f32 %v1237, %v1483
      %v1612 = vmax.f32 %v1240, %v1484
      %v1613 = vmax.f32 %v1245, %v1485
      %v1614 = vmax.f32 %v1248, %v1486
      %v1615 = vmax.f32 %v1253, %v1487
      %v1616 = vmax.f32 %v1256, %v1488
      %v1617 = vmax.f32 %v1261, %v1489
      %v1618 = vmax.f32 %v1264, %v1490
      %v1619 = vmax.f32 %v1269, %v1491
      %v1620 = vmax.f32 %v1272, %v1492
      %v1621 = vmax.f32 %v1277, %v1493
      %v1622 = vmax.f32 %v1280, %v1494
      %v1623 = vmax.f32 %v1285, %v1495
      %v1624 = vmax.f32 %v1288, %v1496
      %v1625 = vmax.f32 %v1293, %v1497
      %v1626 = vmax.f32 %v1296, %v1498
      %v1627 = vmax.f32 %v1301, %v1499
      %v1628 = vmax.f32 %v1304, %v1500
      %v1629 = vmax.f32 %v1309, %v1501
      %v1630 = vmax.f32 %v1312, %v1502
      %v1631 = vmax.f32 %v1317, %v1503
      %v1632 = vmax.f32 %v1320, %v1504
      %v1633 = vmax.f32 %v1325, %v1505
      %v1634 = vmax.f32 %v1328, %v1506
      %v1635 = vmax.f32 %v1333, %v1507
      %v1636 = vmax.f32 %v1336, %v1508
      %v1637 = vmax.f32 %v1341, %v1509
      %v1638 = vmax.f32 %v1344, %v1510
      %v1639 = vmax.f32 %v1349, %v1511
      %v1640 = vmax.f32 %v1352, %v1512
      %v1641 = vmax.f32 %v1357, %v1513
      %v1642 = vmax.f32 %v1360, %v1514
      %v1643 = vmax.f32 %v1365, %v1515
      %v1644 = vmax.f32 %v1368, %v1516
      %v1645 = vmax.f32 %v1373, %v1517
      %v1646 = vmax.f32 %v1376, %v1518
      %v1647 = vmax.f32 %v1381, %v1519
      %v1648 = vmax.f32 %v1384, %v1520
      %v1649 = vmax.f32 %v1389, %v1521
      %v1650 = vmax.f32 %v1392, %v1522
      %v1651 = vpack.c.bf16 %v1524, %v1523
      %v1652 = vpack.c.bf16 %v1526, %v1525
      %v1653 = vpack.c.bf16 %v1528, %v1527
      %v1654 = vpack.c.bf16 %v1530, %v1529
      %v1655 = vpack.c.bf16 %v1532, %v1531
      %v1656 = vpack.c.bf16 %v1534, %v1533
      %v1657 = vpack.c.bf16 %v1536, %v1535
      %v1658 = vpack.c.bf16 %v1538, %v1537
      %v1659 = vpack.c.bf16 %v1540, %v1539
      %v1660 = vpack.c.bf16 %v1542, %v1541
      %v1661 = vpack.c.bf16 %v1544, %v1543
      %v1662 = vpack.c.bf16 %v1546, %v1545
      %v1663 = vpack.c.bf16 %v1548, %v1547
      %v1664 = vpack.c.bf16 %v1550, %v1549
      %v1665 = vpack.c.bf16 %v1552, %v1551
      %v1666 = vpack.c.bf16 %v1554, %v1553
      %v1667 = vpack.c.bf16 %v1556, %v1555
      %v1668 = vpack.c.bf16 %v1558, %v1557
      %v1669 = vpack.c.bf16 %v1560, %v1559
      %v1670 = vpack.c.bf16 %v1562, %v1561
      %v1671 = vpack.c.bf16 %v1564, %v1563
      %v1672 = vpack.c.bf16 %v1566, %v1565
      %v1673 = vpack.c.bf16 %v1568, %v1567
      %v1674 = vpack.c.bf16 %v1570, %v1569
      %v1675 = vpack.c.bf16 %v1572, %v1571
      %v1676 = vpack.c.bf16 %v1574, %v1573
      %v1677 = vpack.c.bf16 %v1576, %v1575
      %v1678 = vpack.c.bf16 %v1578, %v1577
      %v1679 = vpack.c.bf16 %v1580, %v1579
      %v1680 = vpack.c.bf16 %v1582, %v1581
      %v1681 = vpack.c.bf16 %v1584, %v1583
      %v1682 = vpack.c.bf16 %v1586, %v1585
      %v1683 = vpack.c.bf16 %v1588, %v1587
      %v1684 = vpack.c.bf16 %v1590, %v1589
      %v1685 = vpack.c.bf16 %v1592, %v1591
      %v1686 = vpack.c.bf16 %v1594, %v1593
      %v1687 = vpack.c.bf16 %v1596, %v1595
      %v1688 = vpack.c.bf16 %v1598, %v1597
      %v1689 = vpack.c.bf16 %v1600, %v1599
      %v1690 = vpack.c.bf16 %v1602, %v1601
      %v1691 = vpack.c.bf16 %v1604, %v1603
      %v1692 = vpack.c.bf16 %v1606, %v1605
      %v1693 = vpack.c.bf16 %v1608, %v1607
      %v1694 = vpack.c.bf16 %v1610, %v1609
      %v1695 = vpack.c.bf16 %v1612, %v1611
      %v1696 = vpack.c.bf16 %v1614, %v1613
      %v1697 = vpack.c.bf16 %v1616, %v1615
      %v1698 = vpack.c.bf16 %v1618, %v1617
      %v1699 = vpack.c.bf16 %v1620, %v1619
      %v1700 = vpack.c.bf16 %v1622, %v1621
      %v1701 = vpack.c.bf16 %v1624, %v1623
      %v1702 = vpack.c.bf16 %v1626, %v1625
      %v1703 = vpack.c.bf16 %v1628, %v1627
      %v1704 = vpack.c.bf16 %v1630, %v1629
      %v1705 = vpack.c.bf16 %v1632, %v1631
      %v1706 = vpack.c.bf16 %v1634, %v1633
      %v1707 = vpack.c.bf16 %v1636, %v1635
      %v1708 = vpack.c.bf16 %v1638, %v1637
      %v1709 = vpack.c.bf16 %v1640, %v1639
      %v1710 = vpack.c.bf16 %v1642, %v1641
      %v1711 = vpack.c.bf16 %v1644, %v1643
      %v1712 = vpack.c.bf16 %v1646, %v1645
      %v1713 = vpack.c.bf16 %v1648, %v1647
      %v1714 = vpack.c.bf16 %v1650, %v1649
      %v1779 = vunpack.c.l.b16 %v1651
      %v1780 = vunpack.c.h.b16 %v1651
      %v1781 = vunpack.c.l.b16 %v1652
      %v1782 = vunpack.c.h.b16 %v1652
      %v1783 = vunpack.c.l.b16 %v1653
      %v1784 = vunpack.c.h.b16 %v1653
      %v1785 = vunpack.c.l.b16 %v1654
      %v1786 = vunpack.c.h.b16 %v1654
      %v1787 = vunpack.c.l.b16 %v1655
      %v1788 = vunpack.c.h.b16 %v1655
      %v1789 = vunpack.c.l.b16 %v1656
      %v1790 = vunpack.c.h.b16 %v1656
      %v1791 = vunpack.c.l.b16 %v1657
      %v1792 = vunpack.c.h.b16 %v1657
      %v1793 = vunpack.c.l.b16 %v1658
      %v1794 = vunpack.c.h.b16 %v1658
      %v1795 = vunpack.c.l.b16 %v1659
      %v1796 = vunpack.c.h.b16 %v1659
      %v1797 = vunpack.c.l.b16 %v1660
      %v1798 = vunpack.c.h.b16 %v1660
      %v1799 = vunpack.c.l.b16 %v1661
      %v1800 = vunpack.c.h.b16 %v1661
      %v1801 = vunpack.c.l.b16 %v1662
      %v1802 = vunpack.c.h.b16 %v1662
      %v1803 = vunpack.c.l.b16 %v1663
      %v1804 = vunpack.c.h.b16 %v1663
      %v1805 = vunpack.c.l.b16 %v1664
      %v1806 = vunpack.c.h.b16 %v1664
      %v1807 = vunpack.c.l.b16 %v1665
      %v1808 = vunpack.c.h.b16 %v1665
      %v1809 = vunpack.c.l.b16 %v1666
      %v1810 = vunpack.c.h.b16 %v1666
      %v1811 = vunpack.c.l.b16 %v1667
      %v1812 = vunpack.c.h.b16 %v1667
      %v1813 = vunpack.c.l.b16 %v1668
      %v1814 = vunpack.c.h.b16 %v1668
      %v1815 = vunpack.c.l.b16 %v1669
      %v1816 = vunpack.c.h.b16 %v1669
      %v1817 = vunpack.c.l.b16 %v1670
      %v1818 = vunpack.c.h.b16 %v1670
      %v1819 = vunpack.c.l.b16 %v1671
      %v1820 = vunpack.c.h.b16 %v1671
      %v1821 = vunpack.c.l.b16 %v1672
      %v1822 = vunpack.c.h.b16 %v1672
      %v1823 = vunpack.c.l.b16 %v1673
      %v1824 = vunpack.c.h.b16 %v1673
      %v1825 = vunpack.c.l.b16 %v1674
      %v1826 = vunpack.c.h.b16 %v1674
      %v1827 = vunpack.c.l.b16 %v1675
      %v1828 = vunpack.c.h.b16 %v1675
      %v1829 = vunpack.c.l.b16 %v1676
      %v1830 = vunpack.c.h.b16 %v1676
      %v1831 = vunpack.c.l.b16 %v1677
      %v1832 = vunpack.c.h.b16 %v1677
      %v1833 = vunpack.c.l.b16 %v1678
      %v1834 = vunpack.c.h.b16 %v1678
      %v1835 = vunpack.c.l.b16 %v1679
      %v1836 = vunpack.c.h.b16 %v1679
      %v1837 = vunpack.c.l.b16 %v1680
      %v1838 = vunpack.c.h.b16 %v1680
      %v1839 = vunpack.c.l.b16 %v1681
      %v1840 = vunpack.c.h.b16 %v1681
      %v1841 = vunpack.c.l.b16 %v1682
      %v1842 = vunpack.c.h.b16 %v1682
      %v1843 = vunpack.c.l.b16 %v1683
      %v1844 = vunpack.c.h.b16 %v1683
      %v1845 = vunpack.c.l.b16 %v1684
      %v1846 = vunpack.c.h.b16 %v1684
      %v1847 = vunpack.c.l.b16 %v1685
      %v1848 = vunpack.c.h.b16 %v1685
      %v1849 = vunpack.c.l.b16 %v1686
      %v1850 = vunpack.c.h.b16 %v1686
      %v1851 = vunpack.c.l.b16 %v1687
      %v1852 = vunpack.c.h.b16 %v1687
      %v1853 = vunpack.c.l.b16 %v1688
      %v1854 = vunpack.c.h.b16 %v1688
      %v1855 = vunpack.c.l.b16 %v1689
      %v1856 = vunpack.c.h.b16 %v1689
      %v1857 = vunpack.c.l.b16 %v1690
      %v1858 = vunpack.c.h.b16 %v1690
      %v1859 = vunpack.c.l.b16 %v1691
      %v1860 = vunpack.c.h.b16 %v1691
      %v1861 = vunpack.c.l.b16 %v1692
      %v1862 = vunpack.c.h.b16 %v1692
      %v1863 = vunpack.c.l.b16 %v1693
      %v1864 = vunpack.c.h.b16 %v1693
      %v1865 = vunpack.c.l.b16 %v1694
      %v1866 = vunpack.c.h.b16 %v1694
      %v1867 = vunpack.c.l.b16 %v1695
      %v1868 = vunpack.c.h.b16 %v1695
      %v1869 = vunpack.c.l.b16 %v1696
      %v1870 = vunpack.c.h.b16 %v1696
      %v1871 = vunpack.c.l.b16 %v1697
      %v1872 = vunpack.c.h.b16 %v1697
      %v1873 = vunpack.c.l.b16 %v1698
      %v1874 = vunpack.c.h.b16 %v1698
      %v1875 = vunpack.c.l.b16 %v1699
      %v1876 = vunpack.c.h.b16 %v1699
      %v1877 = vunpack.c.l.b16 %v1700
      %v1878 = vunpack.c.h.b16 %v1700
      %v1879 = vunpack.c.l.b16 %v1701
      %v1880 = vunpack.c.h.b16 %v1701
      %v1881 = vunpack.c.l.b16 %v1702
      %v1882 = vunpack.c.h.b16 %v1702
      %v1883 = vunpack.c.l.b16 %v1703
      %v1884 = vunpack.c.h.b16 %v1703
      %v1885 = vunpack.c.l.b16 %v1704
      %v1886 = vunpack.c.h.b16 %v1704
      %v1887 = vunpack.c.l.b16 %v1705
      %v1888 = vunpack.c.h.b16 %v1705
      %v1889 = vunpack.c.l.b16 %v1706
      %v1890 = vunpack.c.h.b16 %v1706
      %v1891 = vunpack.c.l.b16 %v1707
      %v1892 = vunpack.c.h.b16 %v1707
      %v1893 = vunpack.c.l.b16 %v1708
      %v1894 = vunpack.c.h.b16 %v1708
      %v1895 = vunpack.c.l.b16 %v1709
      %v1896 = vunpack.c.h.b16 %v1709
      %v1897 = vunpack.c.l.b16 %v1710
      %v1898 = vunpack.c.h.b16 %v1710
      %v1899 = vunpack.c.l.b16 %v1711
      %v1900 = vunpack.c.h.b16 %v1711
      %v1901 = vunpack.c.l.b16 %v1712
      %v1902 = vunpack.c.h.b16 %v1712
      %v1903 = vunpack.c.l.b16 %v1713
      %v1904 = vunpack.c.h.b16 %v1713
      %v1905 = vunpack.c.l.b16 %v1714
      %v1906 = vunpack.c.h.b16 %v1714
      %v1907 = vpack.c.b16 %v1779, %v1779
      %v1908 = vpack.c.b16 %v1780, %v1780
      %v1909 = vpack.c.b16 %v1781, %v1781
      %v1910 = vpack.c.b16 %v1782, %v1782
      %v1911 = vpack.c.b16 %v1783, %v1783
      %v1912 = vpack.c.b16 %v1784, %v1784
      %v1913 = vpack.c.b16 %v1785, %v1785
      %v1914 = vpack.c.b16 %v1786, %v1786
      %v1915 = vpack.c.b16 %v1787, %v1787
      %v1916 = vpack.c.b16 %v1788, %v1788
      %v1917 = vpack.c.b16 %v1789, %v1789
      %v1918 = vpack.c.b16 %v1790, %v1790
      %v1919 = vpack.c.b16 %v1791, %v1791
      %v1920 = vpack.c.b16 %v1792, %v1792
      %v1921 = vpack.c.b16 %v1793, %v1793
      %v1922 = vpack.c.b16 %v1794, %v1794
      %v1923 = vpack.c.b16 %v1795, %v1795
      %v1924 = vpack.c.b16 %v1796, %v1796
      %v1925 = vpack.c.b16 %v1797, %v1797
      %v1926 = vpack.c.b16 %v1798, %v1798
      %v1927 = vpack.c.b16 %v1799, %v1799
      %v1928 = vpack.c.b16 %v1800, %v1800
      %v1929 = vpack.c.b16 %v1801, %v1801
      %v1930 = vpack.c.b16 %v1802, %v1802
      %v1931 = vpack.c.b16 %v1803, %v1803
      %v1932 = vpack.c.b16 %v1804, %v1804
      %v1933 = vpack.c.b16 %v1805, %v1805
      %v1934 = vpack.c.b16 %v1806, %v1806
      %v1935 = vpack.c.b16 %v1807, %v1807
      %v1936 = vpack.c.b16 %v1808, %v1808
      %v1937 = vpack.c.b16 %v1809, %v1809
      %v1938 = vpack.c.b16 %v1810, %v1810
      %v1939 = vpack.c.b16 %v1811, %v1811
      %v1940 = vpack.c.b16 %v1812, %v1812
      %v1941 = vpack.c.b16 %v1813, %v1813
      %v1942 = vpack.c.b16 %v1814, %v1814
      %v1943 = vpack.c.b16 %v1815, %v1815
      %v1944 = vpack.c.b16 %v1816, %v1816
      %v1945 = vpack.c.b16 %v1817, %v1817
      %v1946 = vpack.c.b16 %v1818, %v1818
      %v1947 = vpack.c.b16 %v1819, %v1819
      %v1948 = vpack.c.b16 %v1820, %v1820
      %v1949 = vpack.c.b16 %v1821, %v1821
      %v1950 = vpack.c.b16 %v1822, %v1822
      %v1951 = vpack.c.b16 %v1823, %v1823
      %v1952 = vpack.c.b16 %v1824, %v1824
      %v1953 = vpack.c.b16 %v1825, %v1825
      %v1954 = vpack.c.b16 %v1826, %v1826
      %v1955 = vpack.c.b16 %v1827, %v1827
      %v1956 = vpack.c.b16 %v1828, %v1828
      %v1957 = vpack.c.b16 %v1829, %v1829
      %v1958 = vpack.c.b16 %v1830, %v1830
      %v1959 = vpack.c.b16 %v1831, %v1831
      %v1960 = vpack.c.b16 %v1832, %v1832
      %v1961 = vpack.c.b16 %v1833, %v1833
      %v1962 = vpack.c.b16 %v1834, %v1834
      %v1963 = vpack.c.b16 %v1835, %v1835
      %v1964 = vpack.c.b16 %v1836, %v1836
      %v1965 = vpack.c.b16 %v1837, %v1837
      %v1966 = vpack.c.b16 %v1838, %v1838
      %v1967 = vpack.c.b16 %v1839, %v1839
      %v1968 = vpack.c.b16 %v1840, %v1840
      %v1969 = vpack.c.b16 %v1841, %v1841
      %v1970 = vpack.c.b16 %v1842, %v1842
      %v1971 = vpack.c.b16 %v1843, %v1843
      %v1972 = vpack.c.b16 %v1844, %v1844
      %v1973 = vpack.c.b16 %v1845, %v1845
      %v1974 = vpack.c.b16 %v1846, %v1846
      %v1975 = vpack.c.b16 %v1847, %v1847
      %v1976 = vpack.c.b16 %v1848, %v1848
      %v1977 = vpack.c.b16 %v1849, %v1849
      %v1978 = vpack.c.b16 %v1850, %v1850
      %v1979 = vpack.c.b16 %v1851, %v1851
      %v1980 = vpack.c.b16 %v1852, %v1852
      %v1981 = vpack.c.b16 %v1853, %v1853
      %v1982 = vpack.c.b16 %v1854, %v1854
      %v1983 = vpack.c.b16 %v1855, %v1855
      %v1984 = vpack.c.b16 %v1856, %v1856
      %v1985 = vpack.c.b16 %v1857, %v1857
      %v1986 = vpack.c.b16 %v1858, %v1858
      %v1987 = vpack.c.b16 %v1859, %v1859
      %v1988 = vpack.c.b16 %v1860, %v1860
      %v1989 = vpack.c.b16 %v1861, %v1861
      %v1990 = vpack.c.b16 %v1862, %v1862
      %v1991 = vpack.c.b16 %v1863, %v1863
      %v1992 = vpack.c.b16 %v1864, %v1864
      %v1993 = vpack.c.b16 %v1865, %v1865
      %v1994 = vpack.c.b16 %v1866, %v1866
      %v1995 = vpack.c.b16 %v1867, %v1867
      %v1996 = vpack.c.b16 %v1868, %v1868
      %v1997 = vpack.c.b16 %v1869, %v1869
      %v1998 = vpack.c.b16 %v1870, %v1870
      %v1999 = vpack.c.b16 %v1871, %v1871
      %v2000 = vpack.c.b16 %v1872, %v1872
      %v2001 = vpack.c.b16 %v1873, %v1873
      %v2002 = vpack.c.b16 %v1874, %v1874
      %v2003 = vpack.c.b16 %v1875, %v1875
      %v2004 = vpack.c.b16 %v1876, %v1876
      %v2005 = vpack.c.b16 %v1877, %v1877
      %v2006 = vpack.c.b16 %v1878, %v1878
      %v2007 = vpack.c.b16 %v1879, %v1879
      %v2008 = vpack.c.b16 %v1880, %v1880
      %v2009 = vpack.c.b16 %v1881, %v1881
      %v2010 = vpack.c.b16 %v1882, %v1882
      %v2011 = vpack.c.b16 %v1883, %v1883
      %v2012 = vpack.c.b16 %v1884, %v1884
      %v2013 = vpack.c.b16 %v1885, %v1885
      %v2014 = vpack.c.b16 %v1886, %v1886
      %v2015 = vpack.c.b16 %v1887, %v1887
      %v2016 = vpack.c.b16 %v1888, %v1888
      %v2017 = vpack.c.b16 %v1889, %v1889
      %v2018 = vpack.c.b16 %v1890, %v1890
      %v2019 = vpack.c.b16 %v1891, %v1891
      %v2020 = vpack.c.b16 %v1892, %v1892
      %v2021 = vpack.c.b16 %v1893, %v1893
      %v2022 = vpack.c.b16 %v1894, %v1894
      %v2023 = vpack.c.b16 %v1895, %v1895
      %v2024 = vpack.c.b16 %v1896, %v1896
      %v2025 = vpack.c.b16 %v1897, %v1897
      %v2026 = vpack.c.b16 %v1898, %v1898
      %v2027 = vpack.c.b16 %v1899, %v1899
      %v2028 = vpack.c.b16 %v1900, %v1900
      %v2029 = vpack.c.b16 %v1901, %v1901
      %v2030 = vpack.c.b16 %v1902, %v1902
      %v2031 = vpack.c.b16 %v1903, %v1903
      %v2032 = vpack.c.b16 %v1904, %v1904
      %v2033 = vpack.c.b16 %v1905, %v1905
      %v2034 = vpack.c.b16 %v1906, %v1906
      %2163 = vst [vmem:[%s182] sm:$0xf] %v1907
      %2164 = vst [vmem:[%s182 + $0x4] sm:$0xf] %v1908
      %2165 = vst [vmem:[%s182 + $0x8] sm:$0xf] %v1909
      %2166 = vst [vmem:[%s182 + $0xc] sm:$0xf] %v1910
      %2167 = vst [vmem:[%s182 + $0x10] sm:$0xf] %v1911
      %2168 = vst [vmem:[%s182 + $0x14] sm:$0xf] %v1912
      %2169 = vst [vmem:[%s182 + $0x18] sm:$0xf] %v1913
      %2170 = vst [vmem:[%s182 + $0x1c] sm:$0xf] %v1914
      %2171 = vst [vmem:[%s182 + $0x20] sm:$0xf] %v1915
      %2172 = vst [vmem:[%s182 + $0x24] sm:$0xf] %v1916
      %2173 = vst [vmem:[%s182 + $0x28] sm:$0xf] %v1917
      %2174 = vst [vmem:[%s182 + $0x2c] sm:$0xf] %v1918
      %2175 = vst [vmem:[%s182 + $0x30] sm:$0xf] %v1919
      %2176 = vst [vmem:[%s182 + $0x34] sm:$0xf] %v1920
      %2177 = vst [vmem:[%s182 + $0x38] sm:$0xf] %v1921
      %2178 = vst [vmem:[%s182 + $0x3c] sm:$0xf] %v1922
      %2179 = vst [vmem:[%s182 + $0x40] sm:$0xf] %v1923
      %2180 = vst [vmem:[%s182 + $0x44] sm:$0xf] %v1924
      %2181 = vst [vmem:[%s182 + $0x48] sm:$0xf] %v1925
      %2182 = vst [vmem:[%s182 + $0x4c] sm:$0xf] %v1926
      %2183 = vst [vmem:[%s182 + $0x50] sm:$0xf] %v1927
      %2184 = vst [vmem:[%s182 + $0x54] sm:$0xf] %v1928
      %2185 = vst [vmem:[%s182 + $0x58] sm:$0xf] %v1929
      %2186 = vst [vmem:[%s182 + $0x5c] sm:$0xf] %v1930
      %2187 = vst [vmem:[%s182 + $0x60] sm:$0xf] %v1931
      %2188 = vst [vmem:[%s182 + $0x64] sm:$0xf] %v1932
      %2189 = vst [vmem:[%s182 + $0x68] sm:$0xf] %v1933
      %2190 = vst [vmem:[%s182 + $0x6c] sm:$0xf] %v1934
      %2191 = vst [vmem:[%s182 + $0x70] sm:$0xf] %v1935
      %2192 = vst [vmem:[%s182 + $0x74] sm:$0xf] %v1936
      %2193 = vst [vmem:[%s182 + $0x78] sm:$0xf] %v1937
      %2194 = vst [vmem:[%s182 + $0x7c] sm:$0xf] %v1938
      %2195 = vst [vmem:[%s182 + $0x80] sm:$0xf] %v1939
      %2196 = vst [vmem:[%s182 + $0x84] sm:$0xf] %v1940
      %2197 = vst [vmem:[%s182 + $0x88] sm:$0xf] %v1941
      %2198 = vst [vmem:[%s182 + $0x8c] sm:$0xf] %v1942
      %2199 = vst [vmem:[%s182 + $0x90] sm:$0xf] %v1943
      %2200 = vst [vmem:[%s182 + $0x94] sm:$0xf] %v1944
      %2201 = vst [vmem:[%s182 + $0x98] sm:$0xf] %v1945
      %2202 = vst [vmem:[%s182 + $0x9c] sm:$0xf] %v1946
      %2203 = vst [vmem:[%s182 + $0xa0] sm:$0xf] %v1947
      %2204 = vst [vmem:[%s182 + $0xa4] sm:$0xf] %v1948
      %2205 = vst [vmem:[%s182 + $0xa8] sm:$0xf] %v1949
      %2206 = vst [vmem:[%s182 + $0xac] sm:$0xf] %v1950
      %2207 = vst [vmem:[%s182 + $0xb0] sm:$0xf] %v1951
      %2208 = vst [vmem:[%s182 + $0xb4] sm:$0xf] %v1952
      %2209 = vst [vmem:[%s182 + $0xb8] sm:$0xf] %v1953
      %2210 = vst [vmem:[%s182 + $0xbc] sm:$0xf] %v1954
      %2211 = vst [vmem:[%s182 + $0xc0] sm:$0xf] %v1955
      %2212 = vst [vmem:[%s182 + $0xc4] sm:$0xf] %v1956
      %2213 = vst [vmem:[%s182 + $0xc8] sm:$0xf] %v1957
      %2214 = vst [vmem:[%s182 + $0xcc] sm:$0xf] %v1958
      %2215 = vst [vmem:[%s182 + $0xd0] sm:$0xf] %v1959
      %2216 = vst [vmem:[%s182 + $0xd4] sm:$0xf] %v1960
      %2217 = vst [vmem:[%s182 + $0xd8] sm:$0xf] %v1961
      %2218 = vst [vmem:[%s182 + $0xdc] sm:$0xf] %v1962
      %2219 = vst [vmem:[%s182 + $0xe0] sm:$0xf] %v1963
      %2220 = vst [vmem:[%s182 + $0xe4] sm:$0xf] %v1964
      %2221 = vst [vmem:[%s182 + $0xe8] sm:$0xf] %v1965
      %2222 = vst [vmem:[%s182 + $0xec] sm:$0xf] %v1966
      %2223 = vst [vmem:[%s182 + $0xf0] sm:$0xf] %v1967
      %2224 = vst [vmem:[%s182 + $0xf4] sm:$0xf] %v1968
      %2225 = vst [vmem:[%s182 + $0xf8] sm:$0xf] %v1969
      %2226 = vst [vmem:[%s182 + $0xfc] sm:$0xf] %v1970
      %2227 = vst [vmem:[%s182 + $0x100] sm:$0xf] %v1971
      %2228 = vst [vmem:[%s182 + $0x104] sm:$0xf] %v1972
      %2229 = vst [vmem:[%s182 + $0x108] sm:$0xf] %v1973
      %2230 = vst [vmem:[%s182 + $0x10c] sm:$0xf] %v1974
      %2231 = vst [vmem:[%s182 + $0x110] sm:$0xf] %v1975
      %2232 = vst [vmem:[%s182 + $0x114] sm:$0xf] %v1976
      %2233 = vst [vmem:[%s182 + $0x118] sm:$0xf] %v1977
      %2234 = vst [vmem:[%s182 + $0x11c] sm:$0xf] %v1978
      %2235 = vst [vmem:[%s182 + $0x120] sm:$0xf] %v1979
      %2236 = vst [vmem:[%s182 + $0x124] sm:$0xf] %v1980
      %2237 = vst [vmem:[%s182 + $0x128] sm:$0xf] %v1981
      %2238 = vst [vmem:[%s182 + $0x12c] sm:$0xf] %v1982
      %2239 = vst [vmem:[%s182 + $0x130] sm:$0xf] %v1983
      %2240 = vst [vmem:[%s182 + $0x134] sm:$0xf] %v1984
      %2241 = vst [vmem:[%s182 + $0x138] sm:$0xf] %v1985
      %2242 = vst [vmem:[%s182 + $0x13c] sm:$0xf] %v1986
      %2243 = vst [vmem:[%s182 + $0x140] sm:$0xf] %v1987
      %2244 = vst [vmem:[%s182 + $0x144] sm:$0xf] %v1988
      %2245 = vst [vmem:[%s182 + $0x148] sm:$0xf] %v1989
      %2246 = vst [vmem:[%s182 + $0x14c] sm:$0xf] %v1990
      %2247 = vst [vmem:[%s182 + $0x150] sm:$0xf] %v1991
      %2248 = vst [vmem:[%s182 + $0x154] sm:$0xf] %v1992
      %2249 = vst [vmem:[%s182 + $0x158] sm:$0xf] %v1993
      %2250 = vst [vmem:[%s182 + $0x15c] sm:$0xf] %v1994
      %2251 = vst [vmem:[%s182 + $0x160] sm:$0xf] %v1995
      %2252 = vst [vmem:[%s182 + $0x164] sm:$0xf] %v1996
      %2253 = vst [vmem:[%s182 + $0x168] sm:$0xf] %v1997
      %2254 = vst [vmem:[%s182 + $0x16c] sm:$0xf] %v1998
      %2255 = vst [vmem:[%s182 + $0x170] sm:$0xf] %v1999
      %2256 = vst [vmem:[%s182 + $0x174] sm:$0xf] %v2000
      %2257 = vst [vmem:[%s182 + $0x178] sm:$0xf] %v2001
      %2258 = vst [vmem:[%s182 + $0x17c] sm:$0xf] %v2002
      %2259 = vst [vmem:[%s182 + $0x180] sm:$0xf] %v2003
      %2260 = vst [vmem:[%s182 + $0x184] sm:$0xf] %v2004
      %2261 = vst [vmem:[%s182 + $0x188] sm:$0xf] %v2005
      %2262 = vst [vmem:[%s182 + $0x18c] sm:$0xf] %v2006
      %2263 = vst [vmem:[%s182 + $0x190] sm:$0xf] %v2007
      %2264 = vst [vmem:[%s182 + $0x194] sm:$0xf] %v2008
      %2265 = vst [vmem:[%s182 + $0x198] sm:$0xf] %v2009
      %2266 = vst [vmem:[%s182 + $0x19c] sm:$0xf] %v2010
      %2267 = vst [vmem:[%s182 + $0x1a0] sm:$0xf] %v2011
      %2268 = vst [vmem:[%s182 + $0x1a4] sm:$0xf] %v2012
      %2269 = vst [vmem:[%s182 + $0x1a8] sm:$0xf] %v2013
      %2270 = vst [vmem:[%s182 + $0x1ac] sm:$0xf] %v2014
      %2271 = vst [vmem:[%s182 + $0x1b0] sm:$0xf] %v2015
      %2272 = vst [vmem:[%s182 + $0x1b4] sm:$0xf] %v2016
      %2273 = vst [vmem:[%s182 + $0x1b8] sm:$0xf] %v2017
      %2274 = vst [vmem:[%s182 + $0x1bc] sm:$0xf] %v2018
      %2275 = vst [vmem:[%s182 + $0x1c0] sm:$0xf] %v2019
      %2276 = vst [vmem:[%s182 + $0x1c4] sm:$0xf] %v2020
      %2277 = vst [vmem:[%s182 + $0x1c8] sm:$0xf] %v2021
      %2278 = vst [vmem:[%s182 + $0x1cc] sm:$0xf] %v2022
      %2279 = vst [vmem:[%s182 + $0x1d0] sm:$0xf] %v2023
      %2280 = vst [vmem:[%s182 + $0x1d4] sm:$0xf] %v2024
      %2281 = vst [vmem:[%s182 + $0x1d8] sm:$0xf] %v2025
      %2282 = vst [vmem:[%s182 + $0x1dc] sm:$0xf] %v2026
      %2283 = vst [vmem:[%s182 + $0x1e0] sm:$0xf] %v2027
      %2284 = vst [vmem:[%s182 + $0x1e4] sm:$0xf] %v2028
      %2285 = vst [vmem:[%s182 + $0x1e8] sm:$0xf] %v2029
      %2286 = vst [vmem:[%s182 + $0x1ec] sm:$0xf] %v2030
      %2287 = vst [vmem:[%s182 + $0x1f0] sm:$0xf] %v2031
      %2288 = vst [vmem:[%s182 + $0x1f4] sm:$0xf] %v2032
      %2289 = vst [vmem:[%s182 + $0x1f8] sm:$0xf] %v2033
      %2290 = vst [vmem:[%s182 + $0x1fc] sm:$0xf] %v2034
      %s2291 = smul.u32 128, %s17
      %p2292 = scmp.lt.s32.totalorder %s2291, 255
      %s2293 = scalar_select %p2292, %s2291, 255
      %p2294 = scmp.lt.s32.totalorder %s18, 0
      %s2295 = scalar_select %p2294, %s18, 0
      %s2296 = sadd.s32 %s2295, %s2293
      %s2297 = smul.addr %s2296, 4
      %s2298 = scalar_lea.vmem %s2, %s2297
      // Predicated region
      $region29: #{discriminator_forward.7} parent=27 // pred_check
        %p2299 = pneg %p97
      $region30: #{discriminator_forward.7} parent=27 // pred_check_branch
        %2301 = sbr.rel (%p2299) target = $region32
      $region31: #{discriminator_forward.7} parent=27 // pred_region
        %s2302 = smul.u32 128, %s17
      $region32: #{discriminator_forward.7} parent=27 // pred_fallthru
        _
    $region28: #{discriminator_forward.7} parent=5 // pred_fallthru
      _
    %p2303 = scmp.le.s32.totalorder 2, %s8
    // Predicated region
    $region33: #{discriminator_forward.7} parent=5 // pred_check
      %p2304 = pneg %p2303
    $region34: #{discriminator_forward.7} parent=5 // pred_check_branch
      %2306 = sbr.rel (%p2304) target = $region36
    $region35: #{discriminator_forward.7} parent=5 // pred_region
      %s2307 = ssub.s32 %s8, 2
      // Predicated region
      $region37: #{discriminator_forward.7} parent=35 // pred_check
        %p2308 = pneg %p103
      $region38: #{discriminator_forward.7} parent=35 // pred_check_branch
        %2310 = sbr.rel (%p2308) target = $region40
      $region39: #{discriminator_forward.7} parent=35 // pred_region
        %s2311 = smul.u32 128, %s19
        %p2312 = scmp.lt.s32.totalorder %s2311, 255
        %s2313 = scalar_select %p2312, %s2311, 255
        %p2314 = scmp.lt.s32.totalorder %s20, 0
        %s2315 = scalar_select %p2314, %s20, 0
        %s2316 = sadd.s32 %s2315, %s2313
        %s2317 = smul.addr %s2316, 4
        %s2318 = scalar_lea.vmem %s2, %s2317
      $region40: #{discriminator_forward.7} parent=35 // pred_fallthru
        _
    $region36: #{discriminator_forward.7} parent=5 // pred_fallthru
      _
  $region6: #{discriminator_forward.7} parent=0 // loop_footer
    %s12 = sadd.s32 1, %s8
  $region7: #{discriminator_forward.7} parent=0 // loop_footer_branch
    %7 = sbr.rel target = $region3
  $region8: #{discriminator_forward.7} parent=0 // loop_exit
    _

// kernel: discriminator_forward.9
$region0: #{discriminator_forward.9}
  #allocation0 [shape = 'u32[]', space=smem, size = 0x4, offset = 0x4, fixed_abs, tag = 'smem constant byte address 0x4 - core index']
  #allocation1 [shape = 'u32[144,128]{1,0:T(1,128)}', space=vmem, size = 0x12000, scoped, tag = 'internal scratch']
  %s0 = inlined_call_operand.vmem [shape: bf16[512,128], index: 0, kind: input, shape index: {}]
  %s1 = inlined_call_operand.vmem [shape: f32[1,128], index: 1, kind: input, shape index: {}]
  %s2 = inlined_call_operand.vmem [shape: f32[1,128], index: 2, kind: input, shape index: {}]
  %s3 = inlined_call_operand.vmem [shape: bf16[512,128], index: 3, kind: output, shape index: {}]
  %s4 = sld [smem:[#allocation0]]
  $region45: #{discriminator_forward.9} parent=0
    _
  %s6 = ssub.s32 1, %s4
  %s7 = scalar_select 0, %s6, %s4
  loop: start=0, step=1, limit=4
  $region2: #{discriminator_forward.9} parent=0 // loop_pre_header
    _
  $region3: #{discriminator_forward.9} parent=0 // loop_header
    %s9 = sphi 0, %s13
    %p10 = scmp.ge.s32.totalorder %s9, 4
    %s16 = sphi 0, %s28
    %s17 = sphi 0, %s24
    %s18 = sphi 0, %s16
    %s19 = sphi 0, %s17
    %s20 = sphi 0, %s18
    %s21 = sphi 0, %s19
    %s33 = sphi 0, %s35
    %s36 = sphi 0, %s33
    %s37 = sphi 0, %s36
    %s53 = sphi 0, %s37
    %s59 = sphi 0, %s61
    %s62 = sphi 0, %s59
    %s63 = sphi 0, %s62
    %s79 = sphi 0, %s63
    %s85 = sphi 0, %s87
    %s88 = sphi 0, %s85
    %s89 = sphi 0, %s88
    %s105 = sphi 0, %s89
    %s113 = sphi 0, %s115
    %s116 = sphi 0, %s113
    %s117 = sphi 0, %s116
    %s133 = sphi 0, %s117
  $region4: #{discriminator_forward.9} parent=0 // loop_header_branch
    %12 = sbr.rel (%p10) target = $region8
  $region5: #{discriminator_forward.9} parent=0 // loop_body
    %s14 = ssub.s32 %s9, 1
    %s15 = ssub.s32 %s9, 2
    %s22 = sadd.s32 1, %s17
    %p23 = scmp.ge.s32.totalorder %s22, 1
    %s24 = scalar_select %p23, 0, %s22
    %s25 = sadd.s32 1, %s16
    %s26 = scalar_select %p23, %s25, %s16
    %p27 = scmp.ge.s32.totalorder %s26, 2
    %s28 = scalar_select %p27, 0, %s26
    %s29 = ssub.s32 %s16, %s28
    %s30 = ssub.s32 %s17, %s24
    %s31 = sor.u32 %s29, %s30
    %p32 = scmp.eq.s32.totalorder %s31, 0
    %s34 = sadd.s32 %s33, 1
    %s35 = scalar_select %p32, %s33, %s34
    %p38 = pneg %p32
    %p39 = scmp.eq.s32.totalorder %s9, 1
    %p40 = por %p38, %p39
    %p41 = scmp.ne.s32.totalorder %s33, %s36
    %p42 = scmp.eq.s32.totalorder %s9, 0
    %p43 = por %p41, %p42
    %p44 = scmp.ne.s32.totalorder %s33, %s36
    %p45 = scmp.eq.s32.totalorder %s14, 1
    %p46 = por %p44, %p45
    %p47 = scmp.ne.s32.totalorder %s36, %s37
    %p48 = scmp.eq.s32.totalorder %s14, 0
    %p49 = por %p47, %p48
    %p50 = scmp.ne.s32.totalorder %s36, %s37
    %p51 = scmp.eq.s32.totalorder %s15, 1
    %p52 = por %p50, %p51
    %p54 = scmp.ne.s32.totalorder %s37, %s53
    %p55 = scmp.eq.s32.totalorder %s15, 0
    %p56 = por %p54, %p55
    %s57 = ssub.s32 %s17, %s24
    %p58 = scmp.eq.s32.totalorder %s57, 0
    %s60 = sadd.s32 %s59, 1
    %s61 = scalar_select %p58, %s59, %s60
    %p64 = pneg %p58
    %p65 = scmp.eq.s32.totalorder %s9, 1
    %p66 = por %p64, %p65
    %p67 = scmp.ne.s32.totalorder %s59, %s62
    %p68 = scmp.eq.s32.totalorder %s9, 0
    %p69 = por %p67, %p68
    %p70 = scmp.ne.s32.totalorder %s59, %s62
    %p71 = scmp.eq.s32.totalorder %s14, 1
    %p72 = por %p70, %p71
    %p73 = scmp.ne.s32.totalorder %s62, %s63
    %p74 = scmp.eq.s32.totalorder %s14, 0
    %p75 = por %p73, %p74
    %p76 = scmp.ne.s32.totalorder %s62, %s63
    %p77 = scmp.eq.s32.totalorder %s15, 1
    %p78 = por %p76, %p77
    %p80 = scmp.ne.s32.totalorder %s63, %s79
    %p81 = scmp.eq.s32.totalorder %s15, 0
    %p82 = por %p80, %p81
    %s83 = ssub.s32 %s17, %s24
    %p84 = scmp.eq.s32.totalorder %s83, 0
    %s86 = sadd.s32 %s85, 1
    %s87 = scalar_select %p84, %s85, %s86
    %p90 = pneg %p84
    %p91 = scmp.eq.s32.totalorder %s9, 1
    %p92 = por %p90, %p91
    %p93 = scmp.ne.s32.totalorder %s85, %s88
    %p94 = scmp.eq.s32.totalorder %s9, 0
    %p95 = por %p93, %p94
    %p96 = scmp.ne.s32.totalorder %s85, %s88
    %p97 = scmp.eq.s32.totalorder %s14, 1
    %p98 = por %p96, %p97
    %p99 = scmp.ne.s32.totalorder %s88, %s89
    %p100 = scmp.eq.s32.totalorder %s14, 0
    %p101 = por %p99, %p100
    %p102 = scmp.ne.s32.totalorder %s88, %s89
    %p103 = scmp.eq.s32.totalorder %s15, 1
    %p104 = por %p102, %p103
    %p106 = scmp.ne.s32.totalorder %s89, %s105
    %p107 = scmp.eq.s32.totalorder %s15, 0
    %p108 = por %p106, %p107
    %s109 = ssub.s32 %s16, %s28
    %s110 = ssub.s32 %s17, %s24
    %s111 = sor.u32 %s109, %s110
    %p112 = scmp.eq.s32.totalorder %s111, 0
    %s114 = sadd.s32 %s113, 1
    %s115 = scalar_select %p112, %s113, %s114
    %p118 = pneg %p112
    %p119 = scmp.eq.s32.totalorder %s9, 1
    %p120 = por %p118, %p119
    %p121 = scmp.ne.s32.totalorder %s113, %s116
    %p122 = scmp.eq.s32.totalorder %s9, 0
    %p123 = por %p121, %p122
    %p124 = scmp.ne.s32.totalorder %s113, %s116
    %p125 = scmp.eq.s32.totalorder %s14, 1
    %p126 = por %p124, %p125
    %p127 = scmp.ne.s32.totalorder %s116, %s117
    %p128 = scmp.eq.s32.totalorder %s14, 0
    %p129 = por %p127, %p128
    %p130 = scmp.ne.s32.totalorder %s116, %s117
    %p131 = scmp.eq.s32.totalorder %s15, 1
    %p132 = por %p130, %p131
    %p134 = scmp.ne.s32.totalorder %s117, %s133
    %p135 = scmp.eq.s32.totalorder %s15, 0
    %p136 = por %p134, %p135
    %p137 = scmp.le.s32.totalorder 1, %s9
    %p138 = scmp.lt.s32.totalorder %s9, 3
    %p139 = pnand %p137, %p138
    %p140 = pneg %p139
    // Predicated region
    $region9: #{discriminator_forward.9} parent=5 // pred_check
      _
    $region10: #{discriminator_forward.9} parent=5 // pred_check_branch
      %142 = sbr.rel (%p139) target = $region12
    $region11: #{discriminator_forward.9} parent=5 // pred_region
      %s143 = ssub.s32 %s9, 1
      // Predicated region
      $region13: #{discriminator_forward.9} parent=11 // pred_check
        %p144 = pneg %p75
      $region14: #{discriminator_forward.9} parent=11 // pred_check_branch
        %146 = sbr.rel (%p144) target = $region16
      $region15: #{discriminator_forward.9} parent=11 // pred_region
        %p147 = scmp.lt.s32.totalorder %s19, 0
        %s148 = scalar_select %p147, %s19, 0
        %s149 = scalar_lea.vmem %s1, %s148
      $region16: #{discriminator_forward.9} parent=11 // pred_fallthru
        _
      // Predicated region
      $region17: #{discriminator_forward.9} parent=11 // pred_check
        %p150 = pneg %p101
      $region18: #{discriminator_forward.9} parent=11 // pred_check_branch
        %152 = sbr.rel (%p150) target = $region20
      $region19: #{discriminator_forward.9} parent=11 // pred_region
        %p153 = scmp.lt.s32.totalorder %s19, 0
        %s154 = scalar_select %p153, %s19, 0
        %s155 = scalar_lea.vmem %s2, %s154
      $region20: #{discriminator_forward.9} parent=11 // pred_fallthru
        _
    $region12: #{discriminator_forward.9} parent=5 // pred_fallthru
      _
    %p156 = scmp.lt.s32.totalorder %s9, 2
    // Predicated region
    $region21: #{discriminator_forward.9} parent=5 // pred_check
      %p157 = pneg %p156
    $region22: #{discriminator_forward.9} parent=5 // pred_check_branch
      %159 = sbr.rel (%p157) target = $region24
    $region23: #{discriminator_forward.9} parent=5 // pred_region
      // Predicated region
      $region25: #{discriminator_forward.9} parent=23 // pred_check
        %p160 = pneg %p43
      $region26: #{discriminator_forward.9} parent=23 // pred_check_branch
        %162 = sbr.rel (%p160) target = $region28
      $region27: #{discriminator_forward.9} parent=23 // pred_region
        %s163 = smul.u32 32, %s16
        %p164 = scmp.lt.s32.totalorder %s163, 63
        %s165 = scalar_select %p164, %s163, 63
        %p166 = scmp.lt.s32.totalorder %s17, 0
        %s167 = scalar_select %p166, %s17, 0
        %s168 = sadd.s32 %s167, %s165
        %s169 = smul.addr %s168, 4
        %s170 = scalar_lea.vmem %s0, %s169
        %s171 = smul.u32 32, %s16
      $region28: #{discriminator_forward.9} parent=23 // pred_fallthru
        _
    $region24: #{discriminator_forward.9} parent=5 // pred_fallthru
      _
    %p172 = scmp.le.s32.totalorder 1, %s9
    %p173 = scmp.lt.s32.totalorder %s9, 3
    %p174 = pnand %p172, %p173
    %p175 = pneg %p174
    // Predicated region
    $region29: #{discriminator_forward.9} parent=5 // pred_check
      _
    $region30: #{discriminator_forward.9} parent=5 // pred_check_branch
      %177 = sbr.rel (%p174) target = $region32
    $region31: #{discriminator_forward.9} parent=5 // pred_region
      %s178 = ssub.s32 %s9, 1
      %s179 = smul.u32 32, %s18
      %p180 = scmp.lt.s32.totalorder %s179, 63
      %s181 = scalar_select %p180, %s179, 63
      %p182 = scmp.lt.s32.totalorder %s19, 0
      %s183 = scalar_select %p182, %s19, 0
      %s184 = sadd.s32 %s183, %s181
      %s185 = smul.addr %s184, 4
      %s186 = scalar_lea.vmem %s0, %s185
      %p187 = pneg %p49
      %p188 = pneg %p46
      %p189 = scmp.lt.s32.totalorder %s19, 0
      %s190 = scalar_select %p189, %s19, 0
      %s191 = scalar_lea.vmem %s1, %s190
      %p192 = pneg %p75
      %p193 = pneg %p72
      %p194 = scmp.lt.s32.totalorder %s19, 0
      %s195 = scalar_select %p194, %s19, 0
      %s196 = scalar_lea.vmem %s2, %s195
      %p197 = pneg %p101
      %p198 = pneg %p98
      %p199 = pneg %p129
      %p200 = pneg %p126
      %s201 = smul.u32 32, %s18
      %p202 = scmp.lt.s32.totalorder %s201, 63
      %s203 = scalar_select %p202, %s201, 63
      %p204 = scmp.lt.s32.totalorder %s19, 0
      %s205 = scalar_select %p204, %s19, 0
      %s206 = sadd.s32 %s205, %s203
      %s207 = smul.addr %s206, 4
      %s208 = scalar_lea.vmem %s3, %s207
      %s209 = smul.u32 32, %s18
      %p210 = scmp.lt.s32.totalorder %s209, 63
      %s211 = scalar_select %p210, %s209, 63
      %p212 = scmp.lt.s32.totalorder %s19, 0
      %s213 = scalar_select %p212, %s19, 0
      %s214 = sadd.s32 %s213, %s211
      %s215 = smul.addr %s214, 4
      %s216 = scalar_lea.vmem %s0, %s215
      %s217 = smul.u32 32, %s18
      %p218 = scmp.lt.s32.totalorder %s19, 0
      %s219 = scalar_select %p218, %s19, 0
      %s220 = scalar_lea.vmem %s1, %s219
      %p221 = scmp.lt.s32.totalorder %s19, 0
      %s222 = scalar_select %p221, %s19, 0
      %s223 = scalar_lea.vmem %s2, %s222
      %s224 = smul.u32 32, %s18
      %p225 = scmp.lt.s32.totalorder %s224, 63
      %s226 = scalar_select %p225, %s224, 63
      %p227 = scmp.lt.s32.totalorder %s19, 0
      %s228 = scalar_select %p227, %s19, 0
      %s229 = sadd.s32 %s228, %s226
      %s230 = smul.addr %s229, 4
      %s231 = scalar_lea.vmem %s3, %s230
      %s232 = smul.u32 32, %s18
      %v233 = vld [vmem:[%s216] sm:$0xf]
      %v234 = vld [vmem:[%s216 + $0x4] sm:$0xf]
      %v235 = vld [vmem:[%s216 + $0x8] sm:$0xf]
      %v236 = vld [vmem:[%s216 + $0xc] sm:$0xf]
      %v237 = vld [vmem:[%s216 + $0x10] sm:$0xf]
      %v238 = vld [vmem:[%s216 + $0x14] sm:$0xf]
      %v239 = vld [vmem:[%s216 + $0x18] sm:$0xf]
      %v240 = vld [vmem:[%s216 + $0x1c] sm:$0xf]
      %v241 = vld [vmem:[%s216 + $0x20] sm:$0xf]
      %v242 = vld [vmem:[%s216 + $0x24] sm:$0xf]
      %v243 = vld [vmem:[%s216 + $0x28] sm:$0xf]
      %v244 = vld [vmem:[%s216 + $0x2c] sm:$0xf]
      %v245 = vld [vmem:[%s216 + $0x30] sm:$0xf]
      %v246 = vld [vmem:[%s216 + $0x34] sm:$0xf]
      %v247 = vld [vmem:[%s216 + $0x38] sm:$0xf]
      %v248 = vld [vmem:[%s216 + $0x3c] sm:$0xf]
      %v249 = vld [vmem:[%s216 + $0x40] sm:$0xf]
      %v250 = vld [vmem:[%s216 + $0x44] sm:$0xf]
      %v251 = vld [vmem:[%s216 + $0x48] sm:$0xf]
      %v252 = vld [vmem:[%s216 + $0x4c] sm:$0xf]
      %v253 = vld [vmem:[%s216 + $0x50] sm:$0xf]
      %v254 = vld [vmem:[%s216 + $0x54] sm:$0xf]
      %v255 = vld [vmem:[%s216 + $0x58] sm:$0xf]
      %v256 = vld [vmem:[%s216 + $0x5c] sm:$0xf]
      %v257 = vld [vmem:[%s216 + $0x60] sm:$0xf]
      %v258 = vld [vmem:[%s216 + $0x64] sm:$0xf]
      %v259 = vld [vmem:[%s216 + $0x68] sm:$0xf]
      %v260 = vld [vmem:[%s216 + $0x6c] sm:$0xf]
      %v261 = vld [vmem:[%s216 + $0x70] sm:$0xf]
      %v262 = vld [vmem:[%s216 + $0x74] sm:$0xf]
      %v263 = vld [vmem:[%s216 + $0x78] sm:$0xf]
      %v264 = vld [vmem:[%s216 + $0x7c] sm:$0xf]
      %v265 = vunpack.c.l.bf16 %v233
      %v266 = vunpack.c.l.bf16 %v234
      %v267 = vunpack.c.l.bf16 %v235
      %v268 = vunpack.c.l.bf16 %v236
      %v269 = vunpack.c.l.bf16 %v237
      %v270 = vunpack.c.l.bf16 %v238
      %v271 = vunpack.c.l.bf16 %v239
      %v272 = vunpack.c.l.bf16 %v240
      %v273 = vunpack.c.l.bf16 %v241
      %v274 = vunpack.c.l.bf16 %v242
      %v275 = vunpack.c.l.bf16 %v243
      %v276 = vunpack.c.l.bf16 %v244
      %v277 = vunpack.c.l.bf16 %v245
      %v278 = vunpack.c.l.bf16 %v246
      %v279 = vunpack.c.l.bf16 %v247
      %v280 = vunpack.c.l.bf16 %v248
      %v281 = vunpack.c.l.bf16 %v249
      %v282 = vunpack.c.l.bf16 %v250
      %v283 = vunpack.c.l.bf16 %v251
      %v284 = vunpack.c.l.bf16 %v252
      %v285 = vunpack.c.l.bf16 %v253
      %v286 = vunpack.c.l.bf16 %v254
      %v287 = vunpack.c.l.bf16 %v255
      %v288 = vunpack.c.l.bf16 %v256
      %v289 = vunpack.c.l.bf16 %v257
      %v290 = vunpack.c.l.bf16 %v258
      %v291 = vunpack.c.l.bf16 %v259
      %v292 = vunpack.c.l.bf16 %v260
      %v293 = vunpack.c.l.bf16 %v261
      %v294 = vunpack.c.l.bf16 %v262
      %v295 = vunpack.c.l.bf16 %v263
      %v296 = vunpack.c.l.bf16 %v264
      %v297 = vld [vmem:[%s220] sm:$0x1]
      %v299 = vlaneseq
      %v300 = vshrl.u32 %v299, 7
      %v301 = vsub.s32 0, %v300
      %v302 = vrot.slane %v297, %v301
      %v304 = vmul.f32 %v265, %v302
      %v305 = vmul.f32 %v266, %v302
      %v306 = vmul.f32 %v267, %v302
      %v307 = vmul.f32 %v268, %v302
      %v308 = vmul.f32 %v269, %v302
      %v309 = vmul.f32 %v270, %v302
      %v310 = vmul.f32 %v271, %v302
      %v311 = vmul.f32 %v272, %v302
      %v312 = vmul.f32 %v273, %v302
      %v313 = vmul.f32 %v274, %v302
      %v314 = vmul.f32 %v275, %v302
      %v315 = vmul.f32 %v276, %v302
      %v316 = vmul.f32 %v277, %v302
      %v317 = vmul.f32 %v278, %v302
      %v318 = vmul.f32 %v279, %v302
      %v319 = vmul.f32 %v280, %v302
      %v320 = vmul.f32 %v281, %v302
      %v321 = vmul.f32 %v282, %v302
      %v322 = vmul.f32 %v283, %v302
      %v323 = vmul.f32 %v284, %v302
      %v324 = vmul.f32 %v285, %v302
      %v325 = vmul.f32 %v286, %v302
      %v326 = vmul.f32 %v287, %v302
      %v327 = vmul.f32 %v288, %v302
      %v328 = vmul.f32 %v289, %v302
      %v329 = vmul.f32 %v290, %v302
      %v330 = vmul.f32 %v291, %v302
      %v331 = vmul.f32 %v292, %v302
      %v332 = vmul.f32 %v293, %v302
      %v333 = vmul.f32 %v294, %v302
      %v334 = vmul.f32 %v295, %v302
      %v335 = vmul.f32 %v296, %v302
      %v336 = vld [vmem:[%s223] sm:$0x1]
      %v338 = vlaneseq
      %v339 = vshrl.u32 %v338, 7
      %v340 = vsub.s32 0, %v339
      %v341 = vrot.slane %v336, %v340
      %v343 = vadd.f32 %v304, %v341
      %v344 = vadd.f32 %v305, %v341
      %v345 = vadd.f32 %v306, %v341
      %v346 = vadd.f32 %v307, %v341
      %v347 = vadd.f32 %v308, %v341
      %v348 = vadd.f32 %v309, %v341
      %v349 = vadd.f32 %v310, %v341
      %v350 = vadd.f32 %v311, %v341
      %v351 = vadd.f32 %v312, %v341
      %v352 = vadd.f32 %v313, %v341
      %v353 = vadd.f32 %v314, %v341
      %v354 = vadd.f32 %v315, %v341
      %v355 = vadd.f32 %v316, %v341
      %v356 = vadd.f32 %v317, %v341
      %v357 = vadd.f32 %v318, %v341
      %v358 = vadd.f32 %v319, %v341
      %v359 = vadd.f32 %v320, %v341
      %v360 = vadd.f32 %v321, %v341
      %v361 = vadd.f32 %v322, %v341
      %v362 = vadd.f32 %v323, %v341
      %v363 = vadd.f32 %v324, %v341
      %v364 = vadd.f32 %v325, %v341
      %v365 = vadd.f32 %v326, %v341
      %v366 = vadd.f32 %v327, %v341
      %v367 = vadd.f32 %v328, %v341
      %v368 = vadd.f32 %v329, %v341
      %v369 = vadd.f32 %v330, %v341
      %v370 = vadd.f32 %v331, %v341
      %v371 = vadd.f32 %v332, %v341
      %v372 = vadd.f32 %v333, %v341
      %v373 = vadd.f32 %v334, %v341
      %v374 = vadd.f32 %v335, %v341
      %v375 = vmul.f32 %v343, 0.2
      %v376 = vmul.f32 %v344, 0.2
      %v377 = vmul.f32 %v345, 0.2
      %v378 = vmul.f32 %v346, 0.2
      %v379 = vmul.f32 %v347, 0.2
      %v380 = vmul.f32 %v348, 0.2
      %v381 = vmul.f32 %v349, 0.2
      %v382 = vmul.f32 %v350, 0.2
      %v383 = vmul.f32 %v351, 0.2
      %v384 = vmul.f32 %v352, 0.2
      %v385 = vmul.f32 %v353, 0.2
      %v386 = vmul.f32 %v354, 0.2
      %v387 = vmul.f32 %v355, 0.2
      %v388 = vmul.f32 %v356, 0.2
      %v389 = vmul.f32 %v357, 0.2
      %v390 = vmul.f32 %v358, 0.2
      %v391 = vmul.f32 %v359, 0.2
      %v392 = vmul.f32 %v360, 0.2
      %v393 = vmul.f32 %v361, 0.2
      %v394 = vmul.f32 %v362, 0.2
      %v395 = vmul.f32 %v363, 0.2
      %v396 = vmul.f32 %v364, 0.2
      %v397 = vmul.f32 %v365, 0.2
      %v398 = vmul.f32 %v366, 0.2
      %v399 = vmul.f32 %v367, 0.2
      %v400 = vmul.f32 %v368, 0.2
      %v401 = vmul.f32 %v369, 0.2
      %v402 = vmul.f32 %v370, 0.2
      %v403 = vmul.f32 %v371, 0.2
      %v404 = vmul.f32 %v372, 0.2
      %v405 = vmul.f32 %v373, 0.2
      %v406 = vmul.f32 %v374, 0.2
      %v407 = vmax.f32 %v343, %v375
      %v408 = vmax.f32 %v344, %v376
      %v409 = vmax.f32 %v345, %v377
      %v410 = vmax.f32 %v346, %v378
      %v411 = vmax.f32 %v347, %v379
      %v412 = vmax.f32 %v348, %v380
      %v413 = vmax.f32 %v349, %v381
      %v414 = vmax.f32 %v350, %v382
      %v415 = vmax.f32 %v351, %v383
      %v416 = vmax.f32 %v352, %v384
      %v417 = vmax.f32 %v353, %v385
      %v418 = vmax.f32 %v354, %v386
      %v419 = vmax.f32 %v355, %v387
      %v420 = vmax.f32 %v356, %v388
      %v421 = vmax.f32 %v357, %v389
      %v422 = vmax.f32 %v358, %v390
      %v423 = vmax.f32 %v359, %v391
      %v424 = vmax.f32 %v360, %v392
      %v425 = vmax.f32 %v361, %v393
      %v426 = vmax.f32 %v362, %v394
      %v427 = vmax.f32 %v363, %v395
      %v428 = vmax.f32 %v364, %v396
      %v429 = vmax.f32 %v365, %v397
      %v430 = vmax.f32 %v366, %v398
      %v431 = vmax.f32 %v367, %v399
      %v432 = vmax.f32 %v368, %v400
      %v433 = vmax.f32 %v369, %v401
      %v434 = vmax.f32 %v370, %v402
      %v435 = vmax.f32 %v371, %v403
      %v436 = vmax.f32 %v372, %v404
      %v437 = vmax.f32 %v373, %v405
      %v438 = vmax.f32 %v374, %v406
      %v439 = vpack.c.bf16 %v408, %v407
      %v440 = vpack.c.bf16 %v410, %v409
      %v441 = vpack.c.bf16 %v412, %v411
      %v442 = vpack.c.bf16 %v414, %v413
      %v443 = vpack.c.bf16 %v416, %v415
      %v444 = vpack.c.bf16 %v418, %v417
      %v445 = vpack.c.bf16 %v420, %v419
      %v446 = vpack.c.bf16 %v422, %v421
      %v447 = vpack.c.bf16 %v424, %v423
      %v448 = vpack.c.bf16 %v426, %v425
      %v449 = vpack.c.bf16 %v428, %v427
      %v450 = vpack.c.bf16 %v430, %v429
      %v451 = vpack.c.bf16 %v432, %v431
      %v452 = vpack.c.bf16 %v434, %v433
      %v453 = vpack.c.bf16 %v436, %v435
      %v454 = vpack.c.bf16 %v438, %v437
      %v471 = vunpack.c.l.b16 %v439
      %v472 = vunpack.c.h.b16 %v439
      %v473 = vunpack.c.l.b16 %v440
      %v474 = vunpack.c.h.b16 %v440
      %v475 = vunpack.c.l.b16 %v441
      %v476 = vunpack.c.h.b16 %v441
      %v477 = vunpack.c.l.b16 %v442
      %v478 = vunpack.c.h.b16 %v442
      %v479 = vunpack.c.l.b16 %v443
      %v480 = vunpack.c.h.b16 %v443
      %v481 = vunpack.c.l.b16 %v444
      %v482 = vunpack.c.h.b16 %v444
      %v483 = vunpack.c.l.b16 %v445
      %v484 = vunpack.c.h.b16 %v445
      %v485 = vunpack.c.l.b16 %v446
      %v486 = vunpack.c.h.b16 %v446
      %v487 = vunpack.c.l.b16 %v447
      %v488 = vunpack.c.h.b16 %v447
      %v489 = vunpack.c.l.b16 %v448
      %v490 = vunpack.c.h.b16 %v448
      %v491 = vunpack.c.l.b16 %v449
      %v492 = vunpack.c.h.b16 %v449
      %v493 = vunpack.c.l.b16 %v450
      %v494 = vunpack.c.h.b16 %v450
      %v495 = vunpack.c.l.b16 %v451
      %v496 = vunpack.c.h.b16 %v451
      %v497 = vunpack.c.l.b16 %v452
      %v498 = vunpack.c.h.b16 %v452
      %v499 = vunpack.c.l.b16 %v453
      %v500 = vunpack.c.h.b16 %v453
      %v501 = vunpack.c.l.b16 %v454
      %v502 = vunpack.c.h.b16 %v454
      %v503 = vpack.c.b16 %v471, %v471
      %v504 = vpack.c.b16 %v472, %v472
      %v505 = vpack.c.b16 %v473, %v473
      %v506 = vpack.c.b16 %v474, %v474
      %v507 = vpack.c.b16 %v475, %v475
      %v508 = vpack.c.b16 %v476, %v476
      %v509 = vpack.c.b16 %v477, %v477
      %v510 = vpack.c.b16 %v478, %v478
      %v511 = vpack.c.b16 %v479, %v479
      %v512 = vpack.c.b16 %v480, %v480
      %v513 = vpack.c.b16 %v481, %v481
      %v514 = vpack.c.b16 %v482, %v482
      %v515 = vpack.c.b16 %v483, %v483
      %v516 = vpack.c.b16 %v484, %v484
      %v517 = vpack.c.b16 %v485, %v485
      %v518 = vpack.c.b16 %v486, %v486
      %v519 = vpack.c.b16 %v487, %v487
      %v520 = vpack.c.b16 %v488, %v488
      %v521 = vpack.c.b16 %v489, %v489
      %v522 = vpack.c.b16 %v490, %v490
      %v523 = vpack.c.b16 %v491, %v491
      %v524 = vpack.c.b16 %v492, %v492
      %v525 = vpack.c.b16 %v493, %v493
      %v526 = vpack.c.b16 %v494, %v494
      %v527 = vpack.c.b16 %v495, %v495
      %v528 = vpack.c.b16 %v496, %v496
      %v529 = vpack.c.b16 %v497, %v497
      %v530 = vpack.c.b16 %v498, %v498
      %v531 = vpack.c.b16 %v499, %v499
      %v532 = vpack.c.b16 %v500, %v500
      %v533 = vpack.c.b16 %v501, %v501
      %v534 = vpack.c.b16 %v502, %v502
      %567 = vst [vmem:[%s231] sm:$0xf] %v503
      %568 = vst [vmem:[%s231 + $0x4] sm:$0xf] %v504
      %569 = vst [vmem:[%s231 + $0x8] sm:$0xf] %v505
      %570 = vst [vmem:[%s231 + $0xc] sm:$0xf] %v506
      %571 = vst [vmem:[%s231 + $0x10] sm:$0xf] %v507
      %572 = vst [vmem:[%s231 + $0x14] sm:$0xf] %v508
      %573 = vst [vmem:[%s231 + $0x18] sm:$0xf] %v509
      %574 = vst [vmem:[%s231 + $0x1c] sm:$0xf] %v510
      %575 = vst [vmem:[%s231 + $0x20] sm:$0xf] %v511
      %576 = vst [vmem:[%s231 + $0x24] sm:$0xf] %v512
      %577 = vst [vmem:[%s231 + $0x28] sm:$0xf] %v513
      %578 = vst [vmem:[%s231 + $0x2c] sm:$0xf] %v514
      %579 = vst [vmem:[%s231 + $0x30] sm:$0xf] %v515
      %580 = vst [vmem:[%s231 + $0x34] sm:$0xf] %v516
      %581 = vst [vmem:[%s231 + $0x38] sm:$0xf] %v517
      %582 = vst [vmem:[%s231 + $0x3c] sm:$0xf] %v518
      %583 = vst [vmem:[%s231 + $0x40] sm:$0xf] %v519
      %584 = vst [vmem:[%s231 + $0x44] sm:$0xf] %v520
      %585 = vst [vmem:[%s231 + $0x48] sm:$0xf] %v521
      %586 = vst [vmem:[%s231 + $0x4c] sm:$0xf] %v522
      %587 = vst [vmem:[%s231 + $0x50] sm:$0xf] %v523
      %588 = vst [vmem:[%s231 + $0x54] sm:$0xf] %v524
      %589 = vst [vmem:[%s231 + $0x58] sm:$0xf] %v525
      %590 = vst [vmem:[%s231 + $0x5c] sm:$0xf] %v526
      %591 = vst [vmem:[%s231 + $0x60] sm:$0xf] %v527
      %592 = vst [vmem:[%s231 + $0x64] sm:$0xf] %v528
      %593 = vst [vmem:[%s231 + $0x68] sm:$0xf] %v529
      %594 = vst [vmem:[%s231 + $0x6c] sm:$0xf] %v530
      %595 = vst [vmem:[%s231 + $0x70] sm:$0xf] %v531
      %596 = vst [vmem:[%s231 + $0x74] sm:$0xf] %v532
      %597 = vst [vmem:[%s231 + $0x78] sm:$0xf] %v533
      %598 = vst [vmem:[%s231 + $0x7c] sm:$0xf] %v534
      %s599 = smul.u32 32, %s18
      %p600 = scmp.lt.s32.totalorder %s599, 63
      %s601 = scalar_select %p600, %s599, 63
      %p602 = scmp.lt.s32.totalorder %s19, 0
      %s603 = scalar_select %p602, %s19, 0
      %s604 = sadd.s32 %s603, %s601
      %s605 = smul.addr %s604, 4
      %s606 = scalar_lea.vmem %s3, %s605
      // Predicated region
      $region33: #{discriminator_forward.9} parent=31 // pred_check
        %p607 = pneg %p126
      $region34: #{discriminator_forward.9} parent=31 // pred_check_branch
        %609 = sbr.rel (%p607) target = $region36
      $region35: #{discriminator_forward.9} parent=31 // pred_region
        %s610 = smul.u32 32, %s18
      $region36: #{discriminator_forward.9} parent=31 // pred_fallthru
        _
    $region32: #{discriminator_forward.9} parent=5 // pred_fallthru
      _
    %p611 = scmp.le.s32.totalorder 2, %s9
    // Predicated region
    $region37: #{discriminator_forward.9} parent=5 // pred_check
      %p612 = pneg %p611
    $region38: #{discriminator_forward.9} parent=5 // pred_check_branch
      %614 = sbr.rel (%p612) target = $region40
    $region39: #{discriminator_forward.9} parent=5 // pred_region
      %s615 = ssub.s32 %s9, 2
      // Predicated region
      $region41: #{discriminator_forward.9} parent=39 // pred_check
        %p616 = pneg %p132
      $region42: #{discriminator_forward.9} parent=39 // pred_check_branch
        %618 = sbr.rel (%p616) target = $region44
      $region43: #{discriminator_forward.9} parent=39 // pred_region
        %s619 = smul.u32 32, %s20
        %p620 = scmp.lt.s32.totalorder %s619, 63
        %s621 = scalar_select %p620, %s619, 63
        %p622 = scmp.lt.s32.totalorder %s21, 0
        %s623 = scalar_select %p622, %s21, 0
        %s624 = sadd.s32 %s623, %s621
        %s625 = smul.addr %s624, 4
        %s626 = scalar_lea.vmem %s3, %s625
      $region44: #{discriminator_forward.9} parent=39 // pred_fallthru
        _
    $region40: #{discriminator_forward.9} parent=5 // pred_fallthru
      _
  $region6: #{discriminator_forward.9} parent=0 // loop_footer
    %s13 = sadd.s32 1, %s9
  $region7: #{discriminator_forward.9} parent=0 // loop_footer_branch
    %8 = sbr.rel target = $region3
  $region8: #{discriminator_forward.9} parent=0 // loop_exit
    _

// kernel: discriminator_forward.8
$region0: #{discriminator_forward.8}
  #allocation0 [shape = 'u32[]', space=smem, size = 0x4, offset = 0x4, fixed_abs, tag = 'smem constant byte address 0x4 - core index']
  #allocation1 [shape = 'u32[144,128]{1,0:T(1,128)}', space=vmem, size = 0x12000, scoped, tag = 'internal scratch']
  %s0 = inlined_call_operand.vmem [shape: bf16[512,128], index: 0, kind: input, shape index: {}]
  %s1 = inlined_call_operand.vmem [shape: bf16[128,128], index: 1, kind: input, shape index: {}]
  %s2 = inlined_call_operand.vmem [shape: bf16[512,128], index: 2, kind: output, shape index: {0}]
  %s3 = inlined_call_operand.vmem [shape: f32[2,1,128], index: 3, kind: output, shape index: {1}]
  %s4 = inlined_call_operand.vmem [shape: f32[2,1,128], index: 4, kind: output, shape index: {2}]
  %5 = xla_tuple %s2, %s3, %s4
  %s6 = sld [smem:[#allocation0]]
  $region57: #{discriminator_forward.8} parent=0
    _
  %s8 = ssub.s32 1, %s6
  %s9 = scalar_select 0, %s8, %s6
  loop: start=0, step=1, limit=4
  $region2: #{discriminator_forward.8} parent=0 // loop_pre_header
    _
  $region3: #{discriminator_forward.8} parent=0 // loop_header
    %s11 = sphi 0, %s15
    %p12 = scmp.ge.s32.totalorder %s11, 4
    %s18 = sphi 0, %s30
    %s19 = sphi 0, %s26
    %s20 = sphi 0, %s18
    %s21 = sphi 0, %s19
    %s22 = sphi 0, %s20
    %s23 = sphi 0, %s21
    %s33 = sphi 0, %s35
    %s36 = sphi 0, %s33
    %s37 = sphi 0, %s36
    %s53 = sphi 0, %s37
    %s59 = sphi 0, %s61
    %s62 = sphi 0, %s59
    %s63 = sphi 0, %s62
    %s79 = sphi 0, %s63
    %s87 = sphi 0, %s89
    %s90 = sphi 0, %s87
    %s91 = sphi 0, %s90
    %s107 = sphi 0, %s91
    %s115 = sphi 0, %s117
    %s118 = sphi 0, %s115
    %s119 = sphi 0, %s118
    %s135 = sphi 0, %s119
    %s143 = sphi 0, %s145
    %s146 = sphi 0, %s143
    %s147 = sphi 0, %s146
    %s163 = sphi 0, %s147
  $region4: #{discriminator_forward.8} parent=0 // loop_header_branch
    %14 = sbr.rel (%p12) target = $region8
  $region5: #{discriminator_forward.8} parent=0 // loop_body
    %s16 = ssub.s32 %s11, 1
    %s17 = ssub.s32 %s11, 2
    %s24 = sadd.s32 1, %s19
    %p25 = scmp.ge.s32.totalorder %s24, 1
    %s26 = scalar_select %p25, 0, %s24
    %s27 = sadd.s32 1, %s18
    %s28 = scalar_select %p25, %s27, %s18
    %p29 = scmp.ge.s32.totalorder %s28, 2
    %s30 = scalar_select %p29, 0, %s28
    %s31 = ssub.s32 %s18, %s30
    %p32 = scmp.eq.s32.totalorder %s31, 0
    %s34 = sadd.s32 %s33, 1
    %s35 = scalar_select %p32, %s33, %s34
    %p38 = pneg %p32
    %p39 = scmp.eq.s32.totalorder %s11, 1
    %p40 = por %p38, %p39
    %p41 = scmp.ne.s32.totalorder %s33, %s36
    %p42 = scmp.eq.s32.totalorder %s11, 0
    %p43 = por %p41, %p42
    %p44 = scmp.ne.s32.totalorder %s33, %s36
    %p45 = scmp.eq.s32.totalorder %s16, 1
    %p46 = por %p44, %p45
    %p47 = scmp.ne.s32.totalorder %s36, %s37
    %p48 = scmp.eq.s32.totalorder %s16, 0
    %p49 = por %p47, %p48
    %p50 = scmp.ne.s32.totalorder %s36, %s37
    %p51 = scmp.eq.s32.totalorder %s17, 1
    %p52 = por %p50, %p51
    %p54 = scmp.ne.s32.totalorder %s37, %s53
    %p55 = scmp.eq.s32.totalorder %s17, 0
    %p56 = por %p54, %p55
    %s57 = ssub.s32 %s19, %s26
    %p58 = scmp.eq.s32.totalorder %s57, 0
    %s60 = sadd.s32 %s59, 1
    %s61 = scalar_select %p58, %s59, %s60
    %p64 = pneg %p58
    %p65 = scmp.eq.s32.totalorder %s11, 1
    %p66 = por %p64, %p65
    %p67 = scmp.ne.s32.totalorder %s59, %s62
    %p68 = scmp.eq.s32.totalorder %s11, 0
    %p69 = por %p67, %p68
    %p70 = scmp.ne.s32.totalorder %s59, %s62
    %p71 = scmp.eq.s32.totalorder %s16, 1
    %p72 = por %p70, %p71
    %p73 = scmp.ne.s32.totalorder %s62, %s63
    %p74 = scmp.eq.s32.totalorder %s16, 0
    %p75 = por %p73, %p74
    %p76 = scmp.ne.s32.totalorder %s62, %s63
    %p77 = scmp.eq.s32.totalorder %s17, 1
    %p78 = por %p76, %p77
    %p80 = scmp.ne.s32.totalorder %s63, %s79
    %p81 = scmp.eq.s32.totalorder %s17, 0
    %p82 = por %p80, %p81
    %s83 = ssub.s32 %s18, %s30
    %s84 = ssub.s32 %s19, %s26
    %s85 = sor.u32 %s83, %s84
    %p86 = scmp.eq.s32.totalorder %s85, 0
    %s88 = sadd.s32 %s87, 1
    %s89 = scalar_select %p86, %s87, %s88
    %p92 = pneg %p86
    %p93 = scmp.eq.s32.totalorder %s11, 1
    %p94 = por %p92, %p93
    %p95 = scmp.ne.s32.totalorder %s87, %s90
    %p96 = scmp.eq.s32.totalorder %s11, 0
    %p97 = por %p95, %p96
    %p98 = scmp.ne.s32.totalorder %s87, %s90
    %p99 = scmp.eq.s32.totalorder %s16, 1
    %p100 = por %p98, %p99
    %p101 = scmp.ne.s32.totalorder %s90, %s91
    %p102 = scmp.eq.s32.totalorder %s16, 0
    %p103 = por %p101, %p102
    %p104 = scmp.ne.s32.totalorder %s90, %s91
    %p105 = scmp.eq.s32.totalorder %s17, 1
    %p106 = por %p104, %p105
    %p108 = scmp.ne.s32.totalorder %s91, %s107
    %p109 = scmp.eq.s32.totalorder %s17, 0
    %p110 = por %p108, %p109
    %s111 = ssub.s32 %s18, %s30
    %s112 = ssub.s32 %s19, %s26
    %s113 = sor.u32 %s111, %s112
    %p114 = scmp.eq.s32.totalorder %s113, 0
    %s116 = sadd.s32 %s115, 1
    %s117 = scalar_select %p114, %s115, %s116
    %p120 = pneg %p114
    %p121 = scmp.eq.s32.totalorder %s11, 1
    %p122 = por %p120, %p121
    %p123 = scmp.ne.s32.totalorder %s115, %s118
    %p124 = scmp.eq.s32.totalorder %s11, 0
    %p125 = por %p123, %p124
    %p126 = scmp.ne.s32.totalorder %s115, %s118
    %p127 = scmp.eq.s32.totalorder %s16, 1
    %p128 = por %p126, %p127
    %p129 = scmp.ne.s32.totalorder %s118, %s119
    %p130 = scmp.eq.s32.totalorder %s16, 0
    %p131 = por %p129, %p130
    %p132 = scmp.ne.s32.totalorder %s118, %s119
    %p133 = scmp.eq.s32.totalorder %s17, 1
    %p134 = por %p132, %p133
    %p136 = scmp.ne.s32.totalorder %s119, %s135
    %p137 = scmp.eq.s32.totalorder %s17, 0
    %p138 = por %p136, %p137
    %s139 = ssub.s32 %s18, %s30
    %s140 = ssub.s32 %s19, %s26
    %s141 = sor.u32 %s139, %s140
    %p142 = scmp.eq.s32.totalorder %s141, 0
    %s144 = sadd.s32 %s143, 1
    %s145 = scalar_select %p142, %s143, %s144
    %p148 = pneg %p142
    %p149 = scmp.eq.s32.totalorder %s11, 1
    %p150 = por %p148, %p149
    %p151 = scmp.ne.s32.totalorder %s143, %s146
    %p152 = scmp.eq.s32.totalorder %s11, 0
    %p153 = por %p151, %p152
    %p154 = scmp.ne.s32.totalorder %s143, %s146
    %p155 = scmp.eq.s32.totalorder %s16, 1
    %p156 = por %p154, %p155
    %p157 = scmp.ne.s32.totalorder %s146, %s147
    %p158 = scmp.eq.s32.totalorder %s16, 0
    %p159 = por %p157, %p158
    %p160 = scmp.ne.s32.totalorder %s146, %s147
    %p161 = scmp.eq.s32.totalorder %s17, 1
    %p162 = por %p160, %p161
    %p164 = scmp.ne.s32.totalorder %s147, %s163
    %p165 = scmp.eq.s32.totalorder %s17, 0
    %p166 = por %p164, %p165
    %p167 = scmp.le.s32.totalorder 1, %s11
    %p168 = scmp.lt.s32.totalorder %s11, 3
    %p169 = pnand %p167, %p168
    %p170 = pneg %p169
    // Predicated region
    $region9: #{discriminator_forward.8} parent=5 // pred_check
      _
    $region10: #{discriminator_forward.8} parent=5 // pred_check_branch
      %172 = sbr.rel (%p169) target = $region12
    $region11: #{discriminator_forward.8} parent=5 // pred_region
      %s173 = ssub.s32 %s11, 1
      // Predicated region
      $region13: #{discriminator_forward.8} parent=11 // pred_check
        %p174 = pneg %p75
      $region14: #{discriminator_forward.8} parent=11 // pred_check_branch
        %176 = sbr.rel (%p174) target = $region16
      $region15: #{discriminator_forward.8} parent=11 // pred_region
        %p177 = scmp.lt.s32.totalorder %s21, 0
        %s178 = scalar_select %p177, %s21, 0
        %s179 = smul.addr %s178, 4
        %s180 = scalar_lea.vmem %s1, %s179
      $region16: #{discriminator_forward.8} parent=11 // pred_fallthru
        _
    $region12: #{discriminator_forward.8} parent=5 // pred_fallthru
      _
    %p181 = scmp.lt.s32.totalorder %s11, 2
    // Predicated region
    $region17: #{discriminator_forward.8} parent=5 // pred_check
      %p182 = pneg %p181
    $region18: #{discriminator_forward.8} parent=5 // pred_check_branch
      %184 = sbr.rel (%p182) target = $region20
    $region19: #{discriminator_forward.8} parent=5 // pred_region
      // Predicated region
      $region21: #{discriminator_forward.8} parent=19 // pred_check
        %p185 = pneg %p43
      $region22: #{discriminator_forward.8} parent=19 // pred_check_branch
        %187 = sbr.rel (%p185) target = $region24
      $region23: #{discriminator_forward.8} parent=19 // pred_region
        %s188 = smul.u32 32, %s18
        %p189 = scmp.lt.s32.totalorder %s188, 63
        %s190 = scalar_select %p189, %s188, 63
        %s191 = smul.addr %s190, 4
        %s192 = scalar_lea.vmem %s0, %s191
        %s193 = smul.u32 32, %s18
      $region24: #{discriminator_forward.8} parent=19 // pred_fallthru
        _
    $region20: #{discriminator_forward.8} parent=5 // pred_fallthru
      _
    %p194 = scmp.le.s32.totalorder 1, %s11
    %p195 = scmp.lt.s32.totalorder %s11, 3
    %p196 = pnand %p194, %p195
    %p197 = pneg %p196
    // Predicated region
    $region25: #{discriminator_forward.8} parent=5 // pred_check
      _
    $region26: #{discriminator_forward.8} parent=5 // pred_check_branch
      %199 = sbr.rel (%p196) target = $region28
    $region27: #{discriminator_forward.8} parent=5 // pred_region
      %s200 = ssub.s32 %s11, 1
      %s201 = smul.u32 32, %s20
      %p202 = scmp.lt.s32.totalorder %s201, 63
      %s203 = scalar_select %p202, %s201, 63
      %s204 = smul.addr %s203, 4
      %s205 = scalar_lea.vmem %s0, %s204
      %p206 = pneg %p49
      %p207 = pneg %p46
      %p208 = scmp.lt.s32.totalorder %s21, 0
      %s209 = scalar_select %p208, %s21, 0
      %s210 = smul.addr %s209, 4
      %s211 = scalar_lea.vmem %s1, %s210
      %p212 = pneg %p75
      %p213 = pneg %p72
      %p214 = pneg %p103
      %p215 = pneg %p100
      %s216 = smul.u32 32, %s20
      %p217 = scmp.lt.s32.totalorder %s216, 63
      %s218 = scalar_select %p217, %s216, 63
      %p219 = scmp.lt.s32.totalorder %s21, 0
      %s220 = scalar_select %p219, %s21, 0
      %s221 = sadd.s32 %s220, %s218
      %s222 = smul.addr %s221, 4
      %s223 = scalar_lea.vmem %s2, %s222
      %p224 = pneg %p131
      %p225 = pneg %p128
      %p226 = scmp.lt.s32.totalorder %s20, 1
      %s227 = scalar_select %p226, %s20, 1
      %p228 = scmp.lt.s32.totalorder %s21, 0
      %s229 = scalar_select %p228, %s21, 0
      %s230 = sadd.s32 %s229, %s227
      %s231 = scalar_lea.vmem %s3, %s230
      %p232 = pneg %p159
      %p233 = pneg %p156
      %p234 = scmp.lt.s32.totalorder %s20, 1
      %s235 = scalar_select %p234, %s20, 1
      %p236 = scmp.lt.s32.totalorder %s21, 0
      %s237 = scalar_select %p236, %s21, 0
      %s238 = sadd.s32 %s237, %s235
      %s239 = scalar_lea.vmem %s4, %s238
      %s240 = smul.u32 32, %s20
      %p241 = scmp.lt.s32.totalorder %s240, 63
      %s242 = scalar_select %p241, %s240, 63
      %s243 = smul.addr %s242, 4
      %s244 = scalar_lea.vmem %s0, %s243
      %s245 = smul.u32 32, %s20
      %p246 = scmp.lt.s32.totalorder %s21, 0
      %s247 = scalar_select %p246, %s21, 0
      %s248 = smul.addr %s247, 4
      %s249 = scalar_lea.vmem %s1, %s248
      %s250 = smul.u32 32, %s20
      %p251 = scmp.lt.s32.totalorder %s250, 63
      %s252 = scalar_select %p251, %s250, 63
      %p253 = scmp.lt.s32.totalorder %s21, 0
      %s254 = scalar_select %p253, %s21, 0
      %s255 = sadd.s32 %s254, %s252
      %s256 = smul.addr %s255, 4
      %s257 = scalar_lea.vmem %s2, %s256
      %s258 = smul.u32 32, %s20
      %p259 = scmp.lt.s32.totalorder %s20, 1
      %s260 = scalar_select %p259, %s20, 1
      %p261 = scmp.lt.s32.totalorder %s21, 0
      %s262 = scalar_select %p261, %s21, 0
      %s263 = sadd.s32 %s262, %s260
      %s264 = scalar_lea.vmem %s3, %s263
      %p265 = scmp.lt.s32.totalorder %s20, 1
      %s266 = scalar_select %p265, %s20, 1
      %p267 = scmp.lt.s32.totalorder %s21, 0
      %s268 = scalar_select %p267, %s21, 0
      %s269 = sadd.s32 %s268, %s266
      %s270 = scalar_lea.vmem %s4, %s269
      %v272 = vld [vmem:[%s244] sm:$0xf]
      %v273 = vld [vmem:[%s244 + $0x4] sm:$0xf]
      %v274 = vld [vmem:[%s244 + $0x8] sm:$0xf]
      %v275 = vld [vmem:[%s244 + $0xc] sm:$0xf]
      %v276 = vld [vmem:[%s244 + $0x10] sm:$0xf]
      %v277 = vld [vmem:[%s244 + $0x14] sm:$0xf]
      %v278 = vld [vmem:[%s244 + $0x18] sm:$0xf]
      %v279 = vld [vmem:[%s244 + $0x1c] sm:$0xf]
      %v280 = vld [vmem:[%s244 + $0x20] sm:$0xf]
      %v281 = vld [vmem:[%s244 + $0x24] sm:$0xf]
      %v282 = vld [vmem:[%s244 + $0x28] sm:$0xf]
      %v283 = vld [vmem:[%s244 + $0x2c] sm:$0xf]
      %v284 = vld [vmem:[%s244 + $0x30] sm:$0xf]
      %v285 = vld [vmem:[%s244 + $0x34] sm:$0xf]
      %v286 = vld [vmem:[%s244 + $0x38] sm:$0xf]
      %v287 = vld [vmem:[%s244 + $0x3c] sm:$0xf]
      %v288 = vld [vmem:[%s244 + $0x40] sm:$0xf]
      %v289 = vld [vmem:[%s244 + $0x44] sm:$0xf]
      %v290 = vld [vmem:[%s244 + $0x48] sm:$0xf]
      %v291 = vld [vmem:[%s244 + $0x4c] sm:$0xf]
      %v292 = vld [vmem:[%s244 + $0x50] sm:$0xf]
      %v293 = vld [vmem:[%s244 + $0x54] sm:$0xf]
      %v294 = vld [vmem:[%s244 + $0x58] sm:$0xf]
      %v295 = vld [vmem:[%s244 + $0x5c] sm:$0xf]
      %v296 = vld [vmem:[%s244 + $0x60] sm:$0xf]
      %v297 = vld [vmem:[%s244 + $0x64] sm:$0xf]
      %v298 = vld [vmem:[%s244 + $0x68] sm:$0xf]
      %v299 = vld [vmem:[%s244 + $0x6c] sm:$0xf]
      %v300 = vld [vmem:[%s244 + $0x70] sm:$0xf]
      %v301 = vld [vmem:[%s244 + $0x74] sm:$0xf]
      %v302 = vld [vmem:[%s244 + $0x78] sm:$0xf]
      %v303 = vld [vmem:[%s244 + $0x7c] sm:$0xf]
      %v304 = vld [vmem:[%s249] sm:$0xf]
      %v305 = vld [vmem:[%s249 + $0x4] sm:$0xf]
      %v306 = vld [vmem:[%s249 + $0x8] sm:$0xf]
      %v307 = vld [vmem:[%s249 + $0xc] sm:$0xf]
      %v308 = vld [vmem:[%s249 + $0x10] sm:$0xf]
      %v309 = vld [vmem:[%s249 + $0x14] sm:$0xf]
      %v310 = vld [vmem:[%s249 + $0x18] sm:$0xf]
      %v311 = vld [vmem:[%s249 + $0x1c] sm:$0xf]
      %v312 = vld [vmem:[%s249 + $0x20] sm:$0xf]
      %v313 = vld [vmem:[%s249 + $0x24] sm:$0xf]
      %v314 = vld [vmem:[%s249 + $0x28] sm:$0xf]
      %v315 = vld [vmem:[%s249 + $0x2c] sm:$0xf]
      %v316 = vld [vmem:[%s249 + $0x30] sm:$0xf]
      %v317 = vld [vmem:[%s249 + $0x34] sm:$0xf]
      %v318 = vld [vmem:[%s249 + $0x38] sm:$0xf]
      %v319 = vld [vmem:[%s249 + $0x3c] sm:$0xf]
      %v352 = vunpack.c.l.b16 %v272
      %v353 = vunpack.c.l.b16 %v273
      %v354 = vunpack.c.l.b16 %v274
      %v355 = vunpack.c.l.b16 %v275
      %v356 = vunpack.c.l.b16 %v276
      %v357 = vunpack.c.l.b16 %v277
      %v358 = vunpack.c.l.b16 %v278
      %v359 = vunpack.c.l.b16 %v279
      %v360 = vunpack.c.l.b16 %v280
      %v361 = vunpack.c.l.b16 %v281
      %v362 = vunpack.c.l.b16 %v282
      %v363 = vunpack.c.l.b16 %v283
      %v364 = vunpack.c.l.b16 %v284
      %v365 = vunpack.c.l.b16 %v285
      %v366 = vunpack.c.l.b16 %v286
      %v367 = vunpack.c.l.b16 %v287
      %v368 = vunpack.c.l.b16 %v288
      %v369 = vunpack.c.l.b16 %v289
      %v370 = vunpack.c.l.b16 %v290
      %v371 = vunpack.c.l.b16 %v291
      %v372 = vunpack.c.l.b16 %v292
      %v373 = vunpack.c.l.b16 %v293
      %v374 = vunpack.c.l.b16 %v294
      %v375 = vunpack.c.l.b16 %v295
      %v376 = vunpack.c.l.b16 %v296
      %v377 = vunpack.c.l.b16 %v297
      %v378 = vunpack.c.l.b16 %v298
      %v379 = vunpack.c.l.b16 %v299
      %v380 = vunpack.c.l.b16 %v300
      %v381 = vunpack.c.l.b16 %v301
      %v382 = vunpack.c.l.b16 %v302
      %v383 = vunpack.c.l.b16 %v303
      %v384 = vpack.c.b16 %v353, %v352
      %v385 = vpack.c.b16 %v355, %v354
      %v386 = vpack.c.b16 %v357, %v356
      %v387 = vpack.c.b16 %v359, %v358
      %v388 = vpack.c.b16 %v361, %v360
      %v389 = vpack.c.b16 %v363, %v362
      %v390 = vpack.c.b16 %v365, %v364
      %v391 = vpack.c.b16 %v367, %v366
      %v392 = vpack.c.b16 %v369, %v368
      %v393 = vpack.c.b16 %v371, %v370
      %v394 = vpack.c.b16 %v373, %v372
      %v395 = vpack.c.b16 %v375, %v374
      %v396 = vpack.c.b16 %v377, %v376
      %v397 = vpack.c.b16 %v379, %v378
      %v398 = vpack.c.b16 %v381, %v380
      %v399 = vpack.c.b16 %v383, %v382
      %v432 = vunpack.c.l.b16 %v304
      %v433 = vunpack.c.l.b16 %v305
      %v434 = vunpack.c.l.b16 %v306
      %v435 = vunpack.c.l.b16 %v307
      %v436 = vunpack.c.l.b16 %v308
      %v437 = vunpack.c.l.b16 %v309
      %v438 = vunpack.c.l.b16 %v310
      %v439 = vunpack.c.l.b16 %v311
      %v440 = vunpack.c.l.b16 %v312
      %v441 = vunpack.c.l.b16 %v313
      %v442 = vunpack.c.l.b16 %v314
      %v443 = vunpack.c.l.b16 %v315
      %v444 = vunpack.c.l.b16 %v316
      %v445 = vunpack.c.l.b16 %v317
      %v446 = vunpack.c.l.b16 %v318
      %v447 = vunpack.c.l.b16 %v319
      %v448 = vpack.c.b16 %v433, %v432
      %v449 = vpack.c.b16 %v435, %v434
      %v450 = vpack.c.b16 %v437, %v436
      %v451 = vpack.c.b16 %v439, %v438
      %v452 = vpack.c.b16 %v441, %v440
      %v453 = vpack.c.b16 %v443, %v442
      %v454 = vpack.c.b16 %v445, %v444
      %v455 = vpack.c.b16 %v447, %v446
      %464 = vmatprep.subr.bf16.mxu0 0
      %465 = vmatpush1.bf16.msra.mxu0 %v448
      %466 = vmatprep.subr.bf16.mxu0 0
      %467 = vmatpush1.bf16.msra.mxu0 %v449
      %468 = vmatprep.subr.bf16.mxu0 0
      %469 = vmatpush1.bf16.msra.mxu0 %v450
      %470 = vmatprep.subr.bf16.mxu0 0
      %471 = vmatpush1.bf16.msra.mxu0 %v451
      %472 = vmatprep.subr.bf16.mxu0 0
      %473 = vmatpush1.bf16.msra.mxu0 %v452
      %474 = vmatprep.subr.bf16.mxu0 0
      %475 = vmatpush1.bf16.msra.mxu0 %v453
      %476 = vmatprep.subr.bf16.mxu0 0
      %477 = vmatpush1.bf16.msra.mxu0 %v454
      %478 = vmatprep.subr.bf16.mxu0 0
      %479 = vmatpush1.bf16.msra.mxu0 %v455
      %480 = vmatprep.subr.bf16.mxu0 0
      %481 = vmatpush1.bf16.msra.mxu0 0
      %482 = vmatprep.subr.bf16.mxu0 0
      %483 = vmatpush1.bf16.msra.mxu0 0
      %484 = vmatprep.subr.bf16.mxu0 0
      %485 = vmatpush1.bf16.msra.mxu0 0
      %486 = vmatprep.subr.bf16.mxu0 0
      %487 = vmatpush1.bf16.msra.mxu0 0
      %488 = vmatprep.subr.bf16.mxu0 0
      %489 = vmatpush1.bf16.msra.mxu0 0
      %490 = vmatprep.subr.bf16.mxu0 0
      %491 = vmatpush1.bf16.msra.mxu0 0
      %492 = vmatprep.subr.bf16.mxu0 0
      %493 = vmatpush1.bf16.msra.mxu0 0
      %494 = vmatprep.subr.bf16.mxu0 0
      %495 = vmatpush1.bf16.msra.mxu0 0
      %496 = vmatprep.mubr.bf16.mxu0 0
      %497 = vmatmul.mubr.bf16.gmra.mrb[0].mxu0 %v384
      %v498 = vpop.f32.mrb[0].mxu0
      %v499 = vadd.f32 0.0, %v498
      %v500 = vpop.f32.mrb[0].mxu0
      %v501 = vpop.f32.mrb[0].mxu0
      %v502 = vadd.f32 0.0, %v501
      %v503 = vpop.f32.mrb[0].mxu0
      %504 = vmatprep.mubr.bf16.mxu0 0
      %505 = vmatmul.mubr.bf16.gmra.mrb[0].mxu0 %v385
      %v506 = vpop.f32.mrb[0].mxu0
      %v507 = vadd.f32 0.0, %v506
      %v508 = vpop.f32.mrb[0].mxu0
      %v509 = vpop.f32.mrb[0].mxu0
      %v510 = vadd.f32 0.0, %v509
      %v511 = vpop.f32.mrb[0].mxu0
      %512 = vmatprep.mubr.bf16.mxu0 0
      %513 = vmatmul.mubr.bf16.gmra.mrb[0].mxu0 %v386
      %v514 = vpop.f32.mrb[0].mxu0
      %v515 = vadd.f32 0.0, %v514
      %v516 = vpop.f32.mrb[0].mxu0
      %v517 = vpop.f32.mrb[0].mxu0
      %v518 = vadd.f32 0.0, %v517
      %v519 = vpop.f32.mrb[0].mxu0
      %520 = vmatprep.mubr.bf16.mxu0 0
      %521 = vmatmul.mubr.bf16.gmra.mrb[0].mxu0 %v387
      %v522 = vpop.f32.mrb[0].mxu0
      %v523 = vadd.f32 0.0, %v522
      %v524 = vpop.f32.mrb[0].mxu0
      %v525 = vpop.f32.mrb[0].mxu0
      %v526 = vadd.f32 0.0, %v525
      %v527 = vpop.f32.mrb[0].mxu0
      %528 = vmatprep.mubr.bf16.mxu0 0
      %529 = vmatmul.mubr.bf16.gmra.mrb[0].mxu0 %v388
      %v530 = vpop.f32.mrb[0].mxu0
      %v531 = vadd.f32 0.0, %v530
      %v532 = vpop.f32.mrb[0].mxu0
      %v533 = vpop.f32.mrb[0].mxu0
      %v534 = vadd.f32 0.0, %v533
      %v535 = vpop.f32.mrb[0].mxu0
      %536 = vmatprep.mubr.bf16.mxu0 0
      %537 = vmatmul.mubr.bf16.gmra.mrb[0].mxu0 %v389
      %v538 = vpop.f32.mrb[0].mxu0
      %v539 = vadd.f32 0.0, %v538
      %v540 = vpop.f32.mrb[0].mxu0
      %v541 = vpop.f32.mrb[0].mxu0
      %v542 = vadd.f32 0.0, %v541
      %v543 = vpop.f32.mrb[0].mxu0
      %544 = vmatprep.mubr.bf16.mxu0 0
      %545 = vmatmul.mubr.bf16.gmra.mrb[0].mxu0 %v390
      %v546 = vpop.f32.mrb[0].mxu0
      %v547 = vadd.f32 0.0, %v546
      %v548 = vpop.f32.mrb[0].mxu0
      %v549 = vpop.f32.mrb[0].mxu0
      %v550 = vadd.f32 0.0, %v549
      %v551 = vpop.f32.mrb[0].mxu0
      %552 = vmatprep.mubr.bf16.mxu0 0
      %553 = vmatmul.mubr.bf16.gmra.mrb[0].mxu0 %v391
      %v554 = vpop.f32.mrb[0].mxu0
      %v555 = vadd.f32 0.0, %v554
      %v556 = vpop.f32.mrb[0].mxu0
      %v557 = vpop.f32.mrb[0].mxu0
      %v558 = vadd.f32 0.0, %v557
      %v559 = vpop.f32.mrb[0].mxu0
      %560 = vmatprep.mubr.bf16.mxu0 0
      %561 = vmatmul.mubr.bf16.gmra.mrb[0].mxu0 %v392
      %v562 = vpop.f32.mrb[0].mxu0
      %v563 = vadd.f32 0.0, %v562
      %v564 = vpop.f32.mrb[0].mxu0
      %v565 = vpop.f32.mrb[0].mxu0
      %v566 = vadd.f32 0.0, %v565
      %v567 = vpop.f32.mrb[0].mxu0
      %568 = vmatprep.mubr.bf16.mxu0 0
      %569 = vmatmul.mubr.bf16.gmra.mrb[0].mxu0 %v393
      %v570 = vpop.f32.mrb[0].mxu0
      %v571 = vadd.f32 0.0, %v570
      %v572 = vpop.f32.mrb[0].mxu0
      %v573 = vpop.f32.mrb[0].mxu0
      %v574 = vadd.f32 0.0, %v573
      %v575 = vpop.f32.mrb[0].mxu0
      %576 = vmatprep.mubr.bf16.mxu0 0
      %577 = vmatmul.mubr.bf16.gmra.mrb[0].mxu0 %v394
      %v578 = vpop.f32.mrb[0].mxu0
      %v579 = vadd.f32 0.0, %v578
      %v580 = vpop.f32.mrb[0].mxu0
      %v581 = vpop.f32.mrb[0].mxu0
      %v582 = vadd.f32 0.0, %v581
      %v583 = vpop.f32.mrb[0].mxu0
      %584 = vmatprep.mubr.bf16.mxu0 0
      %585 = vmatmul.mubr.bf16.gmra.mrb[0].mxu0 %v395
      %v586 = vpop.f32.mrb[0].mxu0
      %v587 = vadd.f32 0.0, %v586
      %v588 = vpop.f32.mrb[0].mxu0
      %v589 = vpop.f32.mrb[0].mxu0
      %v590 = vadd.f32 0.0, %v589
      %v591 = vpop.f32.mrb[0].mxu0
      %592 = vmatprep.mubr.bf16.mxu0 0
      %593 = vmatmul.mubr.bf16.gmra.mrb[0].mxu0 %v396
      %v594 = vpop.f32.mrb[0].mxu0
      %v595 = vadd.f32 0.0, %v594
      %v596 = vpop.f32.mrb[0].mxu0
      %v597 = vpop.f32.mrb[0].mxu0
      %v598 = vadd.f32 0.0, %v597
      %v599 = vpop.f32.mrb[0].mxu0
      %600 = vmatprep.mubr.bf16.mxu0 0
      %601 = vmatmul.mubr.bf16.gmra.mrb[0].mxu0 %v397
      %v602 = vpop.f32.mrb[0].mxu0
      %v603 = vadd.f32 0.0, %v602
      %v604 = vpop.f32.mrb[0].mxu0
      %v605 = vpop.f32.mrb[0].mxu0
      %v606 = vadd.f32 0.0, %v605
      %v607 = vpop.f32.mrb[0].mxu0
      %608 = vmatprep.mubr.bf16.mxu0 0
      %609 = vmatmul.mubr.bf16.gmra.mrb[0].mxu0 %v398
      %v610 = vpop.f32.mrb[0].mxu0
      %v611 = vadd.f32 0.0, %v610
      %v612 = vpop.f32.mrb[0].mxu0
      %v613 = vpop.f32.mrb[0].mxu0
      %v614 = vadd.f32 0.0, %v613
      %v615 = vpop.f32.mrb[0].mxu0
      %616 = vmatprep.mubr.bf16.mxu0 0
      %617 = vmatmul.mubr.bf16.gmra.mrb[0].mxu0 %v399
      %v618 = vpop.f32.mrb[0].mxu0
      %v619 = vadd.f32 0.0, %v618
      %v620 = vpop.f32.mrb[0].mxu0
      %v621 = vpop.f32.mrb[0].mxu0
      %v622 = vadd.f32 0.0, %v621
      %v623 = vpop.f32.mrb[0].mxu0
      %624 = vdwg.mxu0
      %v625 = vpack.c.bf16 %v502, %v499
      %v626 = vpack.c.bf16 %v510, %v507
      %v627 = vpack.c.bf16 %v518, %v515
      %v628 = vpack.c.bf16 %v526, %v523
      %v629 = vpack.c.bf16 %v534, %v531
      %v630 = vpack.c.bf16 %v542, %v539
      %v631 = vpack.c.bf16 %v550, %v547
      %v632 = vpack.c.bf16 %v558, %v555
      %v633 = vpack.c.bf16 %v566, %v563
      %v634 = vpack.c.bf16 %v574, %v571
      %v635 = vpack.c.bf16 %v582, %v579
      %v636 = vpack.c.bf16 %v590, %v587
      %v637 = vpack.c.bf16 %v598, %v595
      %v638 = vpack.c.bf16 %v606, %v603
      %v639 = vpack.c.bf16 %v614, %v611
      %v640 = vpack.c.bf16 %v622, %v619
      %v657 = vunpack.c.l.b16 %v625
      %v658 = vunpack.c.h.b16 %v625
      %v659 = vunpack.c.l.b16 %v626
      %v660 = vunpack.c.h.b16 %v626
      %v661 = vunpack.c.l.b16 %v627
      %v662 = vunpack.c.h.b16 %v627
      %v663 = vunpack.c.l.b16 %v628
      %v664 = vunpack.c.h.b16 %v628
      %v665 = vunpack.c.l.b16 %v629
      %v666 = vunpack.c.h.b16 %v629
      %v667 = vunpack.c.l.b16 %v630
      %v668 = vunpack.c.h.b16 %v630
      %v669 = vunpack.c.l.b16 %v631
      %v670 = vunpack.c.h.b16 %v631
      %v671 = vunpack.c.l.b16 %v632
      %v672 = vunpack.c.h.b16 %v632
      %v673 = vunpack.c.l.b16 %v633
      %v674 = vunpack.c.h.b16 %v633
      %v675 = vunpack.c.l.b16 %v634
      %v676 = vunpack.c.h.b16 %v634
      %v677 = vunpack.c.l.b16 %v635
      %v678 = vunpack.c.h.b16 %v635
      %v679 = vunpack.c.l.b16 %v636
      %v680 = vunpack.c.h.b16 %v636
      %v681 = vunpack.c.l.b16 %v637
      %v682 = vunpack.c.h.b16 %v637
      %v683 = vunpack.c.l.b16 %v638
      %v684 = vunpack.c.h.b16 %v638
      %v685 = vunpack.c.l.b16 %v639
      %v686 = vunpack.c.h.b16 %v639
      %v687 = vunpack.c.l.b16 %v640
      %v688 = vunpack.c.h.b16 %v640
      %v689 = vpack.c.b16 %v657, %v657
      %v690 = vpack.c.b16 %v658, %v658
      %v691 = vpack.c.b16 %v659, %v659
      %v692 = vpack.c.b16 %v660, %v660
      %v693 = vpack.c.b16 %v661, %v661
      %v694 = vpack.c.b16 %v662, %v662
      %v695 = vpack.c.b16 %v663, %v663
      %v696 = vpack.c.b16 %v664, %v664
      %v697 = vpack.c.b16 %v665, %v665
      %v698 = vpack.c.b16 %v666, %v666
      %v699 = vpack.c.b16 %v667, %v667
      %v700 = vpack.c.b16 %v668, %v668
      %v701 = vpack.c.b16 %v669, %v669
      %v702 = vpack.c.b16 %v670, %v670
      %v703 = vpack.c.b16 %v671, %v671
      %v704 = vpack.c.b16 %v672, %v672
      %v705 = vpack.c.b16 %v673, %v673
      %v706 = vpack.c.b16 %v674, %v674
      %v707 = vpack.c.b16 %v675, %v675
      %v708 = vpack.c.b16 %v676, %v676
      %v709 = vpack.c.b16 %v677, %v677
      %v710 = vpack.c.b16 %v678, %v678
      %v711 = vpack.c.b16 %v679, %v679
      %v712 = vpack.c.b16 %v680, %v680
      %v713 = vpack.c.b16 %v681, %v681
      %v714 = vpack.c.b16 %v682, %v682
      %v715 = vpack.c.b16 %v683, %v683
      %v716 = vpack.c.b16 %v684, %v684
      %v717 = vpack.c.b16 %v685, %v685
      %v718 = vpack.c.b16 %v686, %v686
      %v719 = vpack.c.b16 %v687, %v687
      %v720 = vpack.c.b16 %v688, %v688
      %753 = vst [vmem:[%s257] sm:$0xf] %v689
      %754 = vst [vmem:[%s257 + $0x4] sm:$0xf] %v690
      %755 = vst [vmem:[%s257 + $0x8] sm:$0xf] %v691
      %756 = vst [vmem:[%s257 + $0xc] sm:$0xf] %v692
      %757 = vst [vmem:[%s257 + $0x10] sm:$0xf] %v693
      %758 = vst [vmem:[%s257 + $0x14] sm:$0xf] %v694
      %759 = vst [vmem:[%s257 + $0x18] sm:$0xf] %v695
      %760 = vst [vmem:[%s257 + $0x1c] sm:$0xf] %v696
      %761 = vst [vmem:[%s257 + $0x20] sm:$0xf] %v697
      %762 = vst [vmem:[%s257 + $0x24] sm:$0xf] %v698
      %763 = vst [vmem:[%s257 + $0x28] sm:$0xf] %v699
      %764 = vst [vmem:[%s257 + $0x2c] sm:$0xf] %v700
      %765 = vst [vmem:[%s257 + $0x30] sm:$0xf] %v701
      %766 = vst [vmem:[%s257 + $0x34] sm:$0xf] %v702
      %767 = vst [vmem:[%s257 + $0x38] sm:$0xf] %v703
      %768 = vst [vmem:[%s257 + $0x3c] sm:$0xf] %v704
      %769 = vst [vmem:[%s257 + $0x40] sm:$0xf] %v705
      %770 = vst [vmem:[%s257 + $0x44] sm:$0xf] %v706
      %771 = vst [vmem:[%s257 + $0x48] sm:$0xf] %v707
      %772 = vst [vmem:[%s257 + $0x4c] sm:$0xf] %v708
      %773 = vst [vmem:[%s257 + $0x50] sm:$0xf] %v709
      %774 = vst [vmem:[%s257 + $0x54] sm:$0xf] %v710
      %775 = vst [vmem:[%s257 + $0x58] sm:$0xf] %v711
      %776 = vst [vmem:[%s257 + $0x5c] sm:$0xf] %v712
      %777 = vst [vmem:[%s257 + $0x60] sm:$0xf] %v713
      %778 = vst [vmem:[%s257 + $0x64] sm:$0xf] %v714
      %779 = vst [vmem:[%s257 + $0x68] sm:$0xf] %v715
      %780 = vst [vmem:[%s257 + $0x6c] sm:$0xf] %v716
      %781 = vst [vmem:[%s257 + $0x70] sm:$0xf] %v717
      %782 = vst [vmem:[%s257 + $0x74] sm:$0xf] %v718
      %783 = vst [vmem:[%s257 + $0x78] sm:$0xf] %v719
      %784 = vst [vmem:[%s257 + $0x7c] sm:$0xf] %v720
      %v785 = vadd.f32 %v499, %v502
      %v786 = vadd.f32 %v785, %v507
      %v787 = vadd.f32 %v786, %v510
      %v788 = vadd.f32 %v787, %v515
      %v789 = vadd.f32 %v788, %v518
      %v790 = vadd.f32 %v789, %v523
      %v791 = vadd.f32 %v790, %v526
      %v792 = vadd.f32 %v791, %v531
      %v793 = vadd.f32 %v792, %v534
      %v794 = vadd.f32 %v793, %v539
      %v795 = vadd.f32 %v794, %v542
      %v796 = vadd.f32 %v795, %v547
      %v797 = vadd.f32 %v796, %v550
      %v798 = vadd.f32 %v797, %v555
      %v799 = vadd.f32 %v798, %v558
      %v800 = vadd.f32 %v799, %v563
      %v801 = vadd.f32 %v800, %v566
      %v802 = vadd.f32 %v801, %v571
      %v803 = vadd.f32 %v802, %v574
      %v804 = vadd.f32 %v803, %v579
      %v805 = vadd.f32 %v804, %v582
      %v806 = vadd.f32 %v805, %v587
      %v807 = vadd.f32 %v806, %v590
      %v808 = vadd.f32 %v807, %v595
      %v809 = vadd.f32 %v808, %v598
      %v810 = vadd.f32 %v809, %v603
      %v811 = vadd.f32 %v810, %v606
      %v812 = vadd.f32 %v811, %v611
      %v813 = vadd.f32 %v812, %v614
      %v814 = vadd.f32 %v813, %v619
      %v815 = vadd.f32 %v814, %v622
      %v816 = vrot.slane %v815, 4
      %v817 = vadd.f32 %v815, %v816
      %v818 = vrot.slane %v817, 2
      %v819 = vadd.f32 %v817, %v818
      %v820 = vrot.slane %v819, 1
      %v821 = vadd.f32 %v819, %v820
      %822 = vst [vmem:[%s264] sm:$0x1] %v821
      %v823 = vmul.f32 %v499, %v499
      %v824 = vmul.f32 %v502, %v502
      %v825 = vmul.f32 %v507, %v507
      %v826 = vmul.f32 %v510, %v510
      %v827 = vmul.f32 %v515, %v515
      %v828 = vmul.f32 %v518, %v518
      %v829 = vmul.f32 %v523, %v523
      %v830 = vmul.f32 %v526, %v526
      %v831 = vmul.f32 %v531, %v531
      %v832 = vmul.f32 %v534, %v534
      %v833 = vmul.f32 %v539, %v539
      %v834 = vmul.f32 %v542, %v542
      %v835 = vmul.f32 %v547, %v547
      %v836 = vmul.f32 %v550, %v550
      %v837 = vmul.f32 %v555, %v555
      %v838 = vmul.f32 %v558, %v558
      %v839 = vmul.f32 %v563, %v563
      %v840 = vmul.f32 %v566, %v566
      %v841 = vmul.f32 %v571, %v571
      %v842 = vmul.f32 %v574, %v574
      %v843 = vmul.f32 %v579, %v579
      %v844 = vmul.f32 %v582, %v582
      %v845 = vmul.f32 %v587, %v587
      %v846 = vmul.f32 %v590, %v590
      %v847 = vmul.f32 %v595, %v595
      %v848 = vmul.f32 %v598, %v598
      %v849 = vmul.f32 %v603, %v603
      %v850 = vmul.f32 %v606, %v606
      %v851 = vmul.f32 %v611, %v611
      %v852 = vmul.f32 %v614, %v614
      %v853 = vmul.f32 %v619, %v619
      %v854 = vmul.f32 %v622, %v622
      %v855 = vadd.f32 %v823, %v824
      %v856 = vadd.f32 %v855, %v825
      %v857 = vadd.f32 %v856, %v826
      %v858 = vadd.f32 %v857, %v827
      %v859 = vadd.f32 %v858, %v828
      %v860 = vadd.f32 %v859, %v829
      %v861 = vadd.f32 %v860, %v830
      %v862 = vadd.f32 %v861, %v831
      %v863 = vadd.f32 %v862, %v832
      %v864 = vadd.f32 %v863, %v833
      %v865 = vadd.f32 %v864, %v834
      %v866 = vadd.f32 %v865, %v835
      %v867 = vadd.f32 %v866, %v836
      %v868 = vadd.f32 %v867, %v837
      %v869 = vadd.f32 %v868, %v838
      %v870 = vadd.f32 %v869, %v839
      %v871 = vadd.f32 %v870, %v840
      %v872 = vadd.f32 %v871, %v841
      %v873 = vadd.f32 %v872, %v842
      %v874 = vadd.f32 %v873, %v843
      %v875 = vadd.f32 %v874, %v844
      %v876 = vadd.f32 %v875, %v845
      %v877 = vadd.f32 %v876, %v846
      %v878 = vadd.f32 %v877, %v847
      %v879 = vadd.f32 %v878, %v848
      %v880 = vadd.f32 %v879, %v849
      %v881 = vadd.f32 %v880, %v850
      %v882 = vadd.f32 %v881, %v851
      %v883 = vadd.f32 %v882, %v852
      %v884 = vadd.f32 %v883, %v853
      %v885 = vadd.f32 %v884, %v854
      %v886 = vrot.slane %v885, 4
      %v887 = vadd.f32 %v885, %v886
      %v888 = vrot.slane %v887, 2
      %v889 = vadd.f32 %v887, %v888
      %v890 = vrot.slane %v889, 1
      %v891 = vadd.f32 %v889, %v890
      %892 = vst [vmem:[%s270] sm:$0x1] %v891
      %s893 = smul.u32 32, %s20
      %p894 = scmp.lt.s32.totalorder %s893, 63
      %s895 = scalar_select %p894, %s893, 63
      %p896 = scmp.lt.s32.totalorder %s21, 0
      %s897 = scalar_select %p896, %s21, 0
      %s898 = sadd.s32 %s897, %s895
      %s899 = smul.addr %s898, 4
      %s900 = scalar_lea.vmem %s2, %s899
      %p901 = scmp.lt.s32.totalorder %s20, 1
      %s902 = scalar_select %p901, %s20, 1
      %p903 = scmp.lt.s32.totalorder %s21, 0
      %s904 = scalar_select %p903, %s21, 0
      %s905 = sadd.s32 %s904, %s902
      %s906 = scalar_lea.vmem %s3, %s905
      %p907 = scmp.lt.s32.totalorder %s20, 1
      %s908 = scalar_select %p907, %s20, 1
      %p909 = scmp.lt.s32.totalorder %s21, 0
      %s910 = scalar_select %p909, %s21, 0
      %s911 = sadd.s32 %s910, %s908
      %s912 = scalar_lea.vmem %s4, %s911
      // Predicated region
      $region29: #{discriminator_forward.8} parent=27 // pred_check
        %p913 = pneg %p100
      $region30: #{discriminator_forward.8} parent=27 // pred_check_branch
        %915 = sbr.rel (%p913) target = $region32
      $region31: #{discriminator_forward.8} parent=27 // pred_region
        %s916 = smul.u32 32, %s20
      $region32: #{discriminator_forward.8} parent=27 // pred_fallthru
        _
      // Predicated region
      $region33: #{discriminator_forward.8} parent=27 // pred_check
        %p917 = pneg %p128
      $region34: #{discriminator_forward.8} parent=27 // pred_check_branch
        %919 = sbr.rel (%p917) target = $region36
      $region35: #{discriminator_forward.8} parent=27 // pred_region
        _
      $region36: #{discriminator_forward.8} parent=27 // pred_fallthru
        _
      // Predicated region
      $region37: #{discriminator_forward.8} parent=27 // pred_check
        %p920 = pneg %p156
      $region38: #{discriminator_forward.8} parent=27 // pred_check_branch
        %922 = sbr.rel (%p920) target = $region40
      $region39: #{discriminator_forward.8} parent=27 // pred_region
        _
      $region40: #{discriminator_forward.8} parent=27 // pred_fallthru
        _
    $region28: #{discriminator_forward.8} parent=5 // pred_fallthru
      _
    %p923 = scmp.le.s32.totalorder 2, %s11
    // Predicated region
    $region41: #{discriminator_forward.8} parent=5 // pred_check
      %p924 = pneg %p923
    $region42: #{discriminator_forward.8} parent=5 // pred_check_branch
      %926 = sbr.rel (%p924) target = $region44
    $region43: #{discriminator_forward.8} parent=5 // pred_region
      %s927 = ssub.s32 %s11, 2
      // Predicated region
      $region45: #{discriminator_forward.8} parent=43 // pred_check
        %p928 = pneg %p106
      $region46: #{discriminator_forward.8} parent=43 // pred_check_branch
        %930 = sbr.rel (%p928) target = $region48
      $region47: #{discriminator_forward.8} parent=43 // pred_region
        %s931 = smul.u32 32, %s22
        %p932 = scmp.lt.s32.totalorder %s931, 63
        %s933 = scalar_select %p932, %s931, 63
        %p934 = scmp.lt.s32.totalorder %s23, 0
        %s935 = scalar_select %p934, %s23, 0
        %s936 = sadd.s32 %s935, %s933
        %s937 = smul.addr %s936, 4
        %s938 = scalar_lea.vmem %s2, %s937
      $region48: #{discriminator_forward.8} parent=43 // pred_fallthru
        _
      // Predicated region
      $region49: #{discriminator_forward.8} parent=43 // pred_check
        %p939 = pneg %p134
      $region50: #{discriminator_forward.8} parent=43 // pred_check_branch
        %941 = sbr.rel (%p939) target = $region52
      $region51: #{discriminator_forward.8} parent=43 // pred_region
        %p942 = scmp.lt.s32.totalorder %s22, 1
        %s943 = scalar_select %p942, %s22, 1
        %p944 = scmp.lt.s32.totalorder %s23, 0
        %s945 = scalar_select %p944, %s23, 0
        %s946 = sadd.s32 %s945, %s943
        %s947 = scalar_lea.vmem %s3, %s946
      $region52: #{discriminator_forward.8} parent=43 // pred_fallthru
        _
      // Predicated region
      $region53: #{discriminator_forward.8} parent=43 // pred_check
        %p948 = pneg %p162
      $region54: #{discriminator_forward.8} parent=43 // pred_check_branch
        %950 = sbr.rel (%p948) target = $region56
      $region55: #{discriminator_forward.8} parent=43 // pred_region
        %p951 = scmp.lt.s32.totalorder %s22, 1
        %s952 = scalar_select %p951, %s22, 1
        %p953 = scmp.lt.s32.totalorder %s23, 0
        %s954 = scalar_select %p953, %s23, 0
        %s955 = sadd.s32 %s954, %s952
        %s956 = scalar_lea.vmem %s4, %s955
      $region56: #{discriminator_forward.8} parent=43 // pred_fallthru
        _
    $region44: #{discriminator_forward.8} parent=5 // pred_fallthru
      _
  $region6: #{discriminator_forward.8} parent=0 // loop_footer
    %s15 = sadd.s32 1, %s11
  $region7: #{discriminator_forward.8} parent=0 // loop_footer_branch
    %10 = sbr.rel target = $region3
  $region8: #{discriminator_forward.8} parent=0 // loop_exit
    _

// kernel: discriminator_forward.10
$region0: #{discriminator_forward.10}
  #allocation0 [shape = 'u32[]', space=smem, size = 0x4, offset = 0x4, fixed_abs, tag = 'smem constant byte address 0x4 - core index']
  #allocation1 [shape = 'u32[144,128]{1,0:T(1,128)}', space=vmem, size = 0x12000, scoped, tag = 'internal scratch']
  %s0 = inlined_call_operand.vmem [shape: bf16[128,256], index: 0, kind: input, shape index: {}]
  %s1 = inlined_call_operand.vmem [shape: bf16[256,128], index: 1, kind: input, shape index: {}]
  %s2 = inlined_call_operand.vmem [shape: bf16[128,128], index: 2, kind: output, shape index: {0}]
  %s3 = inlined_call_operand.vmem [shape: f32[1,1,128], index: 3, kind: output, shape index: {1}]
  %s4 = inlined_call_operand.vmem [shape: f32[1,1,128], index: 4, kind: output, shape index: {2}]
  %5 = xla_tuple %s2, %s3, %s4
  %s6 = sld [smem:[#allocation0]]
  $region34: #{discriminator_forward.10} parent=0
    _
  %s8 = ssub.s32 1, %s6
  %s9 = scalar_select 0, %s8, %s6
  // Predicated region
  $region2: #{discriminator_forward.10} parent=0 // pred_check
    _
  $region3: #{discriminator_forward.10} parent=0 // pred_check_branch
    %11 = sbr.rel (0) target = $region5
  $region4: #{discriminator_forward.10} parent=0 // pred_region
    _
  $region5: #{discriminator_forward.10} parent=0 // pred_fallthru
    _
  // Predicated region
  $region6: #{discriminator_forward.10} parent=0 // pred_check
    _
  $region7: #{discriminator_forward.10} parent=0 // pred_check_branch
    %13 = sbr.rel (0) target = $region9
  $region8: #{discriminator_forward.10} parent=0 // pred_region
    _
  $region9: #{discriminator_forward.10} parent=0 // pred_fallthru
    _
  %v15 = vld [vmem:[%s0] sm:$0xff]
  %v16 = vld [vmem:[%s0 + $0x8] sm:$0xff]
  %v17 = vld [vmem:[%s0 + $0x10] sm:$0xff]
  %v18 = vld [vmem:[%s0 + $0x18] sm:$0xff]
  %v19 = vld [vmem:[%s0 + $0x20] sm:$0xff]
  %v20 = vld [vmem:[%s0 + $0x28] sm:$0xff]
  %v21 = vld [vmem:[%s0 + $0x30] sm:$0xff]
  %v22 = vld [vmem:[%s0 + $0x38] sm:$0xff]
  %v23 = vld [vmem:[%s0 + $0x40] sm:$0xff]
  %v24 = vld [vmem:[%s0 + $0x48] sm:$0xff]
  %v25 = vld [vmem:[%s0 + $0x50] sm:$0xff]
  %v26 = vld [vmem:[%s0 + $0x58] sm:$0xff]
  %v27 = vld [vmem:[%s0 + $0x60] sm:$0xff]
  %v28 = vld [vmem:[%s0 + $0x68] sm:$0xff]
  %v29 = vld [vmem:[%s0 + $0x70] sm:$0xff]
  %v30 = vld [vmem:[%s0 + $0x78] sm:$0xff]
  %v31 = vld [vmem:[%s1] sm:$0xf]
  %v32 = vld [vmem:[%s1 + $0x4] sm:$0xf]
  %v33 = vld [vmem:[%s1 + $0x8] sm:$0xf]
  %v34 = vld [vmem:[%s1 + $0xc] sm:$0xf]
  %v35 = vld [vmem:[%s1 + $0x10] sm:$0xf]
  %v36 = vld [vmem:[%s1 + $0x14] sm:$0xf]
  %v37 = vld [vmem:[%s1 + $0x18] sm:$0xf]
  %v38 = vld [vmem:[%s1 + $0x1c] sm:$0xf]
  %v39 = vld [vmem:[%s1 + $0x20] sm:$0xf]
  %v40 = vld [vmem:[%s1 + $0x24] sm:$0xf]
  %v41 = vld [vmem:[%s1 + $0x28] sm:$0xf]
  %v42 = vld [vmem:[%s1 + $0x2c] sm:$0xf]
  %v43 = vld [vmem:[%s1 + $0x30] sm:$0xf]
  %v44 = vld [vmem:[%s1 + $0x34] sm:$0xf]
  %v45 = vld [vmem:[%s1 + $0x38] sm:$0xf]
  %v46 = vld [vmem:[%s1 + $0x3c] sm:$0xf]
  %v47 = vld [vmem:[%s1 + $0x40] sm:$0xf]
  %v48 = vld [vmem:[%s1 + $0x44] sm:$0xf]
  %v49 = vld [vmem:[%s1 + $0x48] sm:$0xf]
  %v50 = vld [vmem:[%s1 + $0x4c] sm:$0xf]
  %v51 = vld [vmem:[%s1 + $0x50] sm:$0xf]
  %v52 = vld [vmem:[%s1 + $0x54] sm:$0xf]
  %v53 = vld [vmem:[%s1 + $0x58] sm:$0xf]
  %v54 = vld [vmem:[%s1 + $0x5c] sm:$0xf]
  %v55 = vld [vmem:[%s1 + $0x60] sm:$0xf]
  %v56 = vld [vmem:[%s1 + $0x64] sm:$0xf]
  %v57 = vld [vmem:[%s1 + $0x68] sm:$0xf]
  %v58 = vld [vmem:[%s1 + $0x6c] sm:$0xf]
  %v59 = vld [vmem:[%s1 + $0x70] sm:$0xf]
  %v60 = vld [vmem:[%s1 + $0x74] sm:$0xf]
  %v61 = vld [vmem:[%s1 + $0x78] sm:$0xf]
  %v62 = vld [vmem:[%s1 + $0x7c] sm:$0xf]
  %v79 = vunpack.c.l.b16 %v15
  %v80 = vunpack.c.h.b16 %v15
  %v81 = vunpack.c.l.b16 %v16
  %v82 = vunpack.c.h.b16 %v16
  %v83 = vunpack.c.l.b16 %v17
  %v84 = vunpack.c.h.b16 %v17
  %v85 = vunpack.c.l.b16 %v18
  %v86 = vunpack.c.h.b16 %v18
  %v87 = vunpack.c.l.b16 %v19
  %v88 = vunpack.c.h.b16 %v19
  %v89 = vunpack.c.l.b16 %v20
  %v90 = vunpack.c.h.b16 %v20
  %v91 = vunpack.c.l.b16 %v21
  %v92 = vunpack.c.h.b16 %v21
  %v93 = vunpack.c.l.b16 %v22
  %v94 = vunpack.c.h.b16 %v22
  %v95 = vunpack.c.l.b16 %v23
  %v96 = vunpack.c.h.b16 %v23
  %v97 = vunpack.c.l.b16 %v24
  %v98 = vunpack.c.h.b16 %v24
  %v99 = vunpack.c.l.b16 %v25
  %v100 = vunpack.c.h.b16 %v25
  %v101 = vunpack.c.l.b16 %v26
  %v102 = vunpack.c.h.b16 %v26
  %v103 = vunpack.c.l.b16 %v27
  %v104 = vunpack.c.h.b16 %v27
  %v105 = vunpack.c.l.b16 %v28
  %v106 = vunpack.c.h.b16 %v28
  %v107 = vunpack.c.l.b16 %v29
  %v108 = vunpack.c.h.b16 %v29
  %v109 = vunpack.c.l.b16 %v30
  %v110 = vunpack.c.h.b16 %v30
  %v111 = vpack.c.b16 %v81, %v79
  %v112 = vpack.c.b16 %v82, %v80
  %v113 = vpack.c.b16 %v85, %v83
  %v114 = vpack.c.b16 %v86, %v84
  %v115 = vpack.c.b16 %v89, %v87
  %v116 = vpack.c.b16 %v90, %v88
  %v117 = vpack.c.b16 %v93, %v91
  %v118 = vpack.c.b16 %v94, %v92
  %v119 = vpack.c.b16 %v97, %v95
  %v120 = vpack.c.b16 %v98, %v96
  %v121 = vpack.c.b16 %v101, %v99
  %v122 = vpack.c.b16 %v102, %v100
  %v123 = vpack.c.b16 %v105, %v103
  %v124 = vpack.c.b16 %v106, %v104
  %v125 = vpack.c.b16 %v109, %v107
  %v126 = vpack.c.b16 %v110, %v108
  %v175 = vunpack.c.l.b16 %v31
  %v176 = vunpack.c.l.b16 %v32
  %v177 = vunpack.c.l.b16 %v33
  %v178 = vunpack.c.l.b16 %v34
  %v179 = vunpack.c.l.b16 %v35
  %v180 = vunpack.c.l.b16 %v36
  %v181 = vunpack.c.l.b16 %v37
  %v182 = vunpack.c.l.b16 %v38
  %v183 = vunpack.c.l.b16 %v39
  %v184 = vunpack.c.l.b16 %v40
  %v185 = vunpack.c.l.b16 %v41
  %v186 = vunpack.c.l.b16 %v42
  %v187 = vunpack.c.l.b16 %v43
  %v188 = vunpack.c.l.b16 %v44
  %v189 = vunpack.c.l.b16 %v45
  %v190 = vunpack.c.l.b16 %v46
  %v191 = vunpack.c.l.b16 %v47
  %v192 = vunpack.c.l.b16 %v48
  %v193 = vunpack.c.l.b16 %v49
  %v194 = vunpack.c.l.b16 %v50
  %v195 = vunpack.c.l.b16 %v51
  %v196 = vunpack.c.l.b16 %v52
  %v197 = vunpack.c.l.b16 %v53
  %v198 = vunpack.c.l.b16 %v54
  %v199 = vunpack.c.l.b16 %v55
  %v200 = vunpack.c.l.b16 %v56
  %v201 = vunpack.c.l.b16 %v57
  %v202 = vunpack.c.l.b16 %v58
  %v203 = vunpack.c.l.b16 %v59
  %v204 = vunpack.c.l.b16 %v60
  %v205 = vunpack.c.l.b16 %v61
  %v206 = vunpack.c.l.b16 %v62
  %v207 = vpack.c.b16 %v176, %v175
  %v208 = vpack.c.b16 %v178, %v177
  %v209 = vpack.c.b16 %v180, %v179
  %v210 = vpack.c.b16 %v182, %v181
  %v211 = vpack.c.b16 %v184, %v183
  %v212 = vpack.c.b16 %v186, %v185
  %v213 = vpack.c.b16 %v188, %v187
  %v214 = vpack.c.b16 %v190, %v189
  %v215 = vpack.c.b16 %v192, %v191
  %v216 = vpack.c.b16 %v194, %v193
  %v217 = vpack.c.b16 %v196, %v195
  %v218 = vpack.c.b16 %v198, %v197
  %v219 = vpack.c.b16 %v200, %v199
  %v220 = vpack.c.b16 %v202, %v201
  %v221 = vpack.c.b16 %v204, %v203
  %v222 = vpack.c.b16 %v206, %v205
  %239 = vmatprep.subr.bf16.mxu0 0
  %240 = vmatpush1.bf16.msra.mxu0 %v207
  %241 = vmatprep.subr.bf16.mxu0 0
  %242 = vmatpush1.bf16.msra.mxu0 %v208
  %243 = vmatprep.subr.bf16.mxu0 0
  %244 = vmatpush1.bf16.msra.mxu0 %v209
  %245 = vmatprep.subr.bf16.mxu0 0
  %246 = vmatpush1.bf16.msra.mxu0 %v210
  %247 = vmatprep.subr.bf16.mxu0 0
  %248 = vmatpush1.bf16.msra.mxu0 %v211
  %249 = vmatprep.subr.bf16.mxu0 0
  %250 = vmatpush1.bf16.msra.mxu0 %v212
  %251 = vmatprep.subr.bf16.mxu0 0
  %252 = vmatpush1.bf16.msra.mxu0 %v213
  %253 = vmatprep.subr.bf16.mxu0 0
  %254 = vmatpush1.bf16.msra.mxu0 %v214
  %255 = vmatprep.subr.bf16.mxu0 0
  %256 = vmatpush1.bf16.msra.mxu0 %v215
  %257 = vmatprep.subr.bf16.mxu0 0
  %258 = vmatpush1.bf16.msra.mxu0 %v216
  %259 = vmatprep.subr.bf16.mxu0 0
  %260 = vmatpush1.bf16.msra.mxu0 %v217
  %261 = vmatprep.subr.bf16.mxu0 0
  %262 = vmatpush1.bf16.msra.mxu0 %v218
  %263 = vmatprep.subr.bf16.mxu0 0
  %264 = vmatpush1.bf16.msra.mxu0 %v219
  %265 = vmatprep.subr.bf16.mxu0 0
  %266 = vmatpush1.bf16.msra.mxu0 %v220
  %267 = vmatprep.subr.bf16.mxu0 0
  %268 = vmatpush1.bf16.msra.mxu0 %v221
  %269 = vmatprep.subr.bf16.mxu0 0
  %270 = vmatpush1.bf16.msra.mxu0 %v222
  %271 = vmatprep.mubr.bf16.mxu0 %v112
  %272 = vmatmul.mubr.bf16.gmra.mrb[0].mxu0 %v111
  %v273 = vpop.f32.mrb[0].mxu0
  %v274 = vadd.f32 0.0, %v273
  %v275 = vpop.f32.mrb[0].mxu0
  %v276 = vpop.f32.mrb[0].mxu0
  %v277 = vadd.f32 0.0, %v276
  %v278 = vpop.f32.mrb[0].mxu0
  %279 = vmatprep.mubr.bf16.mxu0 %v114
  %280 = vmatmul.mubr.bf16.gmra.mrb[0].mxu0 %v113
  %v281 = vpop.f32.mrb[0].mxu0
  %v282 = vadd.f32 0.0, %v281
  %v283 = vpop.f32.mrb[0].mxu0
  %v284 = vpop.f32.mrb[0].mxu0
  %v285 = vadd.f32 0.0, %v284
  %v286 = vpop.f32.mrb[0].mxu0
  %287 = vmatprep.mubr.bf16.mxu0 %v116
  %288 = vmatmul.mubr.bf16.gmra.mrb[0].mxu0 %v115
  %v289 = vpop.f32.mrb[0].mxu0
  %v290 = vadd.f32 0.0, %v289
  %v291 = vpop.f32.mrb[0].mxu0
  %v292 = vpop.f32.mrb[0].mxu0
  %v293 = vadd.f32 0.0, %v292
  %v294 = vpop.f32.mrb[0].mxu0
  %295 = vmatprep.mubr.bf16.mxu0 %v118
  %296 = vmatmul.mubr.bf16.gmra.mrb[0].mxu0 %v117
  %v297 = vpop.f32.mrb[0].mxu0
  %v298 = vadd.f32 0.0, %v297
  %v299 = vpop.f32.mrb[0].mxu0
  %v300 = vpop.f32.mrb[0].mxu0
  %v301 = vadd.f32 0.0, %v300
  %v302 = vpop.f32.mrb[0].mxu0
  %303 = vmatprep.mubr.bf16.mxu0 %v120
  %304 = vmatmul.mubr.bf16.gmra.mrb[0].mxu0 %v119
  %v305 = vpop.f32.mrb[0].mxu0
  %v306 = vadd.f32 0.0, %v305
  %v307 = vpop.f32.mrb[0].mxu0
  %v308 = vpop.f32.mrb[0].mxu0
  %v309 = vadd.f32 0.0, %v308
  %v310 = vpop.f32.mrb[0].mxu0
  %311 = vmatprep.mubr.bf16.mxu0 %v122
  %312 = vmatmul.mubr.bf16.gmra.mrb[0].mxu0 %v121
  %v313 = vpop.f32.mrb[0].mxu0
  %v314 = vadd.f32 0.0, %v313
  %v315 = vpop.f32.mrb[0].mxu0
  %v316 = vpop.f32.mrb[0].mxu0
  %v317 = vadd.f32 0.0, %v316
  %v318 = vpop.f32.mrb[0].mxu0
  %319 = vmatprep.mubr.bf16.mxu0 %v124
  %320 = vmatmul.mubr.bf16.gmra.mrb[0].mxu0 %v123
  %v321 = vpop.f32.mrb[0].mxu0
  %v322 = vadd.f32 0.0, %v321
  %v323 = vpop.f32.mrb[0].mxu0
  %v324 = vpop.f32.mrb[0].mxu0
  %v325 = vadd.f32 0.0, %v324
  %v326 = vpop.f32.mrb[0].mxu0
  %327 = vmatprep.mubr.bf16.mxu0 %v126
  %328 = vmatmul.mubr.bf16.gmra.mrb[0].mxu0 %v125
  %v329 = vpop.f32.mrb[0].mxu0
  %v330 = vadd.f32 0.0, %v329
  %v331 = vpop.f32.mrb[0].mxu0
  %v332 = vpop.f32.mrb[0].mxu0
  %v333 = vadd.f32 0.0, %v332
  %v334 = vpop.f32.mrb[0].mxu0
  %335 = vdwg.mxu0
  %v336 = vpack.c.bf16 %v277, %v274
  %v337 = vpack.c.bf16 %v285, %v282
  %v338 = vpack.c.bf16 %v293, %v290
  %v339 = vpack.c.bf16 %v301, %v298
  %v340 = vpack.c.bf16 %v309, %v306
  %v341 = vpack.c.bf16 %v317, %v314
  %v342 = vpack.c.bf16 %v325, %v322
  %v343 = vpack.c.bf16 %v333, %v330
  %v352 = vunpack.c.l.b16 %v336
  %v353 = vunpack.c.h.b16 %v336
  %v354 = vunpack.c.l.b16 %v337
  %v355 = vunpack.c.h.b16 %v337
  %v356 = vunpack.c.l.b16 %v338
  %v357 = vunpack.c.h.b16 %v338
  %v358 = vunpack.c.l.b16 %v339
  %v359 = vunpack.c.h.b16 %v339
  %v360 = vunpack.c.l.b16 %v340
  %v361 = vunpack.c.h.b16 %v340
  %v362 = vunpack.c.l.b16 %v341
  %v363 = vunpack.c.h.b16 %v341
  %v364 = vunpack.c.l.b16 %v342
  %v365 = vunpack.c.h.b16 %v342
  %v366 = vunpack.c.l.b16 %v343
  %v367 = vunpack.c.h.b16 %v343
  %v368 = vpack.c.b16 %v352, %v352
  %v369 = vpack.c.b16 %v353, %v353
  %v370 = vpack.c.b16 %v354, %v354
  %v371 = vpack.c.b16 %v355, %v355
  %v372 = vpack.c.b16 %v356, %v356
  %v373 = vpack.c.b16 %v357, %v357
  %v374 = vpack.c.b16 %v358, %v358
  %v375 = vpack.c.b16 %v359, %v359
  %v376 = vpack.c.b16 %v360, %v360
  %v377 = vpack.c.b16 %v361, %v361
  %v378 = vpack.c.b16 %v362, %v362
  %v379 = vpack.c.b16 %v363, %v363
  %v380 = vpack.c.b16 %v364, %v364
  %v381 = vpack.c.b16 %v365, %v365
  %v382 = vpack.c.b16 %v366, %v366
  %v383 = vpack.c.b16 %v367, %v367
  %400 = vst [vmem:[%s2] sm:$0xf] %v368
  %401 = vst [vmem:[%s2 + $0x4] sm:$0xf] %v369
  %402 = vst [vmem:[%s2 + $0x8] sm:$0xf] %v370
  %403 = vst [vmem:[%s2 + $0xc] sm:$0xf] %v371
  %404 = vst [vmem:[%s2 + $0x10] sm:$0xf] %v372
  %405 = vst [vmem:[%s2 + $0x14] sm:$0xf] %v373
  %406 = vst [vmem:[%s2 + $0x18] sm:$0xf] %v374
  %407 = vst [vmem:[%s2 + $0x1c] sm:$0xf] %v375
  %408 = vst [vmem:[%s2 + $0x20] sm:$0xf] %v376
  %409 = vst [vmem:[%s2 + $0x24] sm:$0xf] %v377
  %410 = vst [vmem:[%s2 + $0x28] sm:$0xf] %v378
  %411 = vst [vmem:[%s2 + $0x2c] sm:$0xf] %v379
  %412 = vst [vmem:[%s2 + $0x30] sm:$0xf] %v380
  %413 = vst [vmem:[%s2 + $0x34] sm:$0xf] %v381
  %414 = vst [vmem:[%s2 + $0x38] sm:$0xf] %v382
  %415 = vst [vmem:[%s2 + $0x3c] sm:$0xf] %v383
  %v416 = vadd.f32 %v274, %v277
  %v417 = vadd.f32 %v416, %v282
  %v418 = vadd.f32 %v417, %v285
  %v419 = vadd.f32 %v418, %v290
  %v420 = vadd.f32 %v419, %v293
  %v421 = vadd.f32 %v420, %v298
  %v422 = vadd.f32 %v421, %v301
  %v423 = vadd.f32 %v422, %v306
  %v424 = vadd.f32 %v423, %v309
  %v425 = vadd.f32 %v424, %v314
  %v426 = vadd.f32 %v425, %v317
  %v427 = vadd.f32 %v426, %v322
  %v428 = vadd.f32 %v427, %v325
  %v429 = vadd.f32 %v428, %v330
  %v430 = vadd.f32 %v429, %v333
  %v431 = vrot.slane %v430, 4
  %v432 = vadd.f32 %v430, %v431
  %v433 = vrot.slane %v432, 2
  %v434 = vadd.f32 %v432, %v433
  %v435 = vrot.slane %v434, 1
  %v436 = vadd.f32 %v434, %v435
  %437 = vst [vmem:[%s3] sm:$0x1] %v436
  %v438 = vmul.f32 %v274, %v274
  %v439 = vmul.f32 %v277, %v277
  %v440 = vmul.f32 %v282, %v282
  %v441 = vmul.f32 %v285, %v285
  %v442 = vmul.f32 %v290, %v290
  %v443 = vmul.f32 %v293, %v293
  %v444 = vmul.f32 %v298, %v298
  %v445 = vmul.f32 %v301, %v301
  %v446 = vmul.f32 %v306, %v306
  %v447 = vmul.f32 %v309, %v309
  %v448 = vmul.f32 %v314, %v314
  %v449 = vmul.f32 %v317, %v317
  %v450 = vmul.f32 %v322, %v322
  %v451 = vmul.f32 %v325, %v325
  %v452 = vmul.f32 %v330, %v330
  %v453 = vmul.f32 %v333, %v333
  %v454 = vadd.f32 %v438, %v439
  %v455 = vadd.f32 %v454, %v440
  %v456 = vadd.f32 %v455, %v441
  %v457 = vadd.f32 %v456, %v442
  %v458 = vadd.f32 %v457, %v443
  %v459 = vadd.f32 %v458, %v444
  %v460 = vadd.f32 %v459, %v445
  %v461 = vadd.f32 %v460, %v446
  %v462 = vadd.f32 %v461, %v447
  %v463 = vadd.f32 %v462, %v448
  %v464 = vadd.f32 %v463, %v449
  %v465 = vadd.f32 %v464, %v450
  %v466 = vadd.f32 %v465, %v451
  %v467 = vadd.f32 %v466, %v452
  %v468 = vadd.f32 %v467, %v453
  %v469 = vrot.slane %v468, 4
  %v470 = vadd.f32 %v468, %v469
  %v471 = vrot.slane %v470, 2
  %v472 = vadd.f32 %v470, %v471
  %v473 = vrot.slane %v472, 1
  %v474 = vadd.f32 %v472, %v473
  %475 = vst [vmem:[%s4] sm:$0x1] %v474
  // Predicated region
  $region10: #{discriminator_forward.10} parent=0 // pred_check
    _
  $region11: #{discriminator_forward.10} parent=0 // pred_check_branch
    %477 = sbr.rel (0) target = $region13
  $region12: #{discriminator_forward.10} parent=0 // pred_region
    _
  $region13: #{discriminator_forward.10} parent=0 // pred_fallthru
    _
  // Predicated region
  $region14: #{discriminator_forward.10} parent=0 // pred_check
    _
  $region15: #{discriminator_forward.10} parent=0 // pred_check_branch
    %479 = sbr.rel (0) target = $region17
  $region16: #{discriminator_forward.10} parent=0 // pred_region
    _
  $region17: #{discriminator_forward.10} parent=0 // pred_fallthru
    _
  // Predicated region
  $region18: #{discriminator_forward.10} parent=0 // pred_check
    _
  $region19: #{discriminator_forward.10} parent=0 // pred_check_branch
    %481 = sbr.rel (0) target = $region21
  $region20: #{discriminator_forward.10} parent=0 // pred_region
    _
  $region21: #{discriminator_forward.10} parent=0 // pred_fallthru
    _
  // Predicated region
  $region22: #{discriminator_forward.10} parent=0 // pred_check
    _
  $region23: #{discriminator_forward.10} parent=0 // pred_check_branch
    %483 = sbr.rel (0) target = $region25
  $region24: #{discriminator_forward.10} parent=0 // pred_region
    _
  $region25: #{discriminator_forward.10} parent=0 // pred_fallthru
    _
  // Predicated region
  $region26: #{discriminator_forward.10} parent=0 // pred_check
    _
  $region27: #{discriminator_forward.10} parent=0 // pred_check_branch
    %485 = sbr.rel (0) target = $region29
  $region28: #{discriminator_forward.10} parent=0 // pred_region
    _
  $region29: #{discriminator_forward.10} parent=0 // pred_fallthru
    _
  // Predicated region
  $region30: #{discriminator_forward.10} parent=0 // pred_check
    _
  $region31: #{discriminator_forward.10} parent=0 // pred_check_branch
    %487 = sbr.rel (0) target = $region33
  $region32: #{discriminator_forward.10} parent=0 // pred_region
    _
  $region33: #{discriminator_forward.10} parent=0 // pred_fallthru
    _

// kernel: discriminator_forward.11
$region0: #{discriminator_forward.11}
  #allocation0 [shape = 'u32[]', space=smem, size = 0x4, offset = 0x4, fixed_abs, tag = 'smem constant byte address 0x4 - core index']
  #allocation1 [shape = 'u32[144,128]{1,0:T(1,128)}', space=vmem, size = 0x12000, scoped, tag = 'internal scratch']
  %s0 = inlined_call_operand.vmem [shape: bf16[128,128], index: 0, kind: input, shape index: {}]
  %s1 = inlined_call_operand.vmem [shape: f32[1,128], index: 1, kind: input, shape index: {}]
  %s2 = inlined_call_operand.vmem [shape: f32[1,128], index: 2, kind: input, shape index: {}]
  %s3 = inlined_call_operand.vmem [shape: bf16[128,128], index: 3, kind: output, shape index: {}]
  %s4 = sld [smem:[#allocation0]]
  $region22: #{discriminator_forward.11} parent=0
    _
  %s6 = ssub.s32 1, %s4
  %s7 = scalar_select 0, %s6, %s4
  // Predicated region
  $region2: #{discriminator_forward.11} parent=0 // pred_check
    _
  $region3: #{discriminator_forward.11} parent=0 // pred_check_branch
    %9 = sbr.rel (0) target = $region5
  $region4: #{discriminator_forward.11} parent=0 // pred_region
    _
  $region5: #{discriminator_forward.11} parent=0 // pred_fallthru
    _
  // Predicated region
  $region6: #{discriminator_forward.11} parent=0 // pred_check
    _
  $region7: #{discriminator_forward.11} parent=0 // pred_check_branch
    %11 = sbr.rel (0) target = $region9
  $region8: #{discriminator_forward.11} parent=0 // pred_region
    _
  $region9: #{discriminator_forward.11} parent=0 // pred_fallthru
    _
  // Predicated region
  $region10: #{discriminator_forward.11} parent=0 // pred_check
    _
  $region11: #{discriminator_forward.11} parent=0 // pred_check_branch
    %13 = sbr.rel (0) target = $region13
  $region12: #{discriminator_forward.11} parent=0 // pred_region
    _
  $region13: #{discriminator_forward.11} parent=0 // pred_fallthru
    _
  %v14 = vld [vmem:[%s0] sm:$0xf]
  %v15 = vld [vmem:[%s0 + $0x4] sm:$0xf]
  %v16 = vld [vmem:[%s0 + $0x8] sm:$0xf]
  %v17 = vld [vmem:[%s0 + $0xc] sm:$0xf]
  %v18 = vld [vmem:[%s0 + $0x10] sm:$0xf]
  %v19 = vld [vmem:[%s0 + $0x14] sm:$0xf]
  %v20 = vld [vmem:[%s0 + $0x18] sm:$0xf]
  %v21 = vld [vmem:[%s0 + $0x1c] sm:$0xf]
  %v22 = vld [vmem:[%s0 + $0x20] sm:$0xf]
  %v23 = vld [vmem:[%s0 + $0x24] sm:$0xf]
  %v24 = vld [vmem:[%s0 + $0x28] sm:$0xf]
  %v25 = vld [vmem:[%s0 + $0x2c] sm:$0xf]
  %v26 = vld [vmem:[%s0 + $0x30] sm:$0xf]
  %v27 = vld [vmem:[%s0 + $0x34] sm:$0xf]
  %v28 = vld [vmem:[%s0 + $0x38] sm:$0xf]
  %v29 = vld [vmem:[%s0 + $0x3c] sm:$0xf]
  %v30 = vunpack.c.l.bf16 %v14
  %v31 = vunpack.c.l.bf16 %v15
  %v32 = vunpack.c.l.bf16 %v16
  %v33 = vunpack.c.l.bf16 %v17
  %v34 = vunpack.c.l.bf16 %v18
  %v35 = vunpack.c.l.bf16 %v19
  %v36 = vunpack.c.l.bf16 %v20
  %v37 = vunpack.c.l.bf16 %v21
  %v38 = vunpack.c.l.bf16 %v22
  %v39 = vunpack.c.l.bf16 %v23
  %v40 = vunpack.c.l.bf16 %v24
  %v41 = vunpack.c.l.bf16 %v25
  %v42 = vunpack.c.l.bf16 %v26
  %v43 = vunpack.c.l.bf16 %v27
  %v44 = vunpack.c.l.bf16 %v28
  %v45 = vunpack.c.l.bf16 %v29
  %v46 = vld [vmem:[%s1] sm:$0x1]
  %v48 = vlaneseq
  %v49 = vshrl.u32 %v48, 7
  %v50 = vsub.s32 0, %v49
  %v51 = vrot.slane %v46, %v50
  %v53 = vmul.f32 %v30, %v51
  %v54 = vmul.f32 %v31, %v51
  %v55 = vmul.f32 %v32, %v51
  %v56 = vmul.f32 %v33, %v51
  %v57 = vmul.f32 %v34, %v51
  %v58 = vmul.f32 %v35, %v51
  %v59 = vmul.f32 %v36, %v51
  %v60 = vmul.f32 %v37, %v51
  %v61 = vmul.f32 %v38, %v51
  %v62 = vmul.f32 %v39, %v51
  %v63 = vmul.f32 %v40, %v51
  %v64 = vmul.f32 %v41, %v51
  %v65 = vmul.f32 %v42, %v51
  %v66 = vmul.f32 %v43, %v51
  %v67 = vmul.f32 %v44, %v51
  %v68 = vmul.f32 %v45, %v51
  %v69 = vld [vmem:[%s2] sm:$0x1]
  %v71 = vlaneseq
  %v72 = vshrl.u32 %v71, 7
  %v73 = vsub.s32 0, %v72
  %v74 = vrot.slane %v69, %v73
  %v76 = vadd.f32 %v53, %v74
  %v77 = vadd.f32 %v54, %v74
  %v78 = vadd.f32 %v55, %v74
  %v79 = vadd.f32 %v56, %v74
  %v80 = vadd.f32 %v57, %v74
  %v81 = vadd.f32 %v58, %v74
  %v82 = vadd.f32 %v59, %v74
  %v83 = vadd.f32 %v60, %v74
  %v84 = vadd.f32 %v61, %v74
  %v85 = vadd.f32 %v62, %v74
  %v86 = vadd.f32 %v63, %v74
  %v87 = vadd.f32 %v64, %v74
  %v88 = vadd.f32 %v65, %v74
  %v89 = vadd.f32 %v66, %v74
  %v90 = vadd.f32 %v67, %v74
  %v91 = vadd.f32 %v68, %v74
  %v92 = vmul.f32 %v76, 0.2
  %v93 = vmul.f32 %v77, 0.2
  %v94 = vmul.f32 %v78, 0.2
  %v95 = vmul.f32 %v79, 0.2
  %v96 = vmul.f32 %v80, 0.2
  %v97 = vmul.f32 %v81, 0.2
  %v98 = vmul.f32 %v82, 0.2
  %v99 = vmul.f32 %v83, 0.2
  %v100 = vmul.f32 %v84, 0.2
  %v101 = vmul.f32 %v85, 0.2
  %v102 = vmul.f32 %v86, 0.2
  %v103 = vmul.f32 %v87, 0.2
  %v104 = vmul.f32 %v88, 0.2
  %v105 = vmul.f32 %v89, 0.2
  %v106 = vmul.f32 %v90, 0.2
  %v107 = vmul.f32 %v91, 0.2
  %v108 = vmax.f32 %v76, %v92
  %v109 = vmax.f32 %v77, %v93
  %v110 = vmax.f32 %v78, %v94
  %v111 = vmax.f32 %v79, %v95
  %v112 = vmax.f32 %v80, %v96
  %v113 = vmax.f32 %v81, %v97
  %v114 = vmax.f32 %v82, %v98
  %v115 = vmax.f32 %v83, %v99
  %v116 = vmax.f32 %v84, %v100
  %v117 = vmax.f32 %v85, %v101
  %v118 = vmax.f32 %v86, %v102
  %v119 = vmax.f32 %v87, %v103
  %v120 = vmax.f32 %v88, %v104
  %v121 = vmax.f32 %v89, %v105
  %v122 = vmax.f32 %v90, %v106
  %v123 = vmax.f32 %v91, %v107
  %v124 = vpack.c.bf16 %v109, %v108
  %v125 = vpack.c.bf16 %v111, %v110
  %v126 = vpack.c.bf16 %v113, %v112
  %v127 = vpack.c.bf16 %v115, %v114
  %v128 = vpack.c.bf16 %v117, %v116
  %v129 = vpack.c.bf16 %v119, %v118
  %v130 = vpack.c.bf16 %v121, %v120
  %v131 = vpack.c.bf16 %v123, %v122
  %v140 = vunpack.c.l.b16 %v124
  %v141 = vunpack.c.h.b16 %v124
  %v142 = vunpack.c.l.b16 %v125
  %v143 = vunpack.c.h.b16 %v125
  %v144 = vunpack.c.l.b16 %v126
  %v145 = vunpack.c.h.b16 %v126
  %v146 = vunpack.c.l.b16 %v127
  %v147 = vunpack.c.h.b16 %v127
  %v148 = vunpack.c.l.b16 %v128
  %v149 = vunpack.c.h.b16 %v128
  %v150 = vunpack.c.l.b16 %v129
  %v151 = vunpack.c.h.b16 %v129
  %v152 = vunpack.c.l.b16 %v130
  %v153 = vunpack.c.h.b16 %v130
  %v154 = vunpack.c.l.b16 %v131
  %v155 = vunpack.c.h.b16 %v131
  %v156 = vpack.c.b16 %v140, %v140
  %v157 = vpack.c.b16 %v141, %v141
  %v158 = vpack.c.b16 %v142, %v142
  %v159 = vpack.c.b16 %v143, %v143
  %v160 = vpack.c.b16 %v144, %v144
  %v161 = vpack.c.b16 %v145, %v145
  %v162 = vpack.c.b16 %v146, %v146
  %v163 = vpack.c.b16 %v147, %v147
  %v164 = vpack.c.b16 %v148, %v148
  %v165 = vpack.c.b16 %v149, %v149
  %v166 = vpack.c.b16 %v150, %v150
  %v167 = vpack.c.b16 %v151, %v151
  %v168 = vpack.c.b16 %v152, %v152
  %v169 = vpack.c.b16 %v153, %v153
  %v170 = vpack.c.b16 %v154, %v154
  %v171 = vpack.c.b16 %v155, %v155
  %188 = vst [vmem:[%s3] sm:$0xf] %v156
  %189 = vst [vmem:[%s3 + $0x4] sm:$0xf] %v157
  %190 = vst [vmem:[%s3 + $0x8] sm:$0xf] %v158
  %191 = vst [vmem:[%s3 + $0xc] sm:$0xf] %v159
  %192 = vst [vmem:[%s3 + $0x10] sm:$0xf] %v160
  %193 = vst [vmem:[%s3 + $0x14] sm:$0xf] %v161
  %194 = vst [vmem:[%s3 + $0x18] sm:$0xf] %v162
  %195 = vst [vmem:[%s3 + $0x1c] sm:$0xf] %v163
  %196 = vst [vmem:[%s3 + $0x20] sm:$0xf] %v164
  %197 = vst [vmem:[%s3 + $0x24] sm:$0xf] %v165
  %198 = vst [vmem:[%s3 + $0x28] sm:$0xf] %v166
  %199 = vst [vmem:[%s3 + $0x2c] sm:$0xf] %v167
  %200 = vst [vmem:[%s3 + $0x30] sm:$0xf] %v168
  %201 = vst [vmem:[%s3 + $0x34] sm:$0xf] %v169
  %202 = vst [vmem:[%s3 + $0x38] sm:$0xf] %v170
  %203 = vst [vmem:[%s3 + $0x3c] sm:$0xf] %v171
  // Predicated region
  $region14: #{discriminator_forward.11} parent=0 // pred_check
    _
  $region15: #{discriminator_forward.11} parent=0 // pred_check_branch
    %205 = sbr.rel (0) target = $region17
  $region16: #{discriminator_forward.11} parent=0 // pred_region
    _
  $region17: #{discriminator_forward.11} parent=0 // pred_fallthru
    _
  // Predicated region
  $region18: #{discriminator_forward.11} parent=0 // pred_check
    _
  $region19: #{discriminator_forward.11} parent=0 // pred_check_branch
    %207 = sbr.rel (0) target = $region21
  $region20: #{discriminator_forward.11} parent=0 // pred_region
    _
  $region21: #{discriminator_forward.11} parent=0 // pred_fallthru
    _

// kernel: discriminator_forward.12
$region0: #{discriminator_forward.12}
  #allocation0 [shape = 'u32[]', space=smem, size = 0x4, offset = 0x4, fixed_abs, tag = 'smem constant byte address 0x4 - core index']
  #allocation1 [shape = 'u32[144,128]{1,0:T(1,128)}', space=vmem, size = 0x12000, scoped, tag = 'internal scratch']
  %s0 = inlined_call_operand.vmem [shape: bf16[32,512], index: 0, kind: input, shape index: {}]
  %s1 = inlined_call_operand.vmem [shape: bf16[512,128], index: 1, kind: input, shape index: {}]
  %s2 = inlined_call_operand.vmem [shape: bf16[32,128], index: 2, kind: output, shape index: {0}]
  %s3 = inlined_call_operand.vmem [shape: f32[1,1,128], index: 3, kind: output, shape index: {1}]
  %s4 = inlined_call_operand.vmem [shape: f32[1,1,128], index: 4, kind: output, shape index: {2}]
  %5 = xla_tuple %s2, %s3, %s4
  %s6 = sld [smem:[#allocation0]]
  $region34: #{discriminator_forward.12} parent=0
    _
  %s8 = ssub.s32 1, %s6
  %s9 = scalar_select 0, %s8, %s6
  // Predicated region
  $region2: #{discriminator_forward.12} parent=0 // pred_check
    _
  $region3: #{discriminator_forward.12} parent=0 // pred_check_branch
    %11 = sbr.rel (0) target = $region5
  $region4: #{discriminator_forward.12} parent=0 // pred_region
    _
  $region5: #{discriminator_forward.12} parent=0 // pred_fallthru
    _
  // Predicated region
  $region6: #{discriminator_forward.12} parent=0 // pred_check
    _
  $region7: #{discriminator_forward.12} parent=0 // pred_check_branch
    %13 = sbr.rel (0) target = $region9
  $region8: #{discriminator_forward.12} parent=0 // pred_region
    _
  $region9: #{discriminator_forward.12} parent=0 // pred_fallthru
    _
  %v15 = vld [vmem:[%s0] sm:$0xff]
  %v16 = vld [vmem:[%s0 + $0x8] sm:$0xff]
  %v17 = vld [vmem:[%s0 + $0x10] sm:$0xff]
  %v18 = vld [vmem:[%s0 + $0x18] sm:$0xff]
  %v19 = vld [vmem:[%s0 + $0x20] sm:$0xff]
  %v20 = vld [vmem:[%s0 + $0x28] sm:$0xff]
  %v21 = vld [vmem:[%s0 + $0x30] sm:$0xff]
  %v22 = vld [vmem:[%s0 + $0x38] sm:$0xff]
  %v23 = vld [vmem:[%s1] sm:$0xf]
  %v24 = vld [vmem:[%s1 + $0x4] sm:$0xf]
  %v25 = vld [vmem:[%s1 + $0x8] sm:$0xf]
  %v26 = vld [vmem:[%s1 + $0xc] sm:$0xf]
  %v27 = vld [vmem:[%s1 + $0x10] sm:$0xf]
  %v28 = vld [vmem:[%s1 + $0x14] sm:$0xf]
  %v29 = vld [vmem:[%s1 + $0x18] sm:$0xf]
  %v30 = vld [vmem:[%s1 + $0x1c] sm:$0xf]
  %v31 = vld [vmem:[%s1 + $0x20] sm:$0xf]
  %v32 = vld [vmem:[%s1 + $0x24] sm:$0xf]
  %v33 = vld [vmem:[%s1 + $0x28] sm:$0xf]
  %v34 = vld [vmem:[%s1 + $0x2c] sm:$0xf]
  %v35 = vld [vmem:[%s1 + $0x30] sm:$0xf]
  %v36 = vld [vmem:[%s1 + $0x34] sm:$0xf]
  %v37 = vld [vmem:[%s1 + $0x38] sm:$0xf]
  %v38 = vld [vmem:[%s1 + $0x3c] sm:$0xf]
  %v39 = vld [vmem:[%s1 + $0x40] sm:$0xf]
  %v40 = vld [vmem:[%s1 + $0x44] sm:$0xf]
  %v41 = vld [vmem:[%s1 + $0x48] sm:$0xf]
  %v42 = vld [vmem:[%s1 + $0x4c] sm:$0xf]
  %v43 = vld [vmem:[%s1 + $0x50] sm:$0xf]
  %v44 = vld [vmem:[%s1 + $0x54] sm:$0xf]
  %v45 = vld [vmem:[%s1 + $0x58] sm:$0xf]
  %v46 = vld [vmem:[%s1 + $0x5c] sm:$0xf]
  %v47 = vld [vmem:[%s1 + $0x60] sm:$0xf]
  %v48 = vld [vmem:[%s1 + $0x64] sm:$0xf]
  %v49 = vld [vmem:[%s1 + $0x68] sm:$0xf]
  %v50 = vld [vmem:[%s1 + $0x6c] sm:$0xf]
  %v51 = vld [vmem:[%s1 + $0x70] sm:$0xf]
  %v52 = vld [vmem:[%s1 + $0x74] sm:$0xf]
  %v53 = vld [vmem:[%s1 + $0x78] sm:$0xf]
  %v54 = vld [vmem:[%s1 + $0x7c] sm:$0xf]
  %v55 = vld [vmem:[%s1 + $0x80] sm:$0xf]
  %v56 = vld [vmem:[%s1 + $0x84] sm:$0xf]
  %v57 = vld [vmem:[%s1 + $0x88] sm:$0xf]
  %v58 = vld [vmem:[%s1 + $0x8c] sm:$0xf]
  %v59 = vld [vmem:[%s1 + $0x90] sm:$0xf]
  %v60 = vld [vmem:[%s1 + $0x94] sm:$0xf]
  %v61 = vld [vmem:[%s1 + $0x98] sm:$0xf]
  %v62 = vld [vmem:[%s1 + $0x9c] sm:$0xf]
  %v63 = vld [vmem:[%s1 + $0xa0] sm:$0xf]
  %v64 = vld [vmem:[%s1 + $0xa4] sm:$0xf]
  %v65 = vld [vmem:[%s1 + $0xa8] sm:$0xf]
  %v66 = vld [vmem:[%s1 + $0xac] sm:$0xf]
  %v67 = vld [vmem:[%s1 + $0xb0] sm:$0xf]
  %v68 = vld [vmem:[%s1 + $0xb4] sm:$0xf]
  %v69 = vld [vmem:[%s1 + $0xb8] sm:$0xf]
  %v70 = vld [vmem:[%s1 + $0xbc] sm:$0xf]
  %v71 = vld [vmem:[%s1 + $0xc0] sm:$0xf]
  %v72 = vld [vmem:[%s1 + $0xc4] sm:$0xf]
  %v73 = vld [vmem:[%s1 + $0xc8] sm:$0xf]
  %v74 = vld [vmem:[%s1 + $0xcc] sm:$0xf]
  %v75 = vld [vmem:[%s1 + $0xd0] sm:$0xf]
  %v76 = vld [vmem:[%s1 + $0xd4] sm:$0xf]
  %v77 = vld [vmem:[%s1 + $0xd8] sm:$0xf]
  %v78 = vld [vmem:[%s1 + $0xdc] sm:$0xf]
  %v79 = vld [vmem:[%s1 + $0xe0] sm:$0xf]
  %v80 = vld [vmem:[%s1 + $0xe4] sm:$0xf]
  %v81 = vld [vmem:[%s1 + $0xe8] sm:$0xf]
  %v82 = vld [vmem:[%s1 + $0xec] sm:$0xf]
  %v83 = vld [vmem:[%s1 + $0xf0] sm:$0xf]
  %v84 = vld [vmem:[%s1 + $0xf4] sm:$0xf]
  %v85 = vld [vmem:[%s1 + $0xf8] sm:$0xf]
  %v86 = vld [vmem:[%s1 + $0xfc] sm:$0xf]
  %v95 = vunpack.c.l.b16 %v15
  %v96 = vunpack.c.h.b16 %v15
  %v97 = vunpack.c.l.b16 %v16
  %v98 = vunpack.c.h.b16 %v16
  %v99 = vunpack.c.l.b16 %v17
  %v100 = vunpack.c.h.b16 %v17
  %v101 = vunpack.c.l.b16 %v18
  %v102 = vunpack.c.h.b16 %v18
  %v103 = vunpack.c.l.b16 %v19
  %v104 = vunpack.c.h.b16 %v19
  %v105 = vunpack.c.l.b16 %v20
  %v106 = vunpack.c.h.b16 %v20
  %v107 = vunpack.c.l.b16 %v21
  %v108 = vunpack.c.h.b16 %v21
  %v109 = vunpack.c.l.b16 %v22
  %v110 = vunpack.c.h.b16 %v22
  %v111 = vpack.c.b16 %v99, %v95
  %v112 = vpack.c.b16 %v100, %v96
  %v113 = vpack.c.b16 %v101, %v97
  %v114 = vpack.c.b16 %v102, %v98
  %v115 = vpack.c.b16 %v107, %v103
  %v116 = vpack.c.b16 %v108, %v104
  %v117 = vpack.c.b16 %v109, %v105
  %v118 = vpack.c.b16 %v110, %v106
  %v191 = vunpack.c.l.b16 %v23
  %v192 = vunpack.c.l.b16 %v24
  %v193 = vunpack.c.l.b16 %v25
  %v194 = vunpack.c.l.b16 %v26
  %v195 = vunpack.c.l.b16 %v27
  %v196 = vunpack.c.l.b16 %v28
  %v197 = vunpack.c.l.b16 %v29
  %v198 = vunpack.c.l.b16 %v30
  %v199 = vunpack.c.l.b16 %v31
  %v200 = vunpack.c.l.b16 %v32
  %v201 = vunpack.c.l.b16 %v33
  %v202 = vunpack.c.l.b16 %v34
  %v203 = vunpack.c.l.b16 %v35
  %v204 = vunpack.c.l.b16 %v36
  %v205 = vunpack.c.l.b16 %v37
  %v206 = vunpack.c.l.b16 %v38
  %v207 = vunpack.c.l.b16 %v39
  %v208 = vunpack.c.l.b16 %v40
  %v209 = vunpack.c.l.b16 %v41
  %v210 = vunpack.c.l.b16 %v42
  %v211 = vunpack.c.l.b16 %v43
  %v212 = vunpack.c.l.b16 %v44
  %v213 = vunpack.c.l.b16 %v45
  %v214 = vunpack.c.l.b16 %v46
  %v215 = vunpack.c.l.b16 %v47
  %v216 = vunpack.c.l.b16 %v48
  %v217 = vunpack.c.l.b16 %v49
  %v218 = vunpack.c.l.b16 %v50
  %v219 = vunpack.c.l.b16 %v51
  %v220 = vunpack.c.l.b16 %v52
  %v221 = vunpack.c.l.b16 %v53
  %v222 = vunpack.c.l.b16 %v54
  %v223 = vunpack.c.l.b16 %v55
  %v224 = vunpack.c.l.b16 %v56
  %v225 = vunpack.c.l.b16 %v57
  %v226 = vunpack.c.l.b16 %v58
  %v227 = vunpack.c.l.b16 %v59
  %v228 = vunpack.c.l.b16 %v60
  %v229 = vunpack.c.l.b16 %v61
  %v230 = vunpack.c.l.b16 %v62
  %v231 = vunpack.c.l.b16 %v63
  %v232 = vunpack.c.l.b16 %v64
  %v233 = vunpack.c.l.b16 %v65
  %v234 = vunpack.c.l.b16 %v66
  %v235 = vunpack.c.l.b16 %v67
  %v236 = vunpack.c.l.b16 %v68
  %v237 = vunpack.c.l.b16 %v69
  %v238 = vunpack.c.l.b16 %v70
  %v239 = vunpack.c.l.b16 %v71
  %v240 = vunpack.c.l.b16 %v72
  %v241 = vunpack.c.l.b16 %v73
  %v242 = vunpack.c.l.b16 %v74
  %v243 = vunpack.c.l.b16 %v75
  %v244 = vunpack.c.l.b16 %v76
  %v245 = vunpack.c.l.b16 %v77
  %v246 = vunpack.c.l.b16 %v78
  %v247 = vunpack.c.l.b16 %v79
  %v248 = vunpack.c.l.b16 %v80
  %v249 = vunpack.c.l.b16 %v81
  %v250 = vunpack.c.l.b16 %v82
  %v251 = vunpack.c.l.b16 %v83
  %v252 = vunpack.c.l.b16 %v84
  %v253 = vunpack.c.l.b16 %v85
  %v254 = vunpack.c.l.b16 %v86
  %v255 = vpack.c.b16 %v192, %v191
  %v256 = vpack.c.b16 %v194, %v193
  %v257 = vpack.c.b16 %v196, %v195
  %v258 = vpack.c.b16 %v198, %v197
  %v259 = vpack.c.b16 %v200, %v199
  %v260 = vpack.c.b16 %v202, %v201
  %v261 = vpack.c.b16 %v204, %v203
  %v262 = vpack.c.b16 %v206, %v205
  %v263 = vpack.c.b16 %v208, %v207
  %v264 = vpack.c.b16 %v210, %v209
  %v265 = vpack.c.b16 %v212, %v211
  %v266 = vpack.c.b16 %v214, %v213
  %v267 = vpack.c.b16 %v216, %v215
  %v268 = vpack.c.b16 %v218, %v217
  %v269 = vpack.c.b16 %v220, %v219
  %v270 = vpack.c.b16 %v222, %v221
  %v271 = vpack.c.b16 %v224, %v223
  %v272 = vpack.c.b16 %v226, %v225
  %v273 = vpack.c.b16 %v228, %v227
  %v274 = vpack.c.b16 %v230, %v229
  %v275 = vpack.c.b16 %v232, %v231
  %v276 = vpack.c.b16 %v234, %v233
  %v277 = vpack.c.b16 %v236, %v235
  %v278 = vpack.c.b16 %v238, %v237
  %v279 = vpack.c.b16 %v240, %v239
  %v280 = vpack.c.b16 %v242, %v241
  %v281 = vpack.c.b16 %v244, %v243
  %v282 = vpack.c.b16 %v246, %v245
  %v283 = vpack.c.b16 %v248, %v247
  %v284 = vpack.c.b16 %v250, %v249
  %v285 = vpack.c.b16 %v252, %v251
  %v286 = vpack.c.b16 %v254, %v253
  %319 = vmatprep.subr.bf16.mxu0 0
  %320 = vmatpush1.bf16.msra.mxu0 %v255
  %321 = vmatprep.subr.bf16.mxu0 0
  %322 = vmatpush1.bf16.msra.mxu0 %v256
  %323 = vmatprep.subr.bf16.mxu0 0
  %324 = vmatpush1.bf16.msra.mxu0 %v257
  %325 = vmatprep.subr.bf16.mxu0 0
  %326 = vmatpush1.bf16.msra.mxu0 %v258
  %327 = vmatprep.subr.bf16.mxu0 0
  %328 = vmatpush1.bf16.msra.mxu0 %v259
  %329 = vmatprep.subr.bf16.mxu0 0
  %330 = vmatpush1.bf16.msra.mxu0 %v260
  %331 = vmatprep.subr.bf16.mxu0 0
  %332 = vmatpush1.bf16.msra.mxu0 %v261
  %333 = vmatprep.subr.bf16.mxu0 0
  %334 = vmatpush1.bf16.msra.mxu0 %v262
  %335 = vmatprep.subr.bf16.mxu0 0
  %336 = vmatpush1.bf16.msra.mxu0 %v263
  %337 = vmatprep.subr.bf16.mxu0 0
  %338 = vmatpush1.bf16.msra.mxu0 %v264
  %339 = vmatprep.subr.bf16.mxu0 0
  %340 = vmatpush1.bf16.msra.mxu0 %v265
  %341 = vmatprep.subr.bf16.mxu0 0
  %342 = vmatpush1.bf16.msra.mxu0 %v266
  %343 = vmatprep.subr.bf16.mxu0 0
  %344 = vmatpush1.bf16.msra.mxu0 %v267
  %345 = vmatprep.subr.bf16.mxu0 0
  %346 = vmatpush1.bf16.msra.mxu0 %v268
  %347 = vmatprep.subr.bf16.mxu0 0
  %348 = vmatpush1.bf16.msra.mxu0 %v269
  %349 = vmatprep.subr.bf16.mxu0 0
  %350 = vmatpush1.bf16.msra.mxu0 %v270
  %351 = vmatprep.mubr.bf16.mxu0 %v112
  %352 = vmatmul.mubr.bf16.gmra.mrb[0].mxu0 %v111
  %v353 = vpop.f32.mrb[0].mxu0
  %v354 = vadd.f32 0.0, %v353
  %v355 = vpop.f32.mrb[0].mxu0
  %v356 = vpop.f32.mrb[0].mxu0
  %v357 = vadd.f32 0.0, %v356
  %v358 = vpop.f32.mrb[0].mxu0
  %359 = vmatprep.mubr.bf16.mxu0 %v116
  %360 = vmatmul.mubr.bf16.gmra.mrb[0].mxu0 %v115
  %v361 = vpop.f32.mrb[0].mxu0
  %v362 = vadd.f32 0.0, %v361
  %v363 = vpop.f32.mrb[0].mxu0
  %v364 = vpop.f32.mrb[0].mxu0
  %v365 = vadd.f32 0.0, %v364
  %v366 = vpop.f32.mrb[0].mxu0
  %367 = vdwg.mxu0
  %368 = vmatprep.subr.bf16.mxu0 0
  %369 = vmatpush1.bf16.msra.mxu0 %v271
  %370 = vmatprep.subr.bf16.mxu0 0
  %371 = vmatpush1.bf16.msra.mxu0 %v272
  %372 = vmatprep.subr.bf16.mxu0 0
  %373 = vmatpush1.bf16.msra.mxu0 %v273
  %374 = vmatprep.subr.bf16.mxu0 0
  %375 = vmatpush1.bf16.msra.mxu0 %v274
  %376 = vmatprep.subr.bf16.mxu0 0
  %377 = vmatpush1.bf16.msra.mxu0 %v275
  %378 = vmatprep.subr.bf16.mxu0 0
  %379 = vmatpush1.bf16.msra.mxu0 %v276
  %380 = vmatprep.subr.bf16.mxu0 0
  %381 = vmatpush1.bf16.msra.mxu0 %v277
  %382 = vmatprep.subr.bf16.mxu0 0
  %383 = vmatpush1.bf16.msra.mxu0 %v278
  %384 = vmatprep.subr.bf16.mxu0 0
  %385 = vmatpush1.bf16.msra.mxu0 %v279
  %386 = vmatprep.subr.bf16.mxu0 0
  %387 = vmatpush1.bf16.msra.mxu0 %v280
  %388 = vmatprep.subr.bf16.mxu0 0
  %389 = vmatpush1.bf16.msra.mxu0 %v281
  %390 = vmatprep.subr.bf16.mxu0 0
  %391 = vmatpush1.bf16.msra.mxu0 %v282
  %392 = vmatprep.subr.bf16.mxu0 0
  %393 = vmatpush1.bf16.msra.mxu0 %v283
  %394 = vmatprep.subr.bf16.mxu0 0
  %395 = vmatpush1.bf16.msra.mxu0 %v284
  %396 = vmatprep.subr.bf16.mxu0 0
  %397 = vmatpush1.bf16.msra.mxu0 %v285
  %398 = vmatprep.subr.bf16.mxu0 0
  %399 = vmatpush1.bf16.msra.mxu0 %v286
  %400 = vmatprep.mubr.bf16.mxu0 %v114
  %401 = vmatmul.mubr.bf16.gmra.mrb[0].mxu0 %v113
  %v402 = vpop.f32.mrb[0].mxu0
  %v403 = vadd.f32 %v354, %v402
  %v404 = vpop.f32.mrb[0].mxu0
  %v405 = vpop.f32.mrb[0].mxu0
  %v406 = vadd.f32 %v357, %v405
  %v407 = vpop.f32.mrb[0].mxu0
  %408 = vmatprep.mubr.bf16.mxu0 %v118
  %409 = vmatmul.mubr.bf16.gmra.mrb[0].mxu0 %v117
  %v410 = vpop.f32.mrb[0].mxu0
  %v411 = vadd.f32 %v362, %v410
  %v412 = vpop.f32.mrb[0].mxu0
  %v413 = vpop.f32.mrb[0].mxu0
  %v414 = vadd.f32 %v365, %v413
  %v415 = vpop.f32.mrb[0].mxu0
  %416 = vdwg.mxu0
  %v417 = vpack.c.bf16 %v406, %v403
  %v418 = vpack.c.bf16 %v414, %v411
  %v421 = vunpack.c.l.b16 %v417
  %v422 = vunpack.c.h.b16 %v417
  %v423 = vunpack.c.l.b16 %v418
  %v424 = vunpack.c.h.b16 %v418
  %v425 = vpack.c.b16 %v421, %v421
  %v426 = vpack.c.b16 %v422, %v422
  %v427 = vpack.c.b16 %v423, %v423
  %v428 = vpack.c.b16 %v424, %v424
  %433 = vst [vmem:[%s2] sm:$0xf] %v425
  %434 = vst [vmem:[%s2 + $0x4] sm:$0xf] %v426
  %435 = vst [vmem:[%s2 + $0x8] sm:$0xf] %v427
  %436 = vst [vmem:[%s2 + $0xc] sm:$0xf] %v428
  %v437 = vadd.f32 %v403, %v406
  %v438 = vadd.f32 %v437, %v411
  %v439 = vadd.f32 %v438, %v414
  %v440 = vrot.slane %v439, 4
  %v441 = vadd.f32 %v439, %v440
  %v442 = vrot.slane %v441, 2
  %v443 = vadd.f32 %v441, %v442
  %v444 = vrot.slane %v443, 1
  %v445 = vadd.f32 %v443, %v444
  %446 = vst [vmem:[%s3] sm:$0x1] %v445
  %v447 = vmul.f32 %v403, %v403
  %v448 = vmul.f32 %v406, %v406
  %v449 = vmul.f32 %v411, %v411
  %v450 = vmul.f32 %v414, %v414
  %v451 = vadd.f32 %v447, %v448
  %v452 = vadd.f32 %v451, %v449
  %v453 = vadd.f32 %v452, %v450
  %v454 = vrot.slane %v453, 4
  %v455 = vadd.f32 %v453, %v454
  %v456 = vrot.slane %v455, 2
  %v457 = vadd.f32 %v455, %v456
  %v458 = vrot.slane %v457, 1
  %v459 = vadd.f32 %v457, %v458
  %460 = vst [vmem:[%s4] sm:$0x1] %v459
  // Predicated region
  $region10: #{discriminator_forward.12} parent=0 // pred_check
    _
  $region11: #{discriminator_forward.12} parent=0 // pred_check_branch
    %462 = sbr.rel (0) target = $region13
  $region12: #{discriminator_forward.12} parent=0 // pred_region
    _
  $region13: #{discriminator_forward.12} parent=0 // pred_fallthru
    _
  // Predicated region
  $region14: #{discriminator_forward.12} parent=0 // pred_check
    _
  $region15: #{discriminator_forward.12} parent=0 // pred_check_branch
    %464 = sbr.rel (0) target = $region17
  $region16: #{discriminator_forward.12} parent=0 // pred_region
    _
  $region17: #{discriminator_forward.12} parent=0 // pred_fallthru
    _
  // Predicated region
  $region18: #{discriminator_forward.12} parent=0 // pred_check
    _
  $region19: #{discriminator_forward.12} parent=0 // pred_check_branch
    %466 = sbr.rel (0) target = $region21
  $region20: #{discriminator_forward.12} parent=0 // pred_region
    _
  $region21: #{discriminator_forward.12} parent=0 // pred_fallthru
    _
  // Predicated region
  $region22: #{discriminator_forward.12} parent=0 // pred_check
    _
  $region23: #{discriminator_forward.12} parent=0 // pred_check_branch
    %468 = sbr.rel (0) target = $region25
  $region24: #{discriminator_forward.12} parent=0 // pred_region
    _
  $region25: #{discriminator_forward.12} parent=0 // pred_fallthru
    _
  // Predicated region
  $region26: #{discriminator_forward.12} parent=0 // pred_check
    _
  $region27: #{discriminator_forward.12} parent=0 // pred_check_branch
    %470 = sbr.rel (0) target = $region29
  $region28: #{discriminator_forward.12} parent=0 // pred_region
    _
  $region29: #{discriminator_forward.12} parent=0 // pred_fallthru
    _
  // Predicated region
  $region30: #{discriminator_forward.12} parent=0 // pred_check
    _
  $region31: #{discriminator_forward.12} parent=0 // pred_check_branch
    %472 = sbr.rel (0) target = $region33
  $region32: #{discriminator_forward.12} parent=0 // pred_region
    _
  $region33: #{discriminator_forward.12} parent=0 // pred_fallthru
    _

// kernel: discriminator_forward.13
$region0: #{discriminator_forward.13}
  #allocation0 [shape = 'u32[]', space=smem, size = 0x4, offset = 0x4, fixed_abs, tag = 'smem constant byte address 0x4 - core index']
  #allocation1 [shape = 'u32[144,128]{1,0:T(1,128)}', space=vmem, size = 0x12000, scoped, tag = 'internal scratch']
  %s0 = inlined_call_operand.vmem [shape: bf16[32,128], index: 0, kind: input, shape index: {}]
  %s1 = inlined_call_operand.vmem [shape: f32[1,128], index: 1, kind: input, shape index: {}]
  %s2 = inlined_call_operand.vmem [shape: f32[1,128], index: 2, kind: input, shape index: {}]
  %s3 = inlined_call_operand.vmem [shape: f32[32,128], index: 3, kind: input, shape index: {}]
  %s4 = inlined_call_operand.vmem [shape: f32[8,32], index: 4, kind: input, shape index: {}]
  %s5 = inlined_call_operand.vmem [shape: f32[8,1], index: 5, kind: output, shape index: {}]
  %s6 = sld [smem:[#allocation0]]
  $region30: #{discriminator_forward.13} parent=0
    _
  %s8 = ssub.s32 1, %s6
  %s9 = scalar_select 0, %s8, %s6
  // Predicated region
  $region2: #{discriminator_forward.13} parent=0 // pred_check
    _
  $region3: #{discriminator_forward.13} parent=0 // pred_check_branch
    %11 = sbr.rel (0) target = $region5
  $region4: #{discriminator_forward.13} parent=0 // pred_region
    _
  $region5: #{discriminator_forward.13} parent=0 // pred_fallthru
    _
  // Predicated region
  $region6: #{discriminator_forward.13} parent=0 // pred_check
    _
  $region7: #{discriminator_forward.13} parent=0 // pred_check_branch
    %13 = sbr.rel (0) target = $region9
  $region8: #{discriminator_forward.13} parent=0 // pred_region
    _
  $region9: #{discriminator_forward.13} parent=0 // pred_fallthru
    _
  // Predicated region
  $region10: #{discriminator_forward.13} parent=0 // pred_check
    _
  $region11: #{discriminator_forward.13} parent=0 // pred_check_branch
    %15 = sbr.rel (0) target = $region13
  $region12: #{discriminator_forward.13} parent=0 // pred_region
    _
  $region13: #{discriminator_forward.13} parent=0 // pred_fallthru
    _
  // Predicated region
  $region14: #{discriminator_forward.13} parent=0 // pred_check
    _
  $region15: #{discriminator_forward.13} parent=0 // pred_check_branch
    %17 = sbr.rel (0) target = $region17
  $region16: #{discriminator_forward.13} parent=0 // pred_region
    _
  $region17: #{discriminator_forward.13} parent=0 // pred_fallthru
    _
  // Predicated region
  $region18: #{discriminator_forward.13} parent=0 // pred_check
    _
  $region19: #{discriminator_forward.13} parent=0 // pred_check_branch
    %19 = sbr.rel (0) target = $region21
  $region20: #{discriminator_forward.13} parent=0 // pred_region
    _
  $region21: #{discriminator_forward.13} parent=0 // pred_fallthru
    _
  %v20 = vld [vmem:[%s0] sm:$0xf]
  %v21 = vld [vmem:[%s0 + $0x4] sm:$0xf]
  %v22 = vld [vmem:[%s0 + $0x8] sm:$0xf]
  %v23 = vld [vmem:[%s0 + $0xc] sm:$0xf]
  %v24 = vunpack.c.l.bf16 %v20
  %v25 = vunpack.c.l.bf16 %v21
  %v26 = vunpack.c.l.bf16 %v22
  %v27 = vunpack.c.l.bf16 %v23
  %v28 = vld [vmem:[%s1] sm:$0x1]
  %v30 = vlaneseq
  %v31 = vshrl.u32 %v30, 7
  %v32 = vsub.s32 0, %v31
  %v33 = vrot.slane %v28, %v32
  %v35 = vmul.f32 %v24, %v33
  %v36 = vmul.f32 %v25, %v33
  %v37 = vmul.f32 %v26, %v33
  %v38 = vmul.f32 %v27, %v33
  %v39 = vld [vmem:[%s2] sm:$0x1]
  %v41 = vlaneseq
  %v42 = vshrl.u32 %v41, 7
  %v43 = vsub.s32 0, %v42
  %v44 = vrot.slane %v39, %v43
  %v46 = vadd.f32 %v35, %v44
  %v47 = vadd.f32 %v36, %v44
  %v48 = vadd.f32 %v37, %v44
  %v49 = vadd.f32 %v38, %v44
  %v50 = vmul.f32 %v46, 0.2
  %v51 = vmul.f32 %v47, 0.2
  %v52 = vmul.f32 %v48, 0.2
  %v53 = vmul.f32 %v49, 0.2
  %v54 = vmax.f32 %v46, %v50
  %v55 = vmax.f32 %v47, %v51
  %v56 = vmax.f32 %v48, %v52
  %v57 = vmax.f32 %v49, %v53
  %v58 = vld [vmem:[%s3] sm:$0xff]
  %v59 = vld [vmem:[%s3 + $0x8] sm:$0xff]
  %v60 = vld [vmem:[%s3 + $0x10] sm:$0xff]
  %v61 = vld [vmem:[%s3 + $0x18] sm:$0xff]
  %v62 = vmul.f32 %v54, %v58
  %v63 = vmul.f32 %v55, %v59
  %v64 = vmul.f32 %v56, %v60
  %v65 = vmul.f32 %v57, %v61
  %v66 = vld [vmem:[%s4] sm:$0xff]
  %vm67 = vcmask 261120
  %v69 = vsel %vm67, %v66, 0
  %71 = vmatprep.subr.mxu0 0.0
  %72 = vmatpush1.msra.mxu0 %v62
  %73 = vmatprep.subr.mxu0 0.0
  %74 = vmatpush1.msra.mxu0 %v63
  %75 = vmatprep.subr.mxu0 0.0
  %76 = vmatpush1.msra.mxu0 %v64
  %77 = vmatprep.subr.mxu0 0.0
  %78 = vmatpush1.msra.mxu0 %v65
  %79 = vmatprep.subr.mxu0 0.0
  %80 = vmatpush1.msra.mxu0 0.0
  %81 = vmatprep.subr.mxu0 0.0
  %82 = vmatpush1.msra.mxu0 0.0
  %83 = vmatprep.subr.mxu0 0.0
  %84 = vmatpush1.msra.mxu0 0.0
  %85 = vmatprep.subr.mxu0 0.0
  %86 = vmatpush1.msra.mxu0 0.0
  %87 = vmatprep.subr.mxu0 0.0
  %88 = vmatpush1.msra.mxu0 0.0
  %89 = vmatprep.subr.mxu0 0.0
  %90 = vmatpush1.msra.mxu0 0.0
  %91 = vmatprep.subr.mxu0 0.0
  %92 = vmatpush1.msra.mxu0 0.0
  %93 = vmatprep.subr.mxu0 0.0
  %94 = vmatpush1.msra.mxu0 0.0
  %95 = vmatprep.subr.mxu0 0.0
  %96 = vmatpush1.msra.mxu0 0.0
  %97 = vmatprep.subr.mxu0 0.0
  %98 = vmatpush1.msra.mxu0 0.0
  %99 = vmatprep.subr.mxu0 0.0
  %100 = vmatpush1.msra.mxu0 0.0
  %101 = vmatprep.subr.mxu0 0.0
  %102 = vmatpush1.msra.mxu0 0.0
  %103 = vmatprep.subr.mxu0 0.0
  %104 = vmatpush1.msra.mxu0 0.0
  %105 = vmatprep.subr.mxu0 0.0
  %106 = vmatpush1.msra.mxu0 0.0
  %107 = vmatprep.subr.mxu0 0.0
  %108 = vmatpush1.msra.mxu0 0.0
  %109 = vmatprep.subr.mxu0 0.0
  %110 = vmatpush1.msra.mxu0 0.0
  %111 = vmatprep.subr.mxu0 0.0
  %112 = vmatpush1.msra.mxu0 0.0
  %113 = vmatprep.subr.mxu0 0.0
  %114 = vmatpush1.msra.mxu0 0.0
  %115 = vmatprep.subr.mxu0 0.0
  %116 = vmatpush1.msra.mxu0 0.0
  %117 = vmatprep.subr.mxu0 0.0
  %118 = vmatpush1.msra.mxu0 0.0
  %119 = vmatprep.subr.mxu0 0.0
  %120 = vmatpush1.msra.mxu0 0.0
  %121 = vmatprep.subr.mxu0 0.0
  %122 = vmatpush1.msra.mxu0 0.0
  %123 = vmatprep.subr.mxu0 0.0
  %124 = vmatpush1.msra.mxu0 0.0
  %125 = vmatprep.subr.mxu0 0.0
  %126 = vmatpush1.msra.mxu0 0.0
  %127 = vmatprep.subr.mxu0 0.0
  %128 = vmatpush1.msra.mxu0 0.0
  %129 = vmatprep.subr.mxu0 0.0
  %130 = vmatpush1.msra.mxu0 0.0
  %131 = vmatprep.subr.mxu0 0.0
  %132 = vmatpush1.msra.mxu0 0.0
  %133 = vmatprep.subr.mxu0 0.0
  %134 = vmatpush1.msra.mxu0 0.0
  %135 = vmatprep.mubr.f32.mxu0 0.0
  %136 = vmatmul.mubr.f32.gmra.mrb[0].mxu0 %v69
  %v137 = vpop.f32.mrb[0].mxu0
  %v138 = vadd.f32 0.0, %v137
  %v139 = vpop.f32.mrb[0].mxu0
  %140 = vdwg.mxu0
  %141 = vadd.xlane.f32.xlu0 %v138
  %v142 = vpop.xlane.xlu0 %141
  %v143 = vsub.f32 0.0, %v142
  %v144 = vmul.f32 %v143, 1.442695
  %v145 = vpow.pop %v144
  %v146 = vadd.f32 %v145, 1.0
  %v147 = vrcp.pop %v146
  %vm148 = vcmask 7168
  %149 = vst.msk [vmem:[%s5] sm:$0xff] %vm148, %v147
  // Predicated region
  $region22: #{discriminator_forward.13} parent=0 // pred_check
    _
  $region23: #{discriminator_forward.13} parent=0 // pred_check_branch
    %151 = sbr.rel (0) target = $region25
  $region24: #{discriminator_forward.13} parent=0 // pred_region
    _
  $region25: #{discriminator_forward.13} parent=0 // pred_fallthru
    _
  // Predicated region
  $region26: #{discriminator_forward.13} parent=0 // pred_check
    _
  $region27: #{discriminator_forward.13} parent=0 // pred_check_branch
    %153 = sbr.rel (0) target = $region29
  $region28: #{discriminator_forward.13} parent=0 // pred_region
    _
  $region29: #{discriminator_forward.13} parent=0 // pred_fallthru
    _

</llo_original>
